<compile_context>
chip_gen: v5e
topology: v5e:2x2
jax: 0.10.0
libtpu: 0.0.40
codegen_flags: <defaults>
</compile_context>

<pallas_src>
import math
from functools import partial

import jax
import jax.numpy as jnp
from jax import lax
from jax.experimental import pallas as pl
from jax.experimental.pallas import tpu as pltpu


# --------------------------------------------------------------------------
# generation helpers (trace-time, safe fallbacks)
# --------------------------------------------------------------------------
def _bf16_elementwise_ok():
    # v6e / v7x have bf16 VALU + bf16 EUP; v5e (and older) do not.
    try:
        kind = jax.devices()[0].device_kind.lower()
    except Exception:
        return False
    return ("v6" in kind) or ("v7" in kind)


def _default_max_query_tile():
    try:
        kind = jax.devices()[0].device_kind.lower()
    except Exception:
        return 256
    return 128 if "v5" in kind else 256      # 128x128 MXU on v5e, 256x256 later


def _vmem_capacity_bytes():
    try:
        return int(pltpu.get_tpu_info().vmem_capacity_bytes)
    except Exception:
        return 64 << 20                       # v7x-safe fallback


# --------------------------------------------------------------------------
# Pallas kernel: one (batch, query-tile) step of the LRA attention layer.
# --------------------------------------------------------------------------
def _lra_kernel(q_ref, k_ref, v_ref, qc_ref, qs_ref, kc_ref, ks_ref,
                wq_ref, bq_ref, wk_ref, bk_ref, wv_ref, bv_ref,
                wo_ref, bo_ref, exp_ref,
                out_ref,
                kr_scr, vp_scr, oh_scr,
                *, n_heads, n_periods, E, bf16_elem):
    H, M = n_heads, n_periods
    E4 = E // 4
    ME = M * E
    bf16 = jnp.bfloat16
    rot_dt = bf16 if bf16_elem else jnp.float32
    dn = (((1,), (1,)), ((), ()))              # contract last dims of both sides

    def _chunks(x):
        return [x[:, j * E4:(j + 1) * E4] for j in range(4)]

    def swizzle_q(x):                          # [-x1, x0, x3, -x2]
        x0, x1, x2, x3 = _chunks(x)
        return jnp.concatenate([-x1, x0, x3, -x2], axis=1)

    def swizzle_k(x):                          # [-x2, -x3, x0, x1]
        x0, x1, x2, x3 = _chunks(x)
        return jnp.concatenate([-x2, -x3, x0, x1], axis=1)

    def rep_m(x):                              # (T, E) -> (T, M*E)
        return jnp.concatenate([x] * M, axis=1) if M > 1 else x

    def rotate(base, swz, c_e, s_e):
        # base/swz: (T, E) f32; c_e/s_e: (T, M*E) lane-expanded cos/sin (f32).
        b = rep_m(base).astype(rot_dt)
        w = rep_m(swz).astype(rot_dt)
        return (b * c_e.astype(rot_dt) + w * s_e.astype(rot_dt)).astype(bf16)

    # ----- K / V side: compute once per batch element (first L-tile only) ---
    @pl.when(pl.program_id(1) == 0)
    def _():
        Kp = jnp.dot(k_ref[...], wk_ref[...],
                     preferred_element_type=jnp.float32) + bk_ref[...]
        Vp = jnp.dot(v_ref[...], wv_ref[...],
                     preferred_element_type=jnp.float32) + bv_ref[...]
        vp_scr[...] = Vp.astype(bf16)
        # lane-expand cos/sin (S, H*M) -> (S, H*M*E) with an exact 0/1 matmul
        kc_e = jnp.dot(kc_ref[...], exp_ref[...],
                       preferred_element_type=jnp.float32)
        ks_e = jnp.dot(ks_ref[...], exp_ref[...],
                       preferred_element_type=jnp.float32)
        for h in range(H):                     # H is a small constant -> unrolled
            k_h = Kp[:, h * E:(h + 1) * E]
            kr_scr[:, h * ME:(h + 1) * ME] = rotate(
                k_h, swizzle_k(k_h),
                kc_e[:, h * ME:(h + 1) * ME], ks_e[:, h * ME:(h + 1) * ME])

    # ----- Q side: per (batch, L-tile) ---------------------------------------
    Qp = jnp.dot(q_ref[...], wq_ref[...],
                 preferred_element_type=jnp.float32) + bq_ref[...]
    qc_e = jnp.dot(qc_ref[...], exp_ref[...], preferred_element_type=jnp.float32)
    qs_e = jnp.dot(qs_ref[...], exp_ref[...], preferred_element_type=jnp.float32)
    scale = 1.0 / (math.sqrt(E) * M)

    for h in range(H):
        q_h = Qp[:, h * E:(h + 1) * E]
        qr = rotate(q_h, swizzle_q(q_h),
                    qc_e[:, h * ME:(h + 1) * ME],
                    qs_e[:, h * ME:(h + 1) * ME])          # (TL, M*E) bf16
        kr = kr_scr[:, h * ME:(h + 1) * ME]                # (S,  M*E) bf16
        scores = lax.dot_general(qr, kr, dn,
                                 preferred_element_type=jnp.float32) * scale
        smax = jnp.max(scores, axis=-1, keepdims=True)
        if bf16_elem:                                      # bf16 EUP exp (v6e/v7x)
            p = jnp.exp((scores - smax).astype(bf16))
            denom = jnp.sum(p.astype(jnp.float32), axis=-1, keepdims=True)
        else:                                              # f32 exp (v5e)
            p_f = jnp.exp(scores - smax)
            denom = jnp.sum(p_f, axis=-1, keepdims=True)
            p = p_f.astype(bf16)
        inv = pl.reciprocal(denom, approx=True)            # (TL, 1), EUP slot
        # TODO(synk): attention dropout (p=0.1) is identity at inference; omitted.
        o_h = jnp.dot(p, vp_scr[:, h * E:(h + 1) * E],
                      preferred_element_type=jnp.float32) * inv
        oh_scr[:, h * E:(h + 1) * E] = o_h.astype(bf16)

    out = jnp.dot(oh_scr[...], wo_ref[...],
                  preferred_element_type=jnp.float32) + bo_ref[...]
    out_ref[...] = out.astype(out_ref.dtype)


# --------------------------------------------------------------------------
# Angle features (Conv1d k=1 == per-timestep linear) + penalties: pure JAX.
# --------------------------------------------------------------------------
def _angle_features(x, w_omega, b_omega, w_theta, b_theta):
    hp = lax.Precision.HIGHEST
    omega = jax.nn.relu(jnp.dot(x, w_omega, precision=hp) + b_omega)
    theta = jnp.tanh(jnp.dot(x, w_theta, precision=hp) + b_theta) * math.pi
    T = x.shape[1]
    pos = (jnp.arange(T, dtype=jnp.float32) / T)[None, :, None]
    ang = omega * pos + theta
    return omega, theta, jnp.cos(ang), jnp.sin(ang)


# --------------------------------------------------------------------------
# Wrapper: one LearningToRotateAttentionLayer (grid over batch x L-tiles).
# --------------------------------------------------------------------------
def lra_layer_pallas(p, queries, keys, values, n_heads, n_periods,
                     max_query_tile=None):
    Bq, L, D = queries.shape
    B, S, _ = keys.shape
    assert Bq in (1, B), "queries batch must be 1 (inducing) or match keys"
    assert values.shape[0] == B and values.shape[1] == S
    H, M = n_heads, n_periods
    E = D // H
    assert E % 4 == 0, "head dim must be divisible by 4 (quaternion chunks)"
    HM, HE, HME = H * M, H * E, H * M * E
    bf16 = jnp.bfloat16

    # ---- tiny angle projections + penalties, outside the kernel ------------
    q_omega, q_theta, q_cos, q_sin = _angle_features(
        queries, p['wqo'], p['bqo'], p['wqt'], p['bqt'])
    k_omega, k_theta, k_cos, k_sin = _angle_features(
        keys, p['wko'], p['bko'], p['wkt'], p['bkt'])
    rep_q = B // Bq        # un-broadcast inducing queries count B times
    pen_omega = (rep_q * jnp.sum((q_omega[:, 1:] - q_omega[:, :-1]) ** 2)
                 + jnp.sum((k_omega[:, 1:] - k_omega[:, :-1]) ** 2))
    pen_theta = rep_q * jnp.sum(q_theta ** 2) + jnp.sum(k_theta ** 2)

    # ---- query-length tiling ------------------------------------------------
    if max_query_tile is None:
        max_query_tile = _default_max_query_tile()
    TL = L if L <= max_query_tile else max_query_tile
    nLT = pl.cdiv(L, TL)

    # exact 0/1 lane-expansion matrix: (HM, HM*E), column j*E+e selects col j
    expand = jnp.repeat(jnp.eye(HM, dtype=jnp.float32), E, axis=1)

    weights = [p['wq'].astype(bf16), p['bq'],
               p['wk'].astype(bf16), p['bk'],
               p['wv'].astype(bf16), p['bv'],
               p['wo'].astype(bf16), p['bo'],
               expand]

    bf16_elem = _bf16_elementwise_ok()
    kernel = partial(_lra_kernel, n_heads=H, n_periods=M, E=E,
                     bf16_elem=bf16_elem)

    if Bq == 1 and B > 1:
        q_map = lambda b, lt: (0, lt, 0)       # grid-invariant inducing queries
    else:
        q_map = lambda b, lt: (b, lt, 0)
    kv_map = lambda b, lt: (b, 0, 0)
    o_map = lambda b, lt: (b, lt, 0)

    def wspec(w):
        return pl.BlockSpec(tuple(w.shape), lambda b, lt: (0, 0))

    in_specs = ([pl.BlockSpec((None, TL, D), q_map),
                 pl.BlockSpec((None, S, D), kv_map),
                 pl.BlockSpec((None, S, D), kv_map),
                 pl.BlockSpec((None, TL, HM), q_map),
                 pl.BlockSpec((None, TL, HM), q_map),
                 pl.BlockSpec((None, S, HM), kv_map),
                 pl.BlockSpec((None, S, HM), kv_map)]
                + [wspec(w) for w in weights])
    out_spec = pl.BlockSpec((None, TL, D), o_map)

    scratch_shapes = [pltpu.VMEM((S, HME), bf16),   # rotated K slab (per batch)
                      pltpu.VMEM((S, HE), bf16),    # projected V (per batch)
                      pltpu.VMEM((TL, HE), bf16)]   # per-head attention outputs

    # ---- VMEM budget: blocks (double-buffered) + weights + scratch + temps --
    bfb, f32b = 2, 4
    blk_in = (bfb * (TL + 2 * S) * D
              + f32b * (2 * TL + 2 * S) * HM)
    blk_out = f32b * TL * D
    w_bytes = sum(int(w.size) * w.dtype.itemsize for w in weights)
    scr_bytes = bfb * (S * HME + S * HE + TL * HE)
    tmp_bytes = (f32b * (TL * HE + 2 * S * HE + 2 * TL * HME + 2 * S * HME
                         + 4 * TL * S)
                 + bfb * (2 * TL * HME + TL * S))
    est = 2 * (blk_in + blk_out + w_bytes) + scr_bytes + tmp_bytes
    cap = _vmem_capacity_bytes()
    vmem_limit = int(min(max(est + (4 << 20), 32 << 20), cap - (8 << 20)))

    out = pl.pallas_call(
        kernel,
        out_shape=jax.ShapeDtypeStruct((B, L, D), jnp.float32),
        grid=(B, nLT),
        in_specs=in_specs,
        out_specs=out_spec,
        scratch_shapes=scratch_shapes,
        compiler_params=pltpu.CompilerParams(
            dimension_semantics=("parallel", "arbitrary"),
            vmem_limit_bytes=vmem_limit),
    )(queries.astype(bf16), keys.astype(bf16), values.astype(bf16),
      q_cos, q_sin, k_cos, k_sin, *weights)

    return out, pen_omega, pen_theta


def _trend_norm(x, eps=1e-5):
    # TODO(synk): TrendNorm's definition is not provided with the reference module;
    # approximated here by a parameter-free LayerNorm over d_model.
    mu = jnp.mean(x, axis=-1, keepdims=True)
    var = jnp.mean((x - mu) ** 2, axis=-1, keepdims=True)
    return (x - mu) / jnp.sqrt(var + eps)


def decoupling_forward_pallas(params, queries, keys, values, *, n_heads,
                              n_periods, max_query_tile=None):
    # NOTE: evaluated with mask_flag=False semantics.
    # TODO(synk): TriangularCausalMask path (mask_flag=True) is ill-defined for
    # cross-attention with L != S in the reference and is not implemented.
    # The (1, inducing, D) buffer is passed un-broadcast (grid-invariant query).
    ind, po1, pt1 = lra_layer_pallas(params['attn1'], params['I'], keys, values,
                                     n_heads, n_periods, max_query_tile)
    ind = _trend_norm(ind)
    # TODO(synk): EMA update of the inducing buffer (is_training=True path) omitted.
    out, po2, pt2 = lra_layer_pallas(params['attn2'], queries, ind, ind,
                                     n_heads, n_periods, max_query_tile)
    return out, None, po1 + po2, pt1 + pt2


# --------------------------------------------------------------------------
# Pure-JAX reference with matching bf16 matmul boundaries (correctness check).
# --------------------------------------------------------------------------
def _mm_bf16(a, b):
    return jnp.dot(a.astype(jnp.bfloat16), b.astype(jnp.bfloat16),
                   preferred_element_type=jnp.float32)


def _lra_layer_ref(p, queries, keys, values, n_heads, n_periods):
    B, L, D = queries.shape
    S = keys.shape[1]
    H, M = n_heads, n_periods
    E = D // H
    bf16 = jnp.bfloat16
    hp = lax.Precision.HIGHEST
    qo = jax.nn.relu(jnp.dot(queries, p['wqo'], precision=hp) + p['bqo']).reshape(B, L, H, M)
    ko = jax.nn.relu(jnp.dot(keys, p['wko'], precision=hp) + p['bko']).reshape(B, S, H, M)
    qt = (jnp.tanh(jnp.dot(queries, p['wqt'], precision=hp) + p['bqt']) * math.pi).reshape(B, L, H, M)
    kt = (jnp.tanh(jnp.dot(keys, p['wkt'], precision=hp) + p['bkt']) * math.pi).reshape(B, S, H, M)
    Q = (_mm_bf16(queries, p['wq']) + p['bq']).reshape(B, L, H, E)
    K = (_mm_bf16(keys, p['wk']) + p['bk']).reshape(B, S, H, E)
    V = (_mm_bf16(values, p['wv']) + p['bv']).reshape(B, S, H, E)
    q_pos = (jnp.arange(L, dtype=jnp.float32) / L).reshape(1, L, 1, 1)
    k_pos = (jnp.arange(S, dtype=jnp.float32) / S).reshape(1, S, 1, 1)
    Qa, Ka = qo * q_pos + qt, ko * k_pos + kt
    Qc, Qs, Kc, Ks = jnp.cos(Qa), jnp.sin(Qa), jnp.cos(Ka), jnp.sin(Ka)
    q0, q1, q2, q3 = jnp.split(Q, 4, axis=-1)
    k0, k1, k2, k3 = jnp.split(K, 4, axis=-1)
    rot = lambda a, b: jnp.einsum('blhe,blhm->blhme', a, b)
    Qr = jnp.concatenate([rot(q0, Qc) - rot(q1, Qs), rot(q1, Qc) + rot(q0, Qs),
                          rot(q2, Qc) + rot(q3, Qs), rot(q3, Qc) - rot(q2, Qs)], axis=-1)
    Kr = jnp.concatenate([rot(k0, Kc) - rot(k2, Ks), rot(k1, Kc) - rot(k3, Ks),
                          rot(k2, Kc) + rot(k0, Ks), rot(k3, Kc) + rot(k1, Ks)], axis=-1)
    scores = jnp.einsum('blhme,bshme->bhls', Qr.astype(bf16), Kr.astype(bf16),
                        preferred_element_type=jnp.float32) / M
    A = jax.nn.softmax(scores / math.sqrt(E), axis=-1)
    out = jnp.einsum('bhls,bshd->blhd', A.astype(bf16), V.astype(bf16),
                     preferred_element_type=jnp.float32).reshape(B, L, H * E)
    out = _mm_bf16(out, p['wo']) + p['bo']
    pen_o = jnp.sum((qo[:, 1:] - qo[:, :-1]) ** 2) + jnp.sum((ko[:, 1:] - ko[:, :-1]) ** 2)
    pen_t = jnp.sum(qt ** 2) + jnp.sum(kt ** 2)
    return out, pen_o, pen_t


def decoupling_forward_ref(params, queries, keys, values, *, n_heads, n_periods):
    B = queries.shape[0]
    inducings = jnp.broadcast_to(params['I'], (B,) + params['I'].shape[1:])
    ind, po1, pt1 = _lra_layer_ref(params['attn1'], inducings, keys, values,
                                   n_heads, n_periods)
    ind = _trend_norm(ind)
    out, po2, pt2 = _lra_layer_ref(params['attn2'], queries, ind, ind,
                                   n_heads, n_periods)
    return out, None, po1 + po2, pt1 + pt2


# --------------------------------------------------------------------------
# Deterministic parameter init (matches the module's shapes).
# --------------------------------------------------------------------------
def _uniform(key, shape, bound):
    return jax.random.uniform(key, shape, jnp.float32, -bound, bound)


def init_lra_layer_params(key, d_model, n_heads, n_periods):
    E = d_model // n_heads
    HE, HM = E * n_heads, n_periods * n_heads
    ks = jax.random.split(key, 16)
    bd = 1.0 / math.sqrt(d_model)
    bo = 1.0 / math.sqrt(HE)
    return {
        'wq': _uniform(ks[0], (d_model, HE), bd), 'bq': _uniform(ks[1], (1, HE), bd),
        'wk': _uniform(ks[2], (d_model, HE), bd), 'bk': _uniform(ks[3], (1, HE), bd),
        'wv': _uniform(ks[4], (d_model, HE), bd), 'bv': _uniform(ks[5], (1, HE), bd),
        'wqo': _uniform(ks[6], (d_model, HM), bd), 'bqo': _uniform(ks[7], (1, HM), bd),
        'wko': _uniform(ks[8], (d_model, HM), bd), 'bko': _uniform(ks[9], (1, HM), bd),
        'wqt': _uniform(ks[10], (d_model, HM), bd), 'bqt': _uniform(ks[11], (1, HM), bd),
        'wkt': _uniform(ks[12], (d_model, HM), bd), 'bkt': _uniform(ks[13], (1, HM), bd),
        'wo': _uniform(ks[14], (HE, d_model), bo), 'bo': _uniform(ks[15], (1, d_model), bo),
    }


def init_decoupling_params(key, d_model, n_heads, n_periods, inducing_size=96):
    k_i, k1, k2 = jax.random.split(key, 3)
    bound = 1.0 / math.sqrt(d_model)
    return {
        'I': _uniform(k_i, (1, inducing_size, d_model), bound),
        'attn1': init_lra_layer_params(k1, d_model, n_heads, n_periods),
        'attn2': init_lra_layer_params(k2, d_model, n_heads, n_periods),
    }


# --------------------------------------------------------------------------
if __name__ == "__main__":
    B, Lq, S, d_model, n_heads, n_periods = 2, 16, 16, 32, 2, 2

    root = jax.random.PRNGKey(0)
    kp, kq, kk, kv = jax.random.split(root, 4)
    params = init_decoupling_params(kp, d_model, n_heads, n_periods)

    queries = jax.random.normal(kq, (B, Lq, d_model), jnp.float32)
    keys = jax.random.normal(kk, (B, S, d_model), jnp.float32)
    values = jax.random.normal(kv, (B, S, d_model), jnp.float32)

    out_r, _, po_r, pt_r = decoupling_forward_ref(
        params, queries, keys, values, n_heads=n_heads, n_periods=n_periods)

    # Run with default tiling and with a forced small query tile (the inducing
    # call then runs L=96 as 3 x 32 tiles, exercising the multi-tile path and
    # the persistent K/V scratch).
    for tile in (None, 32):
        fwd = jax.jit(partial(decoupling_forward_pallas, n_heads=n_heads,
                              n_periods=n_periods, max_query_tile=tile))
        out, attn, omegas_pen, thetas_pen = fwd(params, queries, keys, values)
        jax.block_until_ready((out, omegas_pen, thetas_pen))

        # bf16 rotation/exp on v6e/v7x widens the gap vs the f32-elementwise ref.
        assert jnp.allclose(out, out_r, rtol=3e-2, atol=3e-2), "output mismatch"
        assert jnp.allclose(omegas_pen, po_r, rtol=1e-2, atol=1e-2), "omega penalty mismatch"
        assert jnp.allclose(thetas_pen, pt_r, rtol=1e-2, atol=1e-2), "theta penalty mismatch"

    print("KERNEL_OK")
</pallas_src>

<mosaic_0001>
module attributes {stable_mosaic.version = 11 : i64} {
  func.func @_lra_kernel(%arg0: i32, %arg1: i32, %arg2: memref<1x96x32xbf16, #tpu.memory_space<vmem>>, %arg3: memref<1x16x32xbf16, #tpu.memory_space<vmem>>, %arg4: memref<1x16x32xbf16, #tpu.memory_space<vmem>>, %arg5: memref<1x96x4xf32, #tpu.memory_space<vmem>>, %arg6: memref<1x96x4xf32, #tpu.memory_space<vmem>>, %arg7: memref<1x16x4xf32, #tpu.memory_space<vmem>>, %arg8: memref<1x16x4xf32, #tpu.memory_space<vmem>>, %arg9: memref<32x32xbf16, #tpu.memory_space<vmem>>, %arg10: memref<1x32xf32, #tpu.memory_space<vmem>>, %arg11: memref<32x32xbf16, #tpu.memory_space<vmem>>, %arg12: memref<1x32xf32, #tpu.memory_space<vmem>>, %arg13: memref<32x32xbf16, #tpu.memory_space<vmem>>, %arg14: memref<1x32xf32, #tpu.memory_space<vmem>>, %arg15: memref<32x32xbf16, #tpu.memory_space<vmem>>, %arg16: memref<1x32xf32, #tpu.memory_space<vmem>>, %arg17: memref<4x64xf32, #tpu.memory_space<vmem>>, %arg18: memref<1x96x32xf32, #tpu.memory_space<vmem>>, %arg19: memref<16x64xbf16, #tpu.memory_space<vmem>>, %arg20: memref<16x32xbf16, #tpu.memory_space<vmem>>, %arg21: memref<96x32xbf16, #tpu.memory_space<vmem>>) attributes {dimension_semantics = [#tpu.dimension_semantics<parallel>, #tpu.dimension_semantics<arbitrary>], iteration_bounds = array<i64: 2, 1>, scalar_prefetch = 0 : i64, scratch_operands = 3 : i64, tpu.core_type = #tpu.core_type<tc>, window_params = [{transform_indices = @transform_0, window_bounds = array<i64: 1, 96, 32>}, {transform_indices = @transform_1, window_bounds = array<i64: 1, 16, 32>}, {transform_indices = @transform_2, window_bounds = array<i64: 1, 16, 32>}, {transform_indices = @transform_3, window_bounds = array<i64: 1, 96, 4>}, {transform_indices = @transform_4, window_bounds = array<i64: 1, 96, 4>}, {transform_indices = @transform_5, window_bounds = array<i64: 1, 16, 4>}, {transform_indices = @transform_6, window_bounds = array<i64: 1, 16, 4>}, {pipeline_mode = #tpu.pipeline_mode<synchronous>, transform_indices = @transform_7, window_bounds = array<i64: 32, 32>}, {pipeline_mode = #tpu.pipeline_mode<synchronous>, transform_indices = @transform_8, window_bounds = array<i64: 1, 32>}, {pipeline_mode = #tpu.pipeline_mode<synchronous>, transform_indices = @transform_9, window_bounds = array<i64: 32, 32>}, {pipeline_mode = #tpu.pipeline_mode<synchronous>, transform_indices = @transform_10, window_bounds = array<i64: 1, 32>}, {pipeline_mode = #tpu.pipeline_mode<synchronous>, transform_indices = @transform_11, window_bounds = array<i64: 32, 32>}, {pipeline_mode = #tpu.pipeline_mode<synchronous>, transform_indices = @transform_12, window_bounds = array<i64: 1, 32>}, {pipeline_mode = #tpu.pipeline_mode<synchronous>, transform_indices = @transform_13, window_bounds = array<i64: 32, 32>}, {pipeline_mode = #tpu.pipeline_mode<synchronous>, transform_indices = @transform_14, window_bounds = array<i64: 1, 32>}, {pipeline_mode = #tpu.pipeline_mode<synchronous>, transform_indices = @transform_15, window_bounds = array<i64: 4, 64>}, {transform_indices = @transform_16, window_bounds = array<i64: 1, 96, 32>}]} {
    %c0_i32 = arith.constant 0 : i32
    %0 = arith.cmpi eq, %arg1, %c0_i32 : i32
    %1 = arith.extui %0 : i1 to i32
    %c0_i32_0 = arith.constant 0 : i32
    %2 = arith.cmpi ne, %1, %c0_i32_0 : i32
    scf.if %2 {
      %c0_53 = arith.constant 0 : index
      %c0_54 = arith.constant 0 : index
      %c0_55 = arith.constant 0 : index
      %101 = vector.load %arg3[%c0_53, %c0_54, %c0_55] : memref<1x16x32xbf16, #tpu.memory_space<vmem>>, vector<1x16x32xbf16>
      %102 = vector.shape_cast %101 : vector<1x16x32xbf16> to vector<16x32xbf16>
      %c0_56 = arith.constant 0 : index
      %c0_57 = arith.constant 0 : index
      %103 = vector.load %arg11[%c0_56, %c0_57] : memref<32x32xbf16, #tpu.memory_space<vmem>>, vector<32x32xbf16>
      %cst_58 = arith.constant dense<0.000000e+00> : vector<16x32xf32>
      %104 = tpu.matmul %102, %103, %cst_58 {dimension_numbers = #tpu.dot_dimension_numbers<[1], [0], [0], [1], [0, 0, 1, 1], [], []>} : vector<16x32xbf16>, vector<32x32xbf16>, vector<16x32xf32> -> vector<16x32xf32>
      %c0_59 = arith.constant 0 : index
      %c0_60 = arith.constant 0 : index
      %105 = vector.load %arg12[%c0_59, %c0_60] : memref<1x32xf32, #tpu.memory_space<vmem>>, vector<1x32xf32>
      %106 = vector.broadcast %105 : vector<1x32xf32> to vector<16x32xf32>
      %107 = arith.addf %104, %106 : vector<16x32xf32>
      %c0_61 = arith.constant 0 : index
      %c0_62 = arith.constant 0 : index
      %c0_63 = arith.constant 0 : index
      %108 = vector.load %arg4[%c0_61, %c0_62, %c0_63] : memref<1x16x32xbf16, #tpu.memory_space<vmem>>, vector<1x16x32xbf16>
      %109 = vector.shape_cast %108 : vector<1x16x32xbf16> to vector<16x32xbf16>
      %c0_64 = arith.constant 0 : index
      %c0_65 = arith.constant 0 : index
      %110 = vector.load %arg13[%c0_64, %c0_65] : memref<32x32xbf16, #tpu.memory_space<vmem>>, vector<32x32xbf16>
      %cst_66 = arith.constant dense<0.000000e+00> : vector<16x32xf32>
      %111 = tpu.matmul %109, %110, %cst_66 {dimension_numbers = #tpu.dot_dimension_numbers<[1], [0], [0], [1], [0, 0, 1, 1], [], []>} : vector<16x32xbf16>, vector<32x32xbf16>, vector<16x32xf32> -> vector<16x32xf32>
      %c0_67 = arith.constant 0 : index
      %c0_68 = arith.constant 0 : index
      %112 = vector.load %arg14[%c0_67, %c0_68] : memref<1x32xf32, #tpu.memory_space<vmem>>, vector<1x32xf32>
      %113 = vector.broadcast %112 : vector<1x32xf32> to vector<16x32xf32>
      %114 = arith.addf %111, %113 : vector<16x32xf32>
      %115 = arith.truncf %114 : vector<16x32xf32> to vector<16x32xbf16>
      %c0_69 = arith.constant 0 : index
      %c0_70 = arith.constant 0 : index
      %116 = vector.load %arg20[%c0_69, %c0_70] : memref<16x32xbf16, #tpu.memory_space<vmem>>, vector<16x32xbf16>
      tpu.vector_store %arg20[%c0_69, %c0_70], %115 {strides = array<i32>} : memref<16x32xbf16, #tpu.memory_space<vmem>>, vector<16x32xbf16>,
      %c0_71 = arith.constant 0 : index
      %c0_72 = arith.constant 0 : index
      %c0_73 = arith.constant 0 : index
      %117 = vector.load %arg7[%c0_71, %c0_72, %c0_73] : memref<1x16x4xf32, #tpu.memory_space<vmem>>, vector<1x16x4xf32>
      %118 = vector.shape_cast %117 : vector<1x16x4xf32> to vector<16x4xf32>
      %c0_74 = arith.constant 0 : index
      %c0_75 = arith.constant 0 : index
      %119 = vector.load %arg17[%c0_74, %c0_75] : memref<4x64xf32, #tpu.memory_space<vmem>>, vector<4x64xf32>
      %cst_76 = arith.constant dense<0.000000e+00> : vector<16x64xf32>
      %120 = tpu.matmul %118, %119, %cst_76 {dimension_numbers = #tpu.dot_dimension_numbers<[1], [0], [0], [1], [0, 0, 1, 1], [], []>} : vector<16x4xf32>, vector<4x64xf32>, vector<16x64xf32> -> vector<16x64xf32>
      %c0_77 = arith.constant 0 : index
      %c0_78 = arith.constant 0 : index
      %c0_79 = arith.constant 0 : index
      %121 = vector.load %arg8[%c0_77, %c0_78, %c0_79] : memref<1x16x4xf32, #tpu.memory_space<vmem>>, vector<1x16x4xf32>
      %122 = vector.shape_cast %121 : vector<1x16x4xf32> to vector<16x4xf32>
      %c0_80 = arith.constant 0 : index
      %c0_81 = arith.constant 0 : index
      %123 = vector.load %arg17[%c0_80, %c0_81] : memref<4x64xf32, #tpu.memory_space<vmem>>, vector<4x64xf32>
      %cst_82 = arith.constant dense<0.000000e+00> : vector<16x64xf32>
      %124 = tpu.matmul %122, %123, %cst_82 {dimension_numbers = #tpu.dot_dimension_numbers<[1], [0], [0], [1], [0, 0, 1, 1], [], []>} : vector<16x4xf32>, vector<4x64xf32>, vector<16x64xf32> -> vector<16x64xf32>
      %125 = vector.extract_strided_slice %107 {offsets = [0, 0], sizes = [16, 16], strides = [1, 1]} : vector<16x32xf32> to vector<16x16xf32>
      %126 = vector.extract_strided_slice %125 {offsets = [0, 0], sizes = [16, 4], strides = [1, 1]} : vector<16x16xf32> to vector<16x4xf32>
      %127 = vector.extract_strided_slice %125 {offsets = [0, 4], sizes = [16, 4], strides = [1, 1]} : vector<16x16xf32> to vector<16x4xf32>
      %128 = vector.extract_strided_slice %125 {offsets = [0, 8], sizes = [16, 4], strides = [1, 1]} : vector<16x16xf32> to vector<16x4xf32>
      %129 = vector.extract_strided_slice %125 {offsets = [0, 12], sizes = [16, 4], strides = [1, 1]} : vector<16x16xf32> to vector<16x4xf32>
      %cst_83 = arith.constant 0.000000e+00 : f32
      %130 = vector.broadcast %cst_83 : f32 to vector<16x4xf32>
      %131 = arith.subf %130, %128 : vector<16x4xf32>
      %cst_84 = arith.constant 0.000000e+00 : f32
      %132 = vector.broadcast %cst_84 : f32 to vector<16x4xf32>
      %133 = arith.subf %132, %129 : vector<16x4xf32>
      %134 = tpu.concatenate %131, %133, %126, %127 in 1 : vector<16x4xf32>, vector<16x4xf32>, vector<16x4xf32>, vector<16x4xf32> -> vector<16x16xf32>
      %135 = vector.extract_strided_slice %120 {offsets = [0, 0], sizes = [16, 32], strides = [1, 1]} : vector<16x64xf32> to vector<16x32xf32>
      %136 = vector.extract_strided_slice %124 {offsets = [0, 0], sizes = [16, 32], strides = [1, 1]} : vector<16x64xf32> to vector<16x32xf32>
      %137 = tpu.concatenate %125, %125 in 1 : vector<16x16xf32>, vector<16x16xf32> -> vector<16x32xf32>
      %138 = tpu.concatenate %134, %134 in 1 : vector<16x16xf32>, vector<16x16xf32> -> vector<16x32xf32>
      %139 = arith.mulf %137, %135 : vector<16x32xf32>
      %140 = arith.mulf %138, %136 : vector<16x32xf32>
      %141 = arith.addf %139, %140 : vector<16x32xf32>
      %142 = arith.truncf %141 : vector<16x32xf32> to vector<16x32xbf16>
      %c0_85 = arith.constant 0 : index
      %c0_86 = arith.constant 0 : index
      %143 = vector.load %arg19[%c0_85, %c0_86] : memref<16x64xbf16, #tpu.memory_space<vmem>>, vector<16x32xbf16>
      tpu.vector_store %arg19[%c0_85, %c0_86], %142 {strides = array<i32>} : memref<16x64xbf16, #tpu.memory_space<vmem>>, vector<16x32xbf16>,
      %144 = vector.extract_strided_slice %107 {offsets = [0, 16], sizes = [16, 16], strides = [1, 1]} : vector<16x32xf32> to vector<16x16xf32>
      %145 = vector.extract_strided_slice %144 {offsets = [0, 0], sizes = [16, 4], strides = [1, 1]} : vector<16x16xf32> to vector<16x4xf32>
      %146 = vector.extract_strided_slice %144 {offsets = [0, 4], sizes = [16, 4], strides = [1, 1]} : vector<16x16xf32> to vector<16x4xf32>
      %147 = vector.extract_strided_slice %144 {offsets = [0, 8], sizes = [16, 4], strides = [1, 1]} : vector<16x16xf32> to vector<16x4xf32>
      %148 = vector.extract_strided_slice %144 {offsets = [0, 12], sizes = [16, 4], strides = [1, 1]} : vector<16x16xf32> to vector<16x4xf32>
      %cst_87 = arith.constant 0.000000e+00 : f32
      %149 = vector.broadcast %cst_87 : f32 to vector<16x4xf32>
      %150 = arith.subf %149, %147 : vector<16x4xf32>
      %cst_88 = arith.constant 0.000000e+00 : f32
      %151 = vector.broadcast %cst_88 : f32 to vector<16x4xf32>
      %152 = arith.subf %151, %148 : vector<16x4xf32>
      %153 = tpu.concatenate %150, %152, %145, %146 in 1 : vector<16x4xf32>, vector<16x4xf32>, vector<16x4xf32>, vector<16x4xf32> -> vector<16x16xf32>
      %154 = vector.extract_strided_slice %120 {offsets = [0, 32], sizes = [16, 32], strides = [1, 1]} : vector<16x64xf32> to vector<16x32xf32>
      %155 = vector.extract_strided_slice %124 {offsets = [0, 32], sizes = [16, 32], strides = [1, 1]} : vector<16x64xf32> to vector<16x32xf32>
      %156 = tpu.concatenate %144, %144 in 1 : vector<16x16xf32>, vector<16x16xf32> -> vector<16x32xf32>
      %157 = tpu.concatenate %153, %153 in 1 : vector<16x16xf32>, vector<16x16xf32> -> vector<16x32xf32>
      %158 = arith.mulf %156, %154 : vector<16x32xf32>
      %159 = arith.mulf %157, %155 : vector<16x32xf32>
      %160 = arith.addf %158, %159 : vector<16x32xf32>
      %161 = arith.truncf %160 : vector<16x32xf32> to vector<16x32xbf16>
      %c0_89 = arith.constant 0 : index
      %c32_90 = arith.constant 32 : index
      %162 = vector.load %arg19[%c0_89, %c32_90] : memref<16x64xbf16, #tpu.memory_space<vmem>>, vector<16x32xbf16>
      tpu.vector_store %arg19[%c0_89, %c32_90], %161 {strides = array<i32>} : memref<16x64xbf16, #tpu.memory_space<vmem>>, vector<16x32xbf16>,
    } else {
    }
    %c0 = arith.constant 0 : index
    %c0_1 = arith.constant 0 : index
    %c0_2 = arith.constant 0 : index
    %3 = vector.load %arg2[%c0, %c0_1, %c0_2] : memref<1x96x32xbf16, #tpu.memory_space<vmem>>, vector<1x96x32xbf16>
    %4 = vector.shape_cast %3 : vector<1x96x32xbf16> to vector<96x32xbf16>
    %c0_3 = arith.constant 0 : index
    %c0_4 = arith.constant 0 : index
    %5 = vector.load %arg9[%c0_3, %c0_4] : memref<32x32xbf16, #tpu.memory_space<vmem>>, vector<32x32xbf16>
    %cst = arith.constant dense<0.000000e+00> : vector<96x32xf32>
    %6 = tpu.matmul %4, %5, %cst {dimension_numbers = #tpu.dot_dimension_numbers<[1], [0], [0], [1], [0, 0, 1, 1], [], []>} : vector<96x32xbf16>, vector<32x32xbf16>, vector<96x32xf32> -> vector<96x32xf32>
    %c0_5 = arith.constant 0 : index
    %c0_6 = arith.constant 0 : index
    %7 = vector.load %arg10[%c0_5, %c0_6] : memref<1x32xf32, #tpu.memory_space<vmem>>, vector<1x32xf32>
    %8 = vector.broadcast %7 : vector<1x32xf32> to vector<96x32xf32>
    %9 = arith.addf %6, %8 : vector<96x32xf32>
    %c0_7 = arith.constant 0 : index
    %c0_8 = arith.constant 0 : index
    %c0_9 = arith.constant 0 : index
    %10 = vector.load %arg5[%c0_7, %c0_8, %c0_9] : memref<1x96x4xf32, #tpu.memory_space<vmem>>, vector<1x96x4xf32>
    %11 = vector.shape_cast %10 : vector<1x96x4xf32> to vector<96x4xf32>
    %c0_10 = arith.constant 0 : index
    %c0_11 = arith.constant 0 : index
    %12 = vector.load %arg17[%c0_10, %c0_11] : memref<4x64xf32, #tpu.memory_space<vmem>>, vector<4x64xf32>
    %cst_12 = arith.constant dense<0.000000e+00> : vector<96x64xf32>
    %13 = tpu.matmul %11, %12, %cst_12 {dimension_numbers = #tpu.dot_dimension_numbers<[1], [0], [0], [1], [0, 0, 1, 1], [], []>} : vector<96x4xf32>, vector<4x64xf32>, vector<96x64xf32> -> vector<96x64xf32>
    %c0_13 = arith.constant 0 : index
    %c0_14 = arith.constant 0 : index
    %c0_15 = arith.constant 0 : index
    %14 = vector.load %arg6[%c0_13, %c0_14, %c0_15] : memref<1x96x4xf32, #tpu.memory_space<vmem>>, vector<1x96x4xf32>
    %15 = vector.shape_cast %14 : vector<1x96x4xf32> to vector<96x4xf32>
    %c0_16 = arith.constant 0 : index
    %c0_17 = arith.constant 0 : index
    %16 = vector.load %arg17[%c0_16, %c0_17] : memref<4x64xf32, #tpu.memory_space<vmem>>, vector<4x64xf32>
    %cst_18 = arith.constant dense<0.000000e+00> : vector<96x64xf32>
    %17 = tpu.matmul %15, %16, %cst_18 {dimension_numbers = #tpu.dot_dimension_numbers<[1], [0], [0], [1], [0, 0, 1, 1], [], []>} : vector<96x4xf32>, vector<4x64xf32>, vector<96x64xf32> -> vector<96x64xf32>
    %18 = vector.extract_strided_slice %9 {offsets = [0, 0], sizes = [96, 16], strides = [1, 1]} : vector<96x32xf32> to vector<96x16xf32>
    %19 = vector.extract_strided_slice %18 {offsets = [0, 0], sizes = [96, 4], strides = [1, 1]} : vector<96x16xf32> to vector<96x4xf32>
    %20 = vector.extract_strided_slice %18 {offsets = [0, 4], sizes = [96, 4], strides = [1, 1]} : vector<96x16xf32> to vector<96x4xf32>
    %21 = vector.extract_strided_slice %18 {offsets = [0, 8], sizes = [96, 4], strides = [1, 1]} : vector<96x16xf32> to vector<96x4xf32>
    %22 = vector.extract_strided_slice %18 {offsets = [0, 12], sizes = [96, 4], strides = [1, 1]} : vector<96x16xf32> to vector<96x4xf32>
    %cst_19 = arith.constant 0.000000e+00 : f32
    %23 = vector.broadcast %cst_19 : f32 to vector<96x4xf32>
    %24 = arith.subf %23, %20 : vector<96x4xf32>
    %cst_20 = arith.constant 0.000000e+00 : f32
    %25 = vector.broadcast %cst_20 : f32 to vector<96x4xf32>
    %26 = arith.subf %25, %21 : vector<96x4xf32>
    %27 = tpu.concatenate %24, %19, %22, %26 in 1 : vector<96x4xf32>, vector<96x4xf32>, vector<96x4xf32>, vector<96x4xf32> -> vector<96x16xf32>
    %28 = vector.extract_strided_slice %13 {offsets = [0, 0], sizes = [96, 32], strides = [1, 1]} : vector<96x64xf32> to vector<96x32xf32>
    %29 = vector.extract_strided_slice %17 {offsets = [0, 0], sizes = [96, 32], strides = [1, 1]} : vector<96x64xf32> to vector<96x32xf32>
    %30 = tpu.concatenate %18, %18 in 1 : vector<96x16xf32>, vector<96x16xf32> -> vector<96x32xf32>
    %31 = tpu.concatenate %27, %27 in 1 : vector<96x16xf32>, vector<96x16xf32> -> vector<96x32xf32>
    %32 = arith.mulf %30, %28 : vector<96x32xf32>
    %33 = arith.mulf %31, %29 : vector<96x32xf32>
    %34 = arith.addf %32, %33 : vector<96x32xf32>
    %35 = arith.truncf %34 : vector<96x32xf32> to vector<96x32xbf16>
    %c0_21 = arith.constant 0 : index
    %c0_22 = arith.constant 0 : index
    %36 = vector.load %arg19[%c0_21, %c0_22] : memref<16x64xbf16, #tpu.memory_space<vmem>>, vector<16x32xbf16>
    %cst_23 = arith.constant dense<0.000000e+00> : vector<96x16xf32>
    %37 = tpu.matmul %35, %36, %cst_23 {dimension_numbers = #tpu.dot_dimension_numbers<[1], [1], [0], [0], [0, 0, 1, 0], [], []>} : vector<96x32xbf16>, vector<16x32xbf16>, vector<96x16xf32> -> vector<96x16xf32>
    %cst_24 = arith.constant 1.250000e-01 : f32
    %38 = vector.broadcast %cst_24 : f32 to vector<96x16xf32>
    %39 = arith.mulf %37, %38 : vector<96x16xf32>
    %cst_25 = arith.constant dense<0xFF800000> : vector<96xf32>
    %40 = vector.multi_reduction <maximumf>, %39, %cst_25 [1] : vector<96x16xf32> to vector<96xf32>
    %41 = vector.shape_cast %40 : vector<96xf32> to vector<96x1xf32>
    %42 = vector.broadcast %41 : vector<96x1xf32> to vector<96x16xf32>
    %43 = arith.subf %39, %42 : vector<96x16xf32>
    %44 = math.exp %43 : vector<96x16xf32>
    %cst_26 = arith.constant dense<0.000000e+00> : vector<96xf32>
    %45 = vector.multi_reduction <add>, %44, %cst_26 [1] : vector<96x16xf32> to vector<96xf32>
    %46 = vector.shape_cast %45 : vector<96xf32> to vector<96x1xf32>
    %47 = arith.truncf %44 : vector<96x16xf32> to vector<96x16xbf16>
    %48 = tpu.reciprocal %46 {approx = true} : vector<96x1xf32> -> vector<96x1xf32>
    %c0_27 = arith.constant 0 : index
    %c0_28 = arith.constant 0 : index
    %49 = vector.load %arg20[%c0_27, %c0_28] : memref<16x32xbf16, #tpu.memory_space<vmem>>, vector<16x16xbf16>
    %cst_29 = arith.constant dense<0.000000e+00> : vector<96x16xf32>
    %50 = tpu.matmul %47, %49, %cst_29 {dimension_numbers = #tpu.dot_dimension_numbers<[1], [0], [0], [1], [0, 0, 1, 1], [], []>} : vector<96x16xbf16>, vector<16x16xbf16>, vector<96x16xf32> -> vector<96x16xf32>
    %51 = vector.broadcast %48 : vector<96x1xf32> to vector<96x16xf32>
    %52 = arith.mulf %50, %51 : vector<96x16xf32>
    %53 = arith.truncf %52 : vector<96x16xf32> to vector<96x16xbf16>
    %c0_30 = arith.constant 0 : index
    %c0_31 = arith.constant 0 : index
    %54 = vector.load %arg21[%c0_30, %c0_31] : memref<96x32xbf16, #tpu.memory_space<vmem>>, vector<96x16xbf16>
    tpu.vector_store %arg21[%c0_30, %c0_31], %53 {strides = array<i32>} : memref<96x32xbf16, #tpu.memory_space<vmem>>, vector<96x16xbf16>,
    %55 = vector.extract_strided_slice %9 {offsets = [0, 16], sizes = [96, 16], strides = [1, 1]} : vector<96x32xf32> to vector<96x16xf32>
    %56 = vector.extract_strided_slice %55 {offsets = [0, 0], sizes = [96, 4], strides = [1, 1]} : vector<96x16xf32> to vector<96x4xf32>
    %57 = vector.extract_strided_slice %55 {offsets = [0, 4], sizes = [96, 4], strides = [1, 1]} : vector<96x16xf32> to vector<96x4xf32>
    %58 = vector.extract_strided_slice %55 {offsets = [0, 8], sizes = [96, 4], strides = [1, 1]} : vector<96x16xf32> to vector<96x4xf32>
    %59 = vector.extract_strided_slice %55 {offsets = [0, 12], sizes = [96, 4], strides = [1, 1]} : vector<96x16xf32> to vector<96x4xf32>
    %cst_32 = arith.constant 0.000000e+00 : f32
    %60 = vector.broadcast %cst_32 : f32 to vector<96x4xf32>
    %61 = arith.subf %60, %57 : vector<96x4xf32>
    %cst_33 = arith.constant 0.000000e+00 : f32
    %62 = vector.broadcast %cst_33 : f32 to vector<96x4xf32>
    %63 = arith.subf %62, %58 : vector<96x4xf32>
    %64 = tpu.concatenate %61, %56, %59, %63 in 1 : vector<96x4xf32>, vector<96x4xf32>, vector<96x4xf32>, vector<96x4xf32> -> vector<96x16xf32>
    %65 = vector.extract_strided_slice %13 {offsets = [0, 32], sizes = [96, 32], strides = [1, 1]} : vector<96x64xf32> to vector<96x32xf32>
    %66 = vector.extract_strided_slice %17 {offsets = [0, 32], sizes = [96, 32], strides = [1, 1]} : vector<96x64xf32> to vector<96x32xf32>
    %67 = tpu.concatenate %55, %55 in 1 : vector<96x16xf32>, vector<96x16xf32> -> vector<96x32xf32>
    %68 = tpu.concatenate %64, %64 in 1 : vector<96x16xf32>, vector<96x16xf32> -> vector<96x32xf32>
    %69 = arith.mulf %67, %65 : vector<96x32xf32>
    %70 = arith.mulf %68, %66 : vector<96x32xf32>
    %71 = arith.addf %69, %70 : vector<96x32xf32>
    %72 = arith.truncf %71 : vector<96x32xf32> to vector<96x32xbf16>
    %c0_34 = arith.constant 0 : index
    %c32 = arith.constant 32 : index
    %73 = vector.load %arg19[%c0_34, %c32] : memref<16x64xbf16, #tpu.memory_space<vmem>>, vector<16x32xbf16>
    %cst_35 = arith.constant dense<0.000000e+00> : vector<96x16xf32>
    %74 = tpu.matmul %72, %73, %cst_35 {dimension_numbers = #tpu.dot_dimension_numbers<[1], [1], [0], [0], [0, 0, 1, 0], [], []>} : vector<96x32xbf16>, vector<16x32xbf16>, vector<96x16xf32> -> vector<96x16xf32>
    %cst_36 = arith.constant 1.250000e-01 : f32
    %75 = vector.broadcast %cst_36 : f32 to vector<96x16xf32>
    %76 = arith.mulf %74, %75 : vector<96x16xf32>
    %cst_37 = arith.constant dense<0xFF800000> : vector<96xf32>
    %77 = vector.multi_reduction <maximumf>, %76, %cst_37 [1] : vector<96x16xf32> to vector<96xf32>
    %78 = vector.shape_cast %77 : vector<96xf32> to vector<96x1xf32>
    %79 = vector.broadcast %78 : vector<96x1xf32> to vector<96x16xf32>
    %80 = arith.subf %76, %79 : vector<96x16xf32>
    %81 = math.exp %80 : vector<96x16xf32>
    %cst_38 = arith.constant dense<0.000000e+00> : vector<96xf32>
    %82 = vector.multi_reduction <add>, %81, %cst_38 [1] : vector<96x16xf32> to vector<96xf32>
    %83 = vector.shape_cast %82 : vector<96xf32> to vector<96x1xf32>
    %84 = arith.truncf %81 : vector<96x16xf32> to vector<96x16xbf16>
    %85 = tpu.reciprocal %83 {approx = true} : vector<96x1xf32> -> vector<96x1xf32>
    %c0_39 = arith.constant 0 : index
    %c16 = arith.constant 16 : index
    %86 = vector.load %arg20[%c0_39, %c16] : memref<16x32xbf16, #tpu.memory_space<vmem>>, vector<16x16xbf16>
    %cst_40 = arith.constant dense<0.000000e+00> : vector<96x16xf32>
    %87 = tpu.matmul %84, %86, %cst_40 {dimension_numbers = #tpu.dot_dimension_numbers<[1], [0], [0], [1], [0, 0, 1, 1], [], []>} : vector<96x16xbf16>, vector<16x16xbf16>, vector<96x16xf32> -> vector<96x16xf32>
    %88 = vector.broadcast %85 : vector<96x1xf32> to vector<96x16xf32>
    %89 = arith.mulf %87, %88 : vector<96x16xf32>
    %90 = arith.truncf %89 : vector<96x16xf32> to vector<96x16xbf16>
    %c0_41 = arith.constant 0 : index
    %c16_42 = arith.constant 16 : index
    %91 = vector.load %arg21[%c0_41, %c16_42] : memref<96x32xbf16, #tpu.memory_space<vmem>>, vector<96x16xbf16>
    tpu.vector_store %arg21[%c0_41, %c16_42], %90 {strides = array<i32>} : memref<96x32xbf16, #tpu.memory_space<vmem>>, vector<96x16xbf16>,
    %c0_43 = arith.constant 0 : index
    %c0_44 = arith.constant 0 : index
    %92 = vector.load %arg21[%c0_43, %c0_44] : memref<96x32xbf16, #tpu.memory_space<vmem>>, vector<96x32xbf16>
    %c0_45 = arith.constant 0 : index
    %c0_46 = arith.constant 0 : index
    %93 = vector.load %arg15[%c0_45, %c0_46] : memref<32x32xbf16, #tpu.memory_space<vmem>>, vector<32x32xbf16>
    %cst_47 = arith.constant dense<0.000000e+00> : vector<96x32xf32>
    %94 = tpu.matmul %92, %93, %cst_47 {dimension_numbers = #tpu.dot_dimension_numbers<[1], [0], [0], [1], [0, 0, 1, 1], [], []>} : vector<96x32xbf16>, vector<32x32xbf16>, vector<96x32xf32> -> vector<96x32xf32>
    %c0_48 = arith.constant 0 : index
    %c0_49 = arith.constant 0 : index
    %95 = vector.load %arg16[%c0_48, %c0_49] : memref<1x32xf32, #tpu.memory_space<vmem>>, vector<1x32xf32>
    %96 = vector.broadcast %95 : vector<1x32xf32> to vector<96x32xf32>
    %97 = arith.addf %94, %96 : vector<96x32xf32>
    %c0_50 = arith.constant 0 : index
    %c0_51 = arith.constant 0 : index
    %c0_52 = arith.constant 0 : index
    %98 = vector.load %arg18[%c0_50, %c0_51, %c0_52] : memref<1x96x32xf32, #tpu.memory_space<vmem>>, vector<1x96x32xf32>
    %99 = vector.shape_cast %98 : vector<1x96x32xf32> to vector<96x32xf32>
    %100 = vector.shape_cast %97 : vector<96x32xf32> to vector<1x96x32xf32>
    tpu.vector_store %arg18[%c0_50, %c0_51, %c0_52], %100 {strides = array<i32>} : memref<1x96x32xf32, #tpu.memory_space<vmem>>, vector<1x96x32xf32>,
    return
  }
  func.func @transform_0(%arg0: i32, %arg1: i32) -> (i32, i32, i32) {
    %c0_i32 = arith.constant 0 : i32
    %c0_i32_0 = arith.constant 0 : i32
    %c0_i32_1 = arith.constant 0 : i32
    return %c0_i32, %arg1, %c0_i32_0 : i32, i32, i32
  }
  func.func @transform_1(%arg0: i32, %arg1: i32) -> (i32, i32, i32) {
    %c0_i32 = arith.constant 0 : i32
    %c0_i32_0 = arith.constant 0 : i32
    %c0_i32_1 = arith.constant 0 : i32
    return %arg0, %c0_i32, %c0_i32_0 : i32, i32, i32
  }
  func.func @transform_2(%arg0: i32, %arg1: i32) -> (i32, i32, i32) {
    %c0_i32 = arith.constant 0 : i32
    %c0_i32_0 = arith.constant 0 : i32
    %c0_i32_1 = arith.constant 0 : i32
    return %arg0, %c0_i32, %c0_i32_0 : i32, i32, i32
  }
  func.func @transform_3(%arg0: i32, %arg1: i32) -> (i32, i32, i32) {
    %c0_i32 = arith.constant 0 : i32
    %c0_i32_0 = arith.constant 0 : i32
    %c0_i32_1 = arith.constant 0 : i32
    return %c0_i32, %arg1, %c0_i32_0 : i32, i32, i32
  }
  func.func @transform_4(%arg0: i32, %arg1: i32) -> (i32, i32, i32) {
    %c0_i32 = arith.constant 0 : i32
    %c0_i32_0 = arith.constant 0 : i32
    %c0_i32_1 = arith.constant 0 : i32
    return %c0_i32, %arg1, %c0_i32_0 : i32, i32, i32
  }
  func.func @transform_5(%arg0: i32, %arg1: i32) -> (i32, i32, i32) {
    %c0_i32 = arith.constant 0 : i32
    %c0_i32_0 = arith.constant 0 : i32
    %c0_i32_1 = arith.constant 0 : i32
    return %arg0, %c0_i32, %c0_i32_0 : i32, i32, i32
  }
  func.func @transform_6(%arg0: i32, %arg1: i32) -> (i32, i32, i32) {
    %c0_i32 = arith.constant 0 : i32
    %c0_i32_0 = arith.constant 0 : i32
    %c0_i32_1 = arith.constant 0 : i32
    return %arg0, %c0_i32, %c0_i32_0 : i32, i32, i32
  }
  func.func @transform_7(%arg0: i32, %arg1: i32) -> (i32, i32) {
    %c0_i32 = arith.constant 0 : i32
    %c0_i32_0 = arith.constant 0 : i32
    %c0_i32_1 = arith.constant 0 : i32
    return %c0_i32, %c0_i32_0 : i32, i32
  }
  func.func @transform_8(%arg0: i32, %arg1: i32) -> (i32, i32) {
    %c0_i32 = arith.constant 0 : i32
    %c0_i32_0 = arith.constant 0 : i32
    %c0_i32_1 = arith.constant 0 : i32
    return %c0_i32, %c0_i32_0 : i32, i32
  }
  func.func @transform_9(%arg0: i32, %arg1: i32) -> (i32, i32) {
    %c0_i32 = arith.constant 0 : i32
    %c0_i32_0 = arith.constant 0 : i32
    %c0_i32_1 = arith.constant 0 : i32
    return %c0_i32, %c0_i32_0 : i32, i32
  }
  func.func @transform_10(%arg0: i32, %arg1: i32) -> (i32, i32) {
    %c0_i32 = arith.constant 0 : i32
    %c0_i32_0 = arith.constant 0 : i32
    %c0_i32_1 = arith.constant 0 : i32
    return %c0_i32, %c0_i32_0 : i32, i32
  }
  func.func @transform_11(%arg0: i32, %arg1: i32) -> (i32, i32) {
    %c0_i32 = arith.constant 0 : i32
    %c0_i32_0 = arith.constant 0 : i32
    %c0_i32_1 = arith.constant 0 : i32
    return %c0_i32, %c0_i32_0 : i32, i32
  }
  func.func @transform_12(%arg0: i32, %arg1: i32) -> (i32, i32) {
    %c0_i32 = arith.constant 0 : i32
    %c0_i32_0 = arith.constant 0 : i32
    %c0_i32_1 = arith.constant 0 : i32
    return %c0_i32, %c0_i32_0 : i32, i32
  }
  func.func @transform_13(%arg0: i32, %arg1: i32) -> (i32, i32) {
    %c0_i32 = arith.constant 0 : i32
    %c0_i32_0 = arith.constant 0 : i32
    %c0_i32_1 = arith.constant 0 : i32
    return %c0_i32, %c0_i32_0 : i32, i32
  }
  func.func @transform_14(%arg0: i32, %arg1: i32) -> (i32, i32) {
    %c0_i32 = arith.constant 0 : i32
    %c0_i32_0 = arith.constant 0 : i32
    %c0_i32_1 = arith.constant 0 : i32
    return %c0_i32, %c0_i32_0 : i32, i32
  }
  func.func @transform_15(%arg0: i32, %arg1: i32) -> (i32, i32) {
    %c0_i32 = arith.constant 0 : i32
    %c0_i32_0 = arith.constant 0 : i32
    %c0_i32_1 = arith.constant 0 : i32
    return %c0_i32, %c0_i32_0 : i32, i32
  }
  func.func @transform_16(%arg0: i32, %arg1: i32) -> (i32, i32, i32) {
    %c0_i32 = arith.constant 0 : i32
    %c0_i32_0 = arith.constant 0 : i32
    return %arg0, %arg1, %c0_i32 : i32, i32, i32
  }
}

module attributes {stable_mosaic.version = 11 : i64} {
  func.func @_lra_kernel(%arg0: i32, %arg1: i32, %arg2: memref<1x16x32xbf16, #tpu.memory_space<vmem>>, %arg3: memref<1x96x32xbf16, #tpu.memory_space<vmem>>, %arg4: memref<1x96x32xbf16, #tpu.memory_space<vmem>>, %arg5: memref<1x16x4xf32, #tpu.memory_space<vmem>>, %arg6: memref<1x16x4xf32, #tpu.memory_space<vmem>>, %arg7: memref<1x96x4xf32, #tpu.memory_space<vmem>>, %arg8: memref<1x96x4xf32, #tpu.memory_space<vmem>>, %arg9: memref<32x32xbf16, #tpu.memory_space<vmem>>, %arg10: memref<1x32xf32, #tpu.memory_space<vmem>>, %arg11: memref<32x32xbf16, #tpu.memory_space<vmem>>, %arg12: memref<1x32xf32, #tpu.memory_space<vmem>>, %arg13: memref<32x32xbf16, #tpu.memory_space<vmem>>, %arg14: memref<1x32xf32, #tpu.memory_space<vmem>>, %arg15: memref<32x32xbf16, #tpu.memory_space<vmem>>, %arg16: memref<1x32xf32, #tpu.memory_space<vmem>>, %arg17: memref<4x64xf32, #tpu.memory_space<vmem>>, %arg18: memref<1x16x32xf32, #tpu.memory_space<vmem>>, %arg19: memref<96x64xbf16, #tpu.memory_space<vmem>>, %arg20: memref<96x32xbf16, #tpu.memory_space<vmem>>, %arg21: memref<16x32xbf16, #tpu.memory_space<vmem>>) attributes {dimension_semantics = [#tpu.dimension_semantics<parallel>, #tpu.dimension_semantics<arbitrary>], iteration_bounds = array<i64: 2, 1>, scalar_prefetch = 0 : i64, scratch_operands = 3 : i64, tpu.core_type = #tpu.core_type<tc>, window_params = [{transform_indices = @transform_0, window_bounds = array<i64: 1, 16, 32>}, {transform_indices = @transform_1, window_bounds = array<i64: 1, 96, 32>}, {transform_indices = @transform_2, window_bounds = array<i64: 1, 96, 32>}, {transform_indices = @transform_3, window_bounds = array<i64: 1, 16, 4>}, {transform_indices = @transform_4, window_bounds = array<i64: 1, 16, 4>}, {transform_indices = @transform_5, window_bounds = array<i64: 1, 96, 4>}, {transform_indices = @transform_6, window_bounds = array<i64: 1, 96, 4>}, {pipeline_mode = #tpu.pipeline_mode<synchronous>, transform_indices = @transform_7, window_bounds = array<i64: 32, 32>}, {pipeline_mode = #tpu.pipeline_mode<synchronous>, transform_indices = @transform_8, window_bounds = array<i64: 1, 32>}, {pipeline_mode = #tpu.pipeline_mode<synchronous>, transform_indices = @transform_9, window_bounds = array<i64: 32, 32>}, {pipeline_mode = #tpu.pipeline_mode<synchronous>, transform_indices = @transform_10, window_bounds = array<i64: 1, 32>}, {pipeline_mode = #tpu.pipeline_mode<synchronous>, transform_indices = @transform_11, window_bounds = array<i64: 32, 32>}, {pipeline_mode = #tpu.pipeline_mode<synchronous>, transform_indices = @transform_12, window_bounds = array<i64: 1, 32>}, {pipeline_mode = #tpu.pipeline_mode<synchronous>, transform_indices = @transform_13, window_bounds = array<i64: 32, 32>}, {pipeline_mode = #tpu.pipeline_mode<synchronous>, transform_indices = @transform_14, window_bounds = array<i64: 1, 32>}, {pipeline_mode = #tpu.pipeline_mode<synchronous>, transform_indices = @transform_15, window_bounds = array<i64: 4, 64>}, {transform_indices = @transform_16, window_bounds = array<i64: 1, 16, 32>}]} {
    %c0_i32 = arith.constant 0 : i32
    %0 = arith.cmpi eq, %arg1, %c0_i32 : i32
    %1 = arith.extui %0 : i1 to i32
    %c0_i32_0 = arith.constant 0 : i32
    %2 = arith.cmpi ne, %1, %c0_i32_0 : i32
    scf.if %2 {
      %c0_53 = arith.constant 0 : index
      %c0_54 = arith.constant 0 : index
      %c0_55 = arith.constant 0 : index
      %101 = vector.load %arg3[%c0_53, %c0_54, %c0_55] : memref<1x96x32xbf16, #tpu.memory_space<vmem>>, vector<1x96x32xbf16>
      %102 = vector.shape_cast %101 : vector<1x96x32xbf16> to vector<96x32xbf16>
      %c0_56 = arith.constant 0 : index
      %c0_57 = arith.constant 0 : index
      %103 = vector.load %arg11[%c0_56, %c0_57] : memref<32x32xbf16, #tpu.memory_space<vmem>>, vector<32x32xbf16>
      %cst_58 = arith.constant dense<0.000000e+00> : vector<96x32xf32>
      %104 = tpu.matmul %102, %103, %cst_58 {dimension_numbers = #tpu.dot_dimension_numbers<[1], [0], [0], [1], [0, 0, 1, 1], [], []>} : vector<96x32xbf16>, vector<32x32xbf16>, vector<96x32xf32> -> vector<96x32xf32>
      %c0_59 = arith.constant 0 : index
      %c0_60 = arith.constant 0 : index
      %105 = vector.load %arg12[%c0_59, %c0_60] : memref<1x32xf32, #tpu.memory_space<vmem>>, vector<1x32xf32>
      %106 = vector.broadcast %105 : vector<1x32xf32> to vector<96x32xf32>
      %107 = arith.addf %104, %106 : vector<96x32xf32>
      %c0_61 = arith.constant 0 : index
      %c0_62 = arith.constant 0 : index
      %c0_63 = arith.constant 0 : index
      %108 = vector.load %arg4[%c0_61, %c0_62, %c0_63] : memref<1x96x32xbf16, #tpu.memory_space<vmem>>, vector<1x96x32xbf16>
      %109 = vector.shape_cast %108 : vector<1x96x32xbf16> to vector<96x32xbf16>
      %c0_64 = arith.constant 0 : index
      %c0_65 = arith.constant 0 : index
      %110 = vector.load %arg13[%c0_64, %c0_65] : memref<32x32xbf16, #tpu.memory_space<vmem>>, vector<32x32xbf16>
      %cst_66 = arith.constant dense<0.000000e+00> : vector<96x32xf32>
      %111 = tpu.matmul %109, %110, %cst_66 {dimension_numbers = #tpu.dot_dimension_numbers<[1], [0], [0], [1], [0, 0, 1, 1], [], []>} : vector<96x32xbf16>, vector<32x32xbf16>, vector<96x32xf32> -> vector<96x32xf32>
      %c0_67 = arith.constant 0 : index
      %c0_68 = arith.constant 0 : index
      %112 = vector.load %arg14[%c0_67, %c0_68] : memref<1x32xf32, #tpu.memory_space<vmem>>, vector<1x32xf32>
      %113 = vector.broadcast %112 : vector<1x32xf32> to vector<96x32xf32>
      %114 = arith.addf %111, %113 : vector<96x32xf32>
      %115 = arith.truncf %114 : vector<96x32xf32> to vector<96x32xbf16>
      %c0_69 = arith.constant 0 : index
      %c0_70 = arith.constant 0 : index
      %116 = vector.load %arg20[%c0_69, %c0_70] : memref<96x32xbf16, #tpu.memory_space<vmem>>, vector<96x32xbf16>
      tpu.vector_store %arg20[%c0_69, %c0_70], %115 {strides = array<i32>} : memref<96x32xbf16, #tpu.memory_space<vmem>>, vector<96x32xbf16>,
      %c0_71 = arith.constant 0 : index
      %c0_72 = arith.constant 0 : index
      %c0_73 = arith.constant 0 : index
      %117 = vector.load %arg7[%c0_71, %c0_72, %c0_73] : memref<1x96x4xf32, #tpu.memory_space<vmem>>, vector<1x96x4xf32>
      %118 = vector.shape_cast %117 : vector<1x96x4xf32> to vector<96x4xf32>
      %c0_74 = arith.constant 0 : index
      %c0_75 = arith.constant 0 : index
      %119 = vector.load %arg17[%c0_74, %c0_75] : memref<4x64xf32, #tpu.memory_space<vmem>>, vector<4x64xf32>
      %cst_76 = arith.constant dense<0.000000e+00> : vector<96x64xf32>
      %120 = tpu.matmul %118, %119, %cst_76 {dimension_numbers = #tpu.dot_dimension_numbers<[1], [0], [0], [1], [0, 0, 1, 1], [], []>} : vector<96x4xf32>, vector<4x64xf32>, vector<96x64xf32> -> vector<96x64xf32>
      %c0_77 = arith.constant 0 : index
      %c0_78 = arith.constant 0 : index
      %c0_79 = arith.constant 0 : index
      %121 = vector.load %arg8[%c0_77, %c0_78, %c0_79] : memref<1x96x4xf32, #tpu.memory_space<vmem>>, vector<1x96x4xf32>
      %122 = vector.shape_cast %121 : vector<1x96x4xf32> to vector<96x4xf32>
      %c0_80 = arith.constant 0 : index
      %c0_81 = arith.constant 0 : index
      %123 = vector.load %arg17[%c0_80, %c0_81] : memref<4x64xf32, #tpu.memory_space<vmem>>, vector<4x64xf32>
      %cst_82 = arith.constant dense<0.000000e+00> : vector<96x64xf32>
      %124 = tpu.matmul %122, %123, %cst_82 {dimension_numbers = #tpu.dot_dimension_numbers<[1], [0], [0], [1], [0, 0, 1, 1], [], []>} : vector<96x4xf32>, vector<4x64xf32>, vector<96x64xf32> -> vector<96x64xf32>
      %125 = vector.extract_strided_slice %107 {offsets = [0, 0], sizes = [96, 16], strides = [1, 1]} : vector<96x32xf32> to vector<96x16xf32>
      %126 = vector.extract_strided_slice %125 {offsets = [0, 0], sizes = [96, 4], strides = [1, 1]} : vector<96x16xf32> to vector<96x4xf32>
      %127 = vector.extract_strided_slice %125 {offsets = [0, 4], sizes = [96, 4], strides = [1, 1]} : vector<96x16xf32> to vector<96x4xf32>
      %128 = vector.extract_strided_slice %125 {offsets = [0, 8], sizes = [96, 4], strides = [1, 1]} : vector<96x16xf32> to vector<96x4xf32>
      %129 = vector.extract_strided_slice %125 {offsets = [0, 12], sizes = [96, 4], strides = [1, 1]} : vector<96x16xf32> to vector<96x4xf32>
      %cst_83 = arith.constant 0.000000e+00 : f32
      %130 = vector.broadcast %cst_83 : f32 to vector<96x4xf32>
      %131 = arith.subf %130, %128 : vector<96x4xf32>
      %cst_84 = arith.constant 0.000000e+00 : f32
      %132 = vector.broadcast %cst_84 : f32 to vector<96x4xf32>
      %133 = arith.subf %132, %129 : vector<96x4xf32>
      %134 = tpu.concatenate %131, %133, %126, %127 in 1 : vector<96x4xf32>, vector<96x4xf32>, vector<96x4xf32>, vector<96x4xf32> -> vector<96x16xf32>
      %135 = vector.extract_strided_slice %120 {offsets = [0, 0], sizes = [96, 32], strides = [1, 1]} : vector<96x64xf32> to vector<96x32xf32>
      %136 = vector.extract_strided_slice %124 {offsets = [0, 0], sizes = [96, 32], strides = [1, 1]} : vector<96x64xf32> to vector<96x32xf32>
      %137 = tpu.concatenate %125, %125 in 1 : vector<96x16xf32>, vector<96x16xf32> -> vector<96x32xf32>
      %138 = tpu.concatenate %134, %134 in 1 : vector<96x16xf32>, vector<96x16xf32> -> vector<96x32xf32>
      %139 = arith.mulf %137, %135 : vector<96x32xf32>
      %140 = arith.mulf %138, %136 : vector<96x32xf32>
      %141 = arith.addf %139, %140 : vector<96x32xf32>
      %142 = arith.truncf %141 : vector<96x32xf32> to vector<96x32xbf16>
      %c0_85 = arith.constant 0 : index
      %c0_86 = arith.constant 0 : index
      %143 = vector.load %arg19[%c0_85, %c0_86] : memref<96x64xbf16, #tpu.memory_space<vmem>>, vector<96x32xbf16>
      tpu.vector_store %arg19[%c0_85, %c0_86], %142 {strides = array<i32>} : memref<96x64xbf16, #tpu.memory_space<vmem>>, vector<96x32xbf16>,
      %144 = vector.extract_strided_slice %107 {offsets = [0, 16], sizes = [96, 16], strides = [1, 1]} : vector<96x32xf32> to vector<96x16xf32>
      %145 = vector.extract_strided_slice %144 {offsets = [0, 0], sizes = [96, 4], strides = [1, 1]} : vector<96x16xf32> to vector<96x4xf32>
      %146 = vector.extract_strided_slice %144 {offsets = [0, 4], sizes = [96, 4], strides = [1, 1]} : vector<96x16xf32> to vector<96x4xf32>
      %147 = vector.extract_strided_slice %144 {offsets = [0, 8], sizes = [96, 4], strides = [1, 1]} : vector<96x16xf32> to vector<96x4xf32>
      %148 = vector.extract_strided_slice %144 {offsets = [0, 12], sizes = [96, 4], strides = [1, 1]} : vector<96x16xf32> to vector<96x4xf32>
      %cst_87 = arith.constant 0.000000e+00 : f32
      %149 = vector.broadcast %cst_87 : f32 to vector<96x4xf32>
      %150 = arith.subf %149, %147 : vector<96x4xf32>
      %cst_88 = arith.constant 0.000000e+00 : f32
      %151 = vector.broadcast %cst_88 : f32 to vector<96x4xf32>
      %152 = arith.subf %151, %148 : vector<96x4xf32>
      %153 = tpu.concatenate %150, %152, %145, %146 in 1 : vector<96x4xf32>, vector<96x4xf32>, vector<96x4xf32>, vector<96x4xf32> -> vector<96x16xf32>
      %154 = vector.extract_strided_slice %120 {offsets = [0, 32], sizes = [96, 32], strides = [1, 1]} : vector<96x64xf32> to vector<96x32xf32>
      %155 = vector.extract_strided_slice %124 {offsets = [0, 32], sizes = [96, 32], strides = [1, 1]} : vector<96x64xf32> to vector<96x32xf32>
      %156 = tpu.concatenate %144, %144 in 1 : vector<96x16xf32>, vector<96x16xf32> -> vector<96x32xf32>
      %157 = tpu.concatenate %153, %153 in 1 : vector<96x16xf32>, vector<96x16xf32> -> vector<96x32xf32>
      %158 = arith.mulf %156, %154 : vector<96x32xf32>
      %159 = arith.mulf %157, %155 : vector<96x32xf32>
      %160 = arith.addf %158, %159 : vector<96x32xf32>
      %161 = arith.truncf %160 : vector<96x32xf32> to vector<96x32xbf16>
      %c0_89 = arith.constant 0 : index
      %c32_90 = arith.constant 32 : index
      %162 = vector.load %arg19[%c0_89, %c32_90] : memref<96x64xbf16, #tpu.memory_space<vmem>>, vector<96x32xbf16>
      tpu.vector_store %arg19[%c0_89, %c32_90], %161 {strides = array<i32>} : memref<96x64xbf16, #tpu.memory_space<vmem>>, vector<96x32xbf16>,
    } else {
    }
    %c0 = arith.constant 0 : index
    %c0_1 = arith.constant 0 : index
    %c0_2 = arith.constant 0 : index
    %3 = vector.load %arg2[%c0, %c0_1, %c0_2] : memref<1x16x32xbf16, #tpu.memory_space<vmem>>, vector<1x16x32xbf16>
    %4 = vector.shape_cast %3 : vector<1x16x32xbf16> to vector<16x32xbf16>
    %c0_3 = arith.constant 0 : index
    %c0_4 = arith.constant 0 : index
    %5 = vector.load %arg9[%c0_3, %c0_4] : memref<32x32xbf16, #tpu.memory_space<vmem>>, vector<32x32xbf16>
    %cst = arith.constant dense<0.000000e+00> : vector<16x32xf32>
    %6 = tpu.matmul %4, %5, %cst {dimension_numbers = #tpu.dot_dimension_numbers<[1], [0], [0], [1], [0, 0, 1, 1], [], []>} : vector<16x32xbf16>, vector<32x32xbf16>, vector<16x32xf32> -> vector<16x32xf32>
    %c0_5 = arith.constant 0 : index
    %c0_6 = arith.constant 0 : index
    %7 = vector.load %arg10[%c0_5, %c0_6] : memref<1x32xf32, #tpu.memory_space<vmem>>, vector<1x32xf32>
    %8 = vector.broadcast %7 : vector<1x32xf32> to vector<16x32xf32>
    %9 = arith.addf %6, %8 : vector<16x32xf32>
    %c0_7 = arith.constant 0 : index
    %c0_8 = arith.constant 0 : index
    %c0_9 = arith.constant 0 : index
    %10 = vector.load %arg5[%c0_7, %c0_8, %c0_9] : memref<1x16x4xf32, #tpu.memory_space<vmem>>, vector<1x16x4xf32>
    %11 = vector.shape_cast %10 : vector<1x16x4xf32> to vector<16x4xf32>
    %c0_10 = arith.constant 0 : index
    %c0_11 = arith.constant 0 : index
    %12 = vector.load %arg17[%c0_10, %c0_11] : memref<4x64xf32, #tpu.memory_space<vmem>>, vector<4x64xf32>
    %cst_12 = arith.constant dense<0.000000e+00> : vector<16x64xf32>
    %13 = tpu.matmul %11, %12, %cst_12 {dimension_numbers = #tpu.dot_dimension_numbers<[1], [0], [0], [1], [0, 0, 1, 1], [], []>} : vector<16x4xf32>, vector<4x64xf32>, vector<16x64xf32> -> vector<16x64xf32>
    %c0_13 = arith.constant 0 : index
    %c0_14 = arith.constant 0 : index
    %c0_15 = arith.constant 0 : index
    %14 = vector.load %arg6[%c0_13, %c0_14, %c0_15] : memref<1x16x4xf32, #tpu.memory_space<vmem>>, vector<1x16x4xf32>
    %15 = vector.shape_cast %14 : vector<1x16x4xf32> to vector<16x4xf32>
    %c0_16 = arith.constant 0 : index
    %c0_17 = arith.constant 0 : index
    %16 = vector.load %arg17[%c0_16, %c0_17] : memref<4x64xf32, #tpu.memory_space<vmem>>, vector<4x64xf32>
    %cst_18 = arith.constant dense<0.000000e+00> : vector<16x64xf32>
    %17 = tpu.matmul %15, %16, %cst_18 {dimension_numbers = #tpu.dot_dimension_numbers<[1], [0], [0], [1], [0, 0, 1, 1], [], []>} : vector<16x4xf32>, vector<4x64xf32>, vector<16x64xf32> -> vector<16x64xf32>
    %18 = vector.extract_strided_slice %9 {offsets = [0, 0], sizes = [16, 16], strides = [1, 1]} : vector<16x32xf32> to vector<16x16xf32>
    %19 = vector.extract_strided_slice %18 {offsets = [0, 0], sizes = [16, 4], strides = [1, 1]} : vector<16x16xf32> to vector<16x4xf32>
    %20 = vector.extract_strided_slice %18 {offsets = [0, 4], sizes = [16, 4], strides = [1, 1]} : vector<16x16xf32> to vector<16x4xf32>
    %21 = vector.extract_strided_slice %18 {offsets = [0, 8], sizes = [16, 4], strides = [1, 1]} : vector<16x16xf32> to vector<16x4xf32>
    %22 = vector.extract_strided_slice %18 {offsets = [0, 12], sizes = [16, 4], strides = [1, 1]} : vector<16x16xf32> to vector<16x4xf32>
    %cst_19 = arith.constant 0.000000e+00 : f32
    %23 = vector.broadcast %cst_19 : f32 to vector<16x4xf32>
    %24 = arith.subf %23, %20 : vector<16x4xf32>
    %cst_20 = arith.constant 0.000000e+00 : f32
    %25 = vector.broadcast %cst_20 : f32 to vector<16x4xf32>
    %26 = arith.subf %25, %21 : vector<16x4xf32>
    %27 = tpu.concatenate %24, %19, %22, %26 in 1 : vector<16x4xf32>, vector<16x4xf32>, vector<16x4xf32>, vector<16x4xf32> -> vector<16x16xf32>
    %28 = vector.extract_strided_slice %13 {offsets = [0, 0], sizes = [16, 32], strides = [1, 1]} : vector<16x64xf32> to vector<16x32xf32>
    %29 = vector.extract_strided_slice %17 {offsets = [0, 0], sizes = [16, 32], strides = [1, 1]} : vector<16x64xf32> to vector<16x32xf32>
    %30 = tpu.concatenate %18, %18 in 1 : vector<16x16xf32>, vector<16x16xf32> -> vector<16x32xf32>
    %31 = tpu.concatenate %27, %27 in 1 : vector<16x16xf32>, vector<16x16xf32> -> vector<16x32xf32>
    %32 = arith.mulf %30, %28 : vector<16x32xf32>
    %33 = arith.mulf %31, %29 : vector<16x32xf32>
    %34 = arith.addf %32, %33 : vector<16x32xf32>
    %35 = arith.truncf %34 : vector<16x32xf32> to vector<16x32xbf16>
    %c0_21 = arith.constant 0 : index
    %c0_22 = arith.constant 0 : index
    %36 = vector.load %arg19[%c0_21, %c0_22] : memref<96x64xbf16, #tpu.memory_space<vmem>>, vector<96x32xbf16>
    %cst_23 = arith.constant dense<0.000000e+00> : vector<16x96xf32>
    %37 = tpu.matmul %35, %36, %cst_23 {dimension_numbers = #tpu.dot_dimension_numbers<[1], [1], [0], [0], [0, 0, 1, 0], [], []>} : vector<16x32xbf16>, vector<96x32xbf16>, vector<16x96xf32> -> vector<16x96xf32>
    %cst_24 = arith.constant 1.250000e-01 : f32
    %38 = vector.broadcast %cst_24 : f32 to vector<16x96xf32>
    %39 = arith.mulf %37, %38 : vector<16x96xf32>
    %cst_25 = arith.constant dense<0xFF800000> : vector<16xf32>
    %40 = vector.multi_reduction <maximumf>, %39, %cst_25 [1] : vector<16x96xf32> to vector<16xf32>
    %41 = vector.shape_cast %40 : vector<16xf32> to vector<16x1xf32>
    %42 = vector.broadcast %41 : vector<16x1xf32> to vector<16x96xf32>
    %43 = arith.subf %39, %42 : vector<16x96xf32>
    %44 = math.exp %43 : vector<16x96xf32>
    %cst_26 = arith.constant dense<0.000000e+00> : vector<16xf32>
    %45 = vector.multi_reduction <add>, %44, %cst_26 [1] : vector<16x96xf32> to vector<16xf32>
    %46 = vector.shape_cast %45 : vector<16xf32> to vector<16x1xf32>
    %47 = arith.truncf %44 : vector<16x96xf32> to vector<16x96xbf16>
    %48 = tpu.reciprocal %46 {approx = true} : vector<16x1xf32> -> vector<16x1xf32>
    %c0_27 = arith.constant 0 : index
    %c0_28 = arith.constant 0 : index
    %49 = vector.load %arg20[%c0_27, %c0_28] : memref<96x32xbf16, #tpu.memory_space<vmem>>, vector<96x16xbf16>
    %cst_29 = arith.constant dense<0.000000e+00> : vector<16x16xf32>
    %50 = tpu.matmul %47, %49, %cst_29 {dimension_numbers = #tpu.dot_dimension_numbers<[1], [0], [0], [1], [0, 0, 1, 1], [], []>} : vector<16x96xbf16>, vector<96x16xbf16>, vector<16x16xf32> -> vector<16x16xf32>
    %51 = vector.broadcast %48 : vector<16x1xf32> to vector<16x16xf32>
    %52 = arith.mulf %50, %51 : vector<16x16xf32>
    %53 = arith.truncf %52 : vector<16x16xf32> to vector<16x16xbf16>
    %c0_30 = arith.constant 0 : index
    %c0_31 = arith.constant 0 : index
    %54 = vector.load %arg21[%c0_30, %c0_31] : memref<16x32xbf16, #tpu.memory_space<vmem>>, vector<16x16xbf16>
    tpu.vector_store %arg21[%c0_30, %c0_31], %53 {strides = array<i32>} : memref<16x32xbf16, #tpu.memory_space<vmem>>, vector<16x16xbf16>,
    %55 = vector.extract_strided_slice %9 {offsets = [0, 16], sizes = [16, 16], strides = [1, 1]} : vector<16x32xf32> to vector<16x16xf32>
    %56 = vector.extract_strided_slice %55 {offsets = [0, 0], sizes = [16, 4], strides = [1, 1]} : vector<16x16xf32> to vector<16x4xf32>
    %57 = vector.extract_strided_slice %55 {offsets = [0, 4], sizes = [16, 4], strides = [1, 1]} : vector<16x16xf32> to vector<16x4xf32>
    %58 = vector.extract_strided_slice %55 {offsets = [0, 8], sizes = [16, 4], strides = [1, 1]} : vector<16x16xf32> to vector<16x4xf32>
    %59 = vector.extract_strided_slice %55 {offsets = [0, 12], sizes = [16, 4], strides = [1, 1]} : vector<16x16xf32> to vector<16x4xf32>
    %cst_32 = arith.constant 0.000000e+00 : f32
    %60 = vector.broadcast %cst_32 : f32 to vector<16x4xf32>
    %61 = arith.subf %60, %57 : vector<16x4xf32>
    %cst_33 = arith.constant 0.000000e+00 : f32
    %62 = vector.broadcast %cst_33 : f32 to vector<16x4xf32>
    %63 = arith.subf %62, %58 : vector<16x4xf32>
    %64 = tpu.concatenate %61, %56, %59, %63 in 1 : vector<16x4xf32>, vector<16x4xf32>, vector<16x4xf32>, vector<16x4xf32> -> vector<16x16xf32>
    %65 = vector.extract_strided_slice %13 {offsets = [0, 32], sizes = [16, 32], strides = [1, 1]} : vector<16x64xf32> to vector<16x32xf32>
    %66 = vector.extract_strided_slice %17 {offsets = [0, 32], sizes = [16, 32], strides = [1, 1]} : vector<16x64xf32> to vector<16x32xf32>
    %67 = tpu.concatenate %55, %55 in 1 : vector<16x16xf32>, vector<16x16xf32> -> vector<16x32xf32>
    %68 = tpu.concatenate %64, %64 in 1 : vector<16x16xf32>, vector<16x16xf32> -> vector<16x32xf32>
    %69 = arith.mulf %67, %65 : vector<16x32xf32>
    %70 = arith.mulf %68, %66 : vector<16x32xf32>
    %71 = arith.addf %69, %70 : vector<16x32xf32>
    %72 = arith.truncf %71 : vector<16x32xf32> to vector<16x32xbf16>
    %c0_34 = arith.constant 0 : index
    %c32 = arith.constant 32 : index
    %73 = vector.load %arg19[%c0_34, %c32] : memref<96x64xbf16, #tpu.memory_space<vmem>>, vector<96x32xbf16>
    %cst_35 = arith.constant dense<0.000000e+00> : vector<16x96xf32>
    %74 = tpu.matmul %72, %73, %cst_35 {dimension_numbers = #tpu.dot_dimension_numbers<[1], [1], [0], [0], [0, 0, 1, 0], [], []>} : vector<16x32xbf16>, vector<96x32xbf16>, vector<16x96xf32> -> vector<16x96xf32>
    %cst_36 = arith.constant 1.250000e-01 : f32
    %75 = vector.broadcast %cst_36 : f32 to vector<16x96xf32>
    %76 = arith.mulf %74, %75 : vector<16x96xf32>
    %cst_37 = arith.constant dense<0xFF800000> : vector<16xf32>
    %77 = vector.multi_reduction <maximumf>, %76, %cst_37 [1] : vector<16x96xf32> to vector<16xf32>
    %78 = vector.shape_cast %77 : vector<16xf32> to vector<16x1xf32>
    %79 = vector.broadcast %78 : vector<16x1xf32> to vector<16x96xf32>
    %80 = arith.subf %76, %79 : vector<16x96xf32>
    %81 = math.exp %80 : vector<16x96xf32>
    %cst_38 = arith.constant dense<0.000000e+00> : vector<16xf32>
    %82 = vector.multi_reduction <add>, %81, %cst_38 [1] : vector<16x96xf32> to vector<16xf32>
    %83 = vector.shape_cast %82 : vector<16xf32> to vector<16x1xf32>
    %84 = arith.truncf %81 : vector<16x96xf32> to vector<16x96xbf16>
    %85 = tpu.reciprocal %83 {approx = true} : vector<16x1xf32> -> vector<16x1xf32>
    %c0_39 = arith.constant 0 : index
    %c16 = arith.constant 16 : index
    %86 = vector.load %arg20[%c0_39, %c16] : memref<96x32xbf16, #tpu.memory_space<vmem>>, vector<96x16xbf16>
    %cst_40 = arith.constant dense<0.000000e+00> : vector<16x16xf32>
    %87 = tpu.matmul %84, %86, %cst_40 {dimension_numbers = #tpu.dot_dimension_numbers<[1], [0], [0], [1], [0, 0, 1, 1], [], []>} : vector<16x96xbf16>, vector<96x16xbf16>, vector<16x16xf32> -> vector<16x16xf32>
    %88 = vector.broadcast %85 : vector<16x1xf32> to vector<16x16xf32>
    %89 = arith.mulf %87, %88 : vector<16x16xf32>
    %90 = arith.truncf %89 : vector<16x16xf32> to vector<16x16xbf16>
    %c0_41 = arith.constant 0 : index
    %c16_42 = arith.constant 16 : index
    %91 = vector.load %arg21[%c0_41, %c16_42] : memref<16x32xbf16, #tpu.memory_space<vmem>>, vector<16x16xbf16>
    tpu.vector_store %arg21[%c0_41, %c16_42], %90 {strides = array<i32>} : memref<16x32xbf16, #tpu.memory_space<vmem>>, vector<16x16xbf16>,
    %c0_43 = arith.constant 0 : index
    %c0_44 = arith.constant 0 : index
    %92 = vector.load %arg21[%c0_43, %c0_44] : memref<16x32xbf16, #tpu.memory_space<vmem>>, vector<16x32xbf16>
    %c0_45 = arith.constant 0 : index
    %c0_46 = arith.constant 0 : index
    %93 = vector.load %arg15[%c0_45, %c0_46] : memref<32x32xbf16, #tpu.memory_space<vmem>>, vector<32x32xbf16>
    %cst_47 = arith.constant dense<0.000000e+00> : vector<16x32xf32>
    %94 = tpu.matmul %92, %93, %cst_47 {dimension_numbers = #tpu.dot_dimension_numbers<[1], [0], [0], [1], [0, 0, 1, 1], [], []>} : vector<16x32xbf16>, vector<32x32xbf16>, vector<16x32xf32> -> vector<16x32xf32>
    %c0_48 = arith.constant 0 : index
    %c0_49 = arith.constant 0 : index
    %95 = vector.load %arg16[%c0_48, %c0_49] : memref<1x32xf32, #tpu.memory_space<vmem>>, vector<1x32xf32>
    %96 = vector.broadcast %95 : vector<1x32xf32> to vector<16x32xf32>
    %97 = arith.addf %94, %96 : vector<16x32xf32>
    %c0_50 = arith.constant 0 : index
    %c0_51 = arith.constant 0 : index
    %c0_52 = arith.constant 0 : index
    %98 = vector.load %arg18[%c0_50, %c0_51, %c0_52] : memref<1x16x32xf32, #tpu.memory_space<vmem>>, vector<1x16x32xf32>
    %99 = vector.shape_cast %98 : vector<1x16x32xf32> to vector<16x32xf32>
    %100 = vector.shape_cast %97 : vector<16x32xf32> to vector<1x16x32xf32>
    tpu.vector_store %arg18[%c0_50, %c0_51, %c0_52], %100 {strides = array<i32>} : memref<1x16x32xf32, #tpu.memory_space<vmem>>, vector<1x16x32xf32>,
    return
  }
  func.func @transform_0(%arg0: i32, %arg1: i32) -> (i32, i32, i32) {
    %c0_i32 = arith.constant 0 : i32
    %c0_i32_0 = arith.constant 0 : i32
    return %arg0, %arg1, %c0_i32 : i32, i32, i32
  }
  func.func @transform_1(%arg0: i32, %arg1: i32) -> (i32, i32, i32) {
    %c0_i32 = arith.constant 0 : i32
    %c0_i32_0 = arith.constant 0 : i32
    %c0_i32_1 = arith.constant 0 : i32
    return %arg0, %c0_i32, %c0_i32_0 : i32, i32, i32
  }
  func.func @transform_2(%arg0: i32, %arg1: i32) -> (i32, i32, i32) {
    %c0_i32 = arith.constant 0 : i32
    %c0_i32_0 = arith.constant 0 : i32
    %c0_i32_1 = arith.constant 0 : i32
    return %arg0, %c0_i32, %c0_i32_0 : i32, i32, i32
  }
  func.func @transform_3(%arg0: i32, %arg1: i32) -> (i32, i32, i32) {
    %c0_i32 = arith.constant 0 : i32
    %c0_i32_0 = arith.constant 0 : i32
    return %arg0, %arg1, %c0_i32 : i32, i32, i32
  }
  func.func @transform_4(%arg0: i32, %arg1: i32) -> (i32, i32, i32) {
    %c0_i32 = arith.constant 0 : i32
    %c0_i32_0 = arith.constant 0 : i32
    return %arg0, %arg1, %c0_i32 : i32, i32, i32
  }
  func.func @transform_5(%arg0: i32, %arg1: i32) -> (i32, i32, i32) {
    %c0_i32 = arith.constant 0 : i32
    %c0_i32_0 = arith.constant 0 : i32
    %c0_i32_1 = arith.constant 0 : i32
    return %arg0, %c0_i32, %c0_i32_0 : i32, i32, i32
  }
  func.func @transform_6(%arg0: i32, %arg1: i32) -> (i32, i32, i32) {
    %c0_i32 = arith.constant 0 : i32
    %c0_i32_0 = arith.constant 0 : i32
    %c0_i32_1 = arith.constant 0 : i32
    return %arg0, %c0_i32, %c0_i32_0 : i32, i32, i32
  }
  func.func @transform_7(%arg0: i32, %arg1: i32) -> (i32, i32) {
    %c0_i32 = arith.constant 0 : i32
    %c0_i32_0 = arith.constant 0 : i32
    %c0_i32_1 = arith.constant 0 : i32
    return %c0_i32, %c0_i32_0 : i32, i32
  }
  func.func @transform_8(%arg0: i32, %arg1: i32) -> (i32, i32) {
    %c0_i32 = arith.constant 0 : i32
    %c0_i32_0 = arith.constant 0 : i32
    %c0_i32_1 = arith.constant 0 : i32
    return %c0_i32, %c0_i32_0 : i32, i32
  }
  func.func @transform_9(%arg0: i32, %arg1: i32) -> (i32, i32) {
    %c0_i32 = arith.constant 0 : i32
    %c0_i32_0 = arith.constant 0 : i32
    %c0_i32_1 = arith.constant 0 : i32
    return %c0_i32, %c0_i32_0 : i32, i32
  }
  func.func @transform_10(%arg0: i32, %arg1: i32) -> (i32, i32) {
    %c0_i32 = arith.constant 0 : i32
    %c0_i32_0 = arith.constant 0 : i32
    %c0_i32_1 = arith.constant 0 : i32
    return %c0_i32, %c0_i32_0 : i32, i32
  }
  func.func @transform_11(%arg0: i32, %arg1: i32) -> (i32, i32) {
    %c0_i32 = arith.constant 0 : i32
    %c0_i32_0 = arith.constant 0 : i32
    %c0_i32_1 = arith.constant 0 : i32
    return %c0_i32, %c0_i32_0 : i32, i32
  }
  func.func @transform_12(%arg0: i32, %arg1: i32) -> (i32, i32) {
    %c0_i32 = arith.constant 0 : i32
    %c0_i32_0 = arith.constant 0 : i32
    %c0_i32_1 = arith.constant 0 : i32
    return %c0_i32, %c0_i32_0 : i32, i32
  }
  func.func @transform_13(%arg0: i32, %arg1: i32) -> (i32, i32) {
    %c0_i32 = arith.constant 0 : i32
    %c0_i32_0 = arith.constant 0 : i32
    %c0_i32_1 = arith.constant 0 : i32
    return %c0_i32, %c0_i32_0 : i32, i32
  }
  func.func @transform_14(%arg0: i32, %arg1: i32) -> (i32, i32) {
    %c0_i32 = arith.constant 0 : i32
    %c0_i32_0 = arith.constant 0 : i32
    %c0_i32_1 = arith.constant 0 : i32
    return %c0_i32, %c0_i32_0 : i32, i32
  }
  func.func @transform_15(%arg0: i32, %arg1: i32) -> (i32, i32) {
    %c0_i32 = arith.constant 0 : i32
    %c0_i32_0 = arith.constant 0 : i32
    %c0_i32_1 = arith.constant 0 : i32
    return %c0_i32, %c0_i32_0 : i32, i32
  }
  func.func @transform_16(%arg0: i32, %arg1: i32) -> (i32, i32, i32) {
    %c0_i32 = arith.constant 0 : i32
    %c0_i32_0 = arith.constant 0 : i32
    return %arg0, %arg1, %c0_i32 : i32, i32, i32
  }
}

</mosaic_0001>

<llo_original>
// kernel: decoupling_forward_pallas.2
$region0: #{decoupling_forward_pallas.2}
  #allocation0 [shape = 'u32[]', space=smem, size = 0x4, offset = 0x4, fixed_abs, tag = 'smem constant byte address 0x4 - core index']
  #allocation1 [shape = 'u32[72,128]{1,0:T(1,128)}', space=vmem, size = 0x9000, scoped, tag = 'internal scratch']
  #allocation2 [shape = 'bf16[16,64]{1,0:T(8,128)(2,1)}', space=vmem, size = 0x1000, scoped, tag = 'scratch operand']
  #allocation3 [shape = 'bf16[16,32]{1,0:T(8,128)(2,1)}', space=vmem, size = 0x1000, scoped, tag = 'scratch operand']
  #allocation4 [shape = 'bf16[96,32]{1,0:T(8,128)(2,1)}', space=vmem, size = 0x6000, scoped, tag = 'scratch operand']
  %s0 = inlined_call_operand.vmem [shape: bf16[1,96,32], index: 0, kind: input, shape index: {}]
  %s1 = inlined_call_operand.vmem [shape: bf16[2,16,32], index: 1, kind: input, shape index: {}]
  %s2 = inlined_call_operand.vmem [shape: bf16[2,16,32], index: 2, kind: input, shape index: {}]
  %s3 = inlined_call_operand.vmem [shape: f32[1,96,4], index: 3, kind: input, shape index: {}]
  %s4 = inlined_call_operand.vmem [shape: f32[1,96,4], index: 4, kind: input, shape index: {}]
  %s5 = inlined_call_operand.vmem [shape: f32[2,16,4], index: 5, kind: input, shape index: {}]
  %s6 = inlined_call_operand.vmem [shape: f32[2,16,4], index: 6, kind: input, shape index: {}]
  %s7 = inlined_call_operand.vmem [shape: bf16[32,32], index: 7, kind: input, shape index: {}]
  %s8 = inlined_call_operand.vmem [shape: f32[1,32], index: 8, kind: input, shape index: {}]
  %s9 = inlined_call_operand.vmem [shape: bf16[32,32], index: 9, kind: input, shape index: {}]
  %s10 = inlined_call_operand.vmem [shape: f32[1,32], index: 10, kind: input, shape index: {}]
  %s11 = inlined_call_operand.vmem [shape: bf16[32,32], index: 11, kind: input, shape index: {}]
  %s12 = inlined_call_operand.vmem [shape: f32[1,32], index: 12, kind: input, shape index: {}]
  %s13 = inlined_call_operand.vmem [shape: bf16[32,32], index: 13, kind: input, shape index: {}]
  %s14 = inlined_call_operand.vmem [shape: f32[1,32], index: 14, kind: input, shape index: {}]
  %s15 = inlined_call_operand.vmem [shape: f32[4,64], index: 15, kind: input, shape index: {}]
  %s16 = inlined_call_operand.vmem [shape: f32[2,96,32], index: 16, kind: output, shape index: {}]
  %s17 = sld [smem:[#allocation0]]
  $region101: #{decoupling_forward_pallas.2} parent=0
    _
  %s19 = ssub.s32 1, %s17
  %s20 = scalar_select 0, %s19, %s17
  loop: start=0, step=1, limit=4
  $region2: #{decoupling_forward_pallas.2} parent=0 // loop_pre_header
    _
  $region3: #{decoupling_forward_pallas.2} parent=0 // loop_header
    %s22 = sphi 0, %s26
    %p23 = scmp.ge.s32.totalorder %s22, 4
    %s29 = sphi 0, %s41
    %s30 = sphi 0, %s37
    %s31 = sphi 0, %s29
    %s32 = sphi 0, %s30
    %s33 = sphi 0, %s31
    %s34 = sphi 0, %s32
    %s44 = sphi 0, %s46
    %s47 = sphi 0, %s44
    %s48 = sphi 0, %s47
    %s64 = sphi 0, %s48
    %s70 = sphi 0, %s72
    %s73 = sphi 0, %s70
    %s74 = sphi 0, %s73
    %s90 = sphi 0, %s74
    %s96 = sphi 0, %s98
    %s99 = sphi 0, %s96
    %s100 = sphi 0, %s99
    %s116 = sphi 0, %s100
    %s122 = sphi 0, %s124
    %s125 = sphi 0, %s122
    %s126 = sphi 0, %s125
    %s142 = sphi 0, %s126
    %s148 = sphi 0, %s150
    %s151 = sphi 0, %s148
    %s152 = sphi 0, %s151
    %s168 = sphi 0, %s152
    %s174 = sphi 0, %s176
    %s177 = sphi 0, %s174
    %s178 = sphi 0, %s177
    %s194 = sphi 0, %s178
    %s200 = sphi 0, %s202
    %s203 = sphi 0, %s200
    %s204 = sphi 0, %s203
    %s220 = sphi 0, %s204
    %s224 = sphi 0, %s224
    %s226 = sphi 0, %s224
    %s227 = sphi 0, %s226
    %s241 = sphi 0, %s227
    %s245 = sphi 0, %s245
    %s247 = sphi 0, %s245
    %s248 = sphi 0, %s247
    %s262 = sphi 0, %s248
    %s266 = sphi 0, %s266
    %s268 = sphi 0, %s266
    %s269 = sphi 0, %s268
    %s283 = sphi 0, %s269
    %s287 = sphi 0, %s287
    %s289 = sphi 0, %s287
    %s290 = sphi 0, %s289
    %s304 = sphi 0, %s290
    %s308 = sphi 0, %s308
    %s310 = sphi 0, %s308
    %s311 = sphi 0, %s310
    %s325 = sphi 0, %s311
    %s329 = sphi 0, %s329
    %s331 = sphi 0, %s329
    %s332 = sphi 0, %s331
    %s346 = sphi 0, %s332
    %s350 = sphi 0, %s350
    %s352 = sphi 0, %s350
    %s353 = sphi 0, %s352
    %s367 = sphi 0, %s353
    %s371 = sphi 0, %s371
    %s373 = sphi 0, %s371
    %s374 = sphi 0, %s373
    %s388 = sphi 0, %s374
    %s392 = sphi 0, %s392
    %s394 = sphi 0, %s392
    %s395 = sphi 0, %s394
    %s409 = sphi 0, %s395
    %s417 = sphi 0, %s419
    %s420 = sphi 0, %s417
    %s421 = sphi 0, %s420
    %s437 = sphi 0, %s421
  $region4: #{decoupling_forward_pallas.2} parent=0 // loop_header_branch
    %25 = sbr.rel (%p23) target = $region8
  $region5: #{decoupling_forward_pallas.2} parent=0 // loop_body
    %s27 = ssub.s32 %s22, 1
    %s28 = ssub.s32 %s22, 2
    %s35 = sadd.s32 1, %s30
    %p36 = scmp.ge.s32.totalorder %s35, 1
    %s37 = scalar_select %p36, 0, %s35
    %s38 = sadd.s32 1, %s29
    %s39 = scalar_select %p36, %s38, %s29
    %p40 = scmp.ge.s32.totalorder %s39, 2
    %s41 = scalar_select %p40, 0, %s39
    %s42 = ssub.s32 %s30, %s37
    %p43 = scmp.eq.s32.totalorder %s42, 0
    %s45 = sadd.s32 %s44, 1
    %s46 = scalar_select %p43, %s44, %s45
    %p49 = pneg %p43
    %p50 = scmp.eq.s32.totalorder %s22, 1
    %p51 = por %p49, %p50
    %p52 = scmp.ne.s32.totalorder %s44, %s47
    %p53 = scmp.eq.s32.totalorder %s22, 0
    %p54 = por %p52, %p53
    %p55 = scmp.ne.s32.totalorder %s44, %s47
    %p56 = scmp.eq.s32.totalorder %s27, 1
    %p57 = por %p55, %p56
    %p58 = scmp.ne.s32.totalorder %s47, %s48
    %p59 = scmp.eq.s32.totalorder %s27, 0
    %p60 = por %p58, %p59
    %p61 = scmp.ne.s32.totalorder %s47, %s48
    %p62 = scmp.eq.s32.totalorder %s28, 1
    %p63 = por %p61, %p62
    %p65 = scmp.ne.s32.totalorder %s48, %s64
    %p66 = scmp.eq.s32.totalorder %s28, 0
    %p67 = por %p65, %p66
    %s68 = ssub.s32 %s29, %s41
    %p69 = scmp.eq.s32.totalorder %s68, 0
    %s71 = sadd.s32 %s70, 1
    %s72 = scalar_select %p69, %s70, %s71
    %p75 = pneg %p69
    %p76 = scmp.eq.s32.totalorder %s22, 1
    %p77 = por %p75, %p76
    %p78 = scmp.ne.s32.totalorder %s70, %s73
    %p79 = scmp.eq.s32.totalorder %s22, 0
    %p80 = por %p78, %p79
    %p81 = scmp.ne.s32.totalorder %s70, %s73
    %p82 = scmp.eq.s32.totalorder %s27, 1
    %p83 = por %p81, %p82
    %p84 = scmp.ne.s32.totalorder %s73, %s74
    %p85 = scmp.eq.s32.totalorder %s27, 0
    %p86 = por %p84, %p85
    %p87 = scmp.ne.s32.totalorder %s73, %s74
    %p88 = scmp.eq.s32.totalorder %s28, 1
    %p89 = por %p87, %p88
    %p91 = scmp.ne.s32.totalorder %s74, %s90
    %p92 = scmp.eq.s32.totalorder %s28, 0
    %p93 = por %p91, %p92
    %s94 = ssub.s32 %s29, %s41
    %p95 = scmp.eq.s32.totalorder %s94, 0
    %s97 = sadd.s32 %s96, 1
    %s98 = scalar_select %p95, %s96, %s97
    %p101 = pneg %p95
    %p102 = scmp.eq.s32.totalorder %s22, 1
    %p103 = por %p101, %p102
    %p104 = scmp.ne.s32.totalorder %s96, %s99
    %p105 = scmp.eq.s32.totalorder %s22, 0
    %p106 = por %p104, %p105
    %p107 = scmp.ne.s32.totalorder %s96, %s99
    %p108 = scmp.eq.s32.totalorder %s27, 1
    %p109 = por %p107, %p108
    %p110 = scmp.ne.s32.totalorder %s99, %s100
    %p111 = scmp.eq.s32.totalorder %s27, 0
    %p112 = por %p110, %p111
    %p113 = scmp.ne.s32.totalorder %s99, %s100
    %p114 = scmp.eq.s32.totalorder %s28, 1
    %p115 = por %p113, %p114
    %p117 = scmp.ne.s32.totalorder %s100, %s116
    %p118 = scmp.eq.s32.totalorder %s28, 0
    %p119 = por %p117, %p118
    %s120 = ssub.s32 %s30, %s37
    %p121 = scmp.eq.s32.totalorder %s120, 0
    %s123 = sadd.s32 %s122, 1
    %s124 = scalar_select %p121, %s122, %s123
    %p127 = pneg %p121
    %p128 = scmp.eq.s32.totalorder %s22, 1
    %p129 = por %p127, %p128
    %p130 = scmp.ne.s32.totalorder %s122, %s125
    %p131 = scmp.eq.s32.totalorder %s22, 0
    %p132 = por %p130, %p131
    %p133 = scmp.ne.s32.totalorder %s122, %s125
    %p134 = scmp.eq.s32.totalorder %s27, 1
    %p135 = por %p133, %p134
    %p136 = scmp.ne.s32.totalorder %s125, %s126
    %p137 = scmp.eq.s32.totalorder %s27, 0
    %p138 = por %p136, %p137
    %p139 = scmp.ne.s32.totalorder %s125, %s126
    %p140 = scmp.eq.s32.totalorder %s28, 1
    %p141 = por %p139, %p140
    %p143 = scmp.ne.s32.totalorder %s126, %s142
    %p144 = scmp.eq.s32.totalorder %s28, 0
    %p145 = por %p143, %p144
    %s146 = ssub.s32 %s30, %s37
    %p147 = scmp.eq.s32.totalorder %s146, 0
    %s149 = sadd.s32 %s148, 1
    %s150 = scalar_select %p147, %s148, %s149
    %p153 = pneg %p147
    %p154 = scmp.eq.s32.totalorder %s22, 1
    %p155 = por %p153, %p154
    %p156 = scmp.ne.s32.totalorder %s148, %s151
    %p157 = scmp.eq.s32.totalorder %s22, 0
    %p158 = por %p156, %p157
    %p159 = scmp.ne.s32.totalorder %s148, %s151
    %p160 = scmp.eq.s32.totalorder %s27, 1
    %p161 = por %p159, %p160
    %p162 = scmp.ne.s32.totalorder %s151, %s152
    %p163 = scmp.eq.s32.totalorder %s27, 0
    %p164 = por %p162, %p163
    %p165 = scmp.ne.s32.totalorder %s151, %s152
    %p166 = scmp.eq.s32.totalorder %s28, 1
    %p167 = por %p165, %p166
    %p169 = scmp.ne.s32.totalorder %s152, %s168
    %p170 = scmp.eq.s32.totalorder %s28, 0
    %p171 = por %p169, %p170
    %s172 = ssub.s32 %s29, %s41
    %p173 = scmp.eq.s32.totalorder %s172, 0
    %s175 = sadd.s32 %s174, 1
    %s176 = scalar_select %p173, %s174, %s175
    %p179 = pneg %p173
    %p180 = scmp.eq.s32.totalorder %s22, 1
    %p181 = por %p179, %p180
    %p182 = scmp.ne.s32.totalorder %s174, %s177
    %p183 = scmp.eq.s32.totalorder %s22, 0
    %p184 = por %p182, %p183
    %p185 = scmp.ne.s32.totalorder %s174, %s177
    %p186 = scmp.eq.s32.totalorder %s27, 1
    %p187 = por %p185, %p186
    %p188 = scmp.ne.s32.totalorder %s177, %s178
    %p189 = scmp.eq.s32.totalorder %s27, 0
    %p190 = por %p188, %p189
    %p191 = scmp.ne.s32.totalorder %s177, %s178
    %p192 = scmp.eq.s32.totalorder %s28, 1
    %p193 = por %p191, %p192
    %p195 = scmp.ne.s32.totalorder %s178, %s194
    %p196 = scmp.eq.s32.totalorder %s28, 0
    %p197 = por %p195, %p196
    %s198 = ssub.s32 %s29, %s41
    %p199 = scmp.eq.s32.totalorder %s198, 0
    %s201 = sadd.s32 %s200, 1
    %s202 = scalar_select %p199, %s200, %s201
    %p205 = pneg %p199
    %p206 = scmp.eq.s32.totalorder %s22, 1
    %p207 = por %p205, %p206
    %p208 = scmp.ne.s32.totalorder %s200, %s203
    %p209 = scmp.eq.s32.totalorder %s22, 0
    %p210 = por %p208, %p209
    %p211 = scmp.ne.s32.totalorder %s200, %s203
    %p212 = scmp.eq.s32.totalorder %s27, 1
    %p213 = por %p211, %p212
    %p214 = scmp.ne.s32.totalorder %s203, %s204
    %p215 = scmp.eq.s32.totalorder %s27, 0
    %p216 = por %p214, %p215
    %p217 = scmp.ne.s32.totalorder %s203, %s204
    %p218 = scmp.eq.s32.totalorder %s28, 1
    %p219 = por %p217, %p218
    %p221 = scmp.ne.s32.totalorder %s204, %s220
    %p222 = scmp.eq.s32.totalorder %s28, 0
    %p223 = por %p221, %p222
    %s225 = sadd.s32 %s224, 1
    %p228 = scmp.eq.s32.totalorder %s22, 1
    %p229 = scmp.ne.s32.totalorder %s224, %s226
    %p230 = scmp.eq.s32.totalorder %s22, 0
    %p231 = por %p229, %p230
    %p232 = scmp.ne.s32.totalorder %s224, %s226
    %p233 = scmp.eq.s32.totalorder %s27, 1
    %p234 = por %p232, %p233
    %p235 = scmp.ne.s32.totalorder %s226, %s227
    %p236 = scmp.eq.s32.totalorder %s27, 0
    %p237 = por %p235, %p236
    %p238 = scmp.ne.s32.totalorder %s226, %s227
    %p239 = scmp.eq.s32.totalorder %s28, 1
    %p240 = por %p238, %p239
    %p242 = scmp.ne.s32.totalorder %s227, %s241
    %p243 = scmp.eq.s32.totalorder %s28, 0
    %p244 = por %p242, %p243
    %s246 = sadd.s32 %s245, 1
    %p249 = scmp.eq.s32.totalorder %s22, 1
    %p250 = scmp.ne.s32.totalorder %s245, %s247
    %p251 = scmp.eq.s32.totalorder %s22, 0
    %p252 = por %p250, %p251
    %p253 = scmp.ne.s32.totalorder %s245, %s247
    %p254 = scmp.eq.s32.totalorder %s27, 1
    %p255 = por %p253, %p254
    %p256 = scmp.ne.s32.totalorder %s247, %s248
    %p257 = scmp.eq.s32.totalorder %s27, 0
    %p258 = por %p256, %p257
    %p259 = scmp.ne.s32.totalorder %s247, %s248
    %p260 = scmp.eq.s32.totalorder %s28, 1
    %p261 = por %p259, %p260
    %p263 = scmp.ne.s32.totalorder %s248, %s262
    %p264 = scmp.eq.s32.totalorder %s28, 0
    %p265 = por %p263, %p264
    %s267 = sadd.s32 %s266, 1
    %p270 = scmp.eq.s32.totalorder %s22, 1
    %p271 = scmp.ne.s32.totalorder %s266, %s268
    %p272 = scmp.eq.s32.totalorder %s22, 0
    %p273 = por %p271, %p272
    %p274 = scmp.ne.s32.totalorder %s266, %s268
    %p275 = scmp.eq.s32.totalorder %s27, 1
    %p276 = por %p274, %p275
    %p277 = scmp.ne.s32.totalorder %s268, %s269
    %p278 = scmp.eq.s32.totalorder %s27, 0
    %p279 = por %p277, %p278
    %p280 = scmp.ne.s32.totalorder %s268, %s269
    %p281 = scmp.eq.s32.totalorder %s28, 1
    %p282 = por %p280, %p281
    %p284 = scmp.ne.s32.totalorder %s269, %s283
    %p285 = scmp.eq.s32.totalorder %s28, 0
    %p286 = por %p284, %p285
    %s288 = sadd.s32 %s287, 1
    %p291 = scmp.eq.s32.totalorder %s22, 1
    %p292 = scmp.ne.s32.totalorder %s287, %s289
    %p293 = scmp.eq.s32.totalorder %s22, 0
    %p294 = por %p292, %p293
    %p295 = scmp.ne.s32.totalorder %s287, %s289
    %p296 = scmp.eq.s32.totalorder %s27, 1
    %p297 = por %p295, %p296
    %p298 = scmp.ne.s32.totalorder %s289, %s290
    %p299 = scmp.eq.s32.totalorder %s27, 0
    %p300 = por %p298, %p299
    %p301 = scmp.ne.s32.totalorder %s289, %s290
    %p302 = scmp.eq.s32.totalorder %s28, 1
    %p303 = por %p301, %p302
    %p305 = scmp.ne.s32.totalorder %s290, %s304
    %p306 = scmp.eq.s32.totalorder %s28, 0
    %p307 = por %p305, %p306
    %s309 = sadd.s32 %s308, 1
    %p312 = scmp.eq.s32.totalorder %s22, 1
    %p313 = scmp.ne.s32.totalorder %s308, %s310
    %p314 = scmp.eq.s32.totalorder %s22, 0
    %p315 = por %p313, %p314
    %p316 = scmp.ne.s32.totalorder %s308, %s310
    %p317 = scmp.eq.s32.totalorder %s27, 1
    %p318 = por %p316, %p317
    %p319 = scmp.ne.s32.totalorder %s310, %s311
    %p320 = scmp.eq.s32.totalorder %s27, 0
    %p321 = por %p319, %p320
    %p322 = scmp.ne.s32.totalorder %s310, %s311
    %p323 = scmp.eq.s32.totalorder %s28, 1
    %p324 = por %p322, %p323
    %p326 = scmp.ne.s32.totalorder %s311, %s325
    %p327 = scmp.eq.s32.totalorder %s28, 0
    %p328 = por %p326, %p327
    %s330 = sadd.s32 %s329, 1
    %p333 = scmp.eq.s32.totalorder %s22, 1
    %p334 = scmp.ne.s32.totalorder %s329, %s331
    %p335 = scmp.eq.s32.totalorder %s22, 0
    %p336 = por %p334, %p335
    %p337 = scmp.ne.s32.totalorder %s329, %s331
    %p338 = scmp.eq.s32.totalorder %s27, 1
    %p339 = por %p337, %p338
    %p340 = scmp.ne.s32.totalorder %s331, %s332
    %p341 = scmp.eq.s32.totalorder %s27, 0
    %p342 = por %p340, %p341
    %p343 = scmp.ne.s32.totalorder %s331, %s332
    %p344 = scmp.eq.s32.totalorder %s28, 1
    %p345 = por %p343, %p344
    %p347 = scmp.ne.s32.totalorder %s332, %s346
    %p348 = scmp.eq.s32.totalorder %s28, 0
    %p349 = por %p347, %p348
    %s351 = sadd.s32 %s350, 1
    %p354 = scmp.eq.s32.totalorder %s22, 1
    %p355 = scmp.ne.s32.totalorder %s350, %s352
    %p356 = scmp.eq.s32.totalorder %s22, 0
    %p357 = por %p355, %p356
    %p358 = scmp.ne.s32.totalorder %s350, %s352
    %p359 = scmp.eq.s32.totalorder %s27, 1
    %p360 = por %p358, %p359
    %p361 = scmp.ne.s32.totalorder %s352, %s353
    %p362 = scmp.eq.s32.totalorder %s27, 0
    %p363 = por %p361, %p362
    %p364 = scmp.ne.s32.totalorder %s352, %s353
    %p365 = scmp.eq.s32.totalorder %s28, 1
    %p366 = por %p364, %p365
    %p368 = scmp.ne.s32.totalorder %s353, %s367
    %p369 = scmp.eq.s32.totalorder %s28, 0
    %p370 = por %p368, %p369
    %s372 = sadd.s32 %s371, 1
    %p375 = scmp.eq.s32.totalorder %s22, 1
    %p376 = scmp.ne.s32.totalorder %s371, %s373
    %p377 = scmp.eq.s32.totalorder %s22, 0
    %p378 = por %p376, %p377
    %p379 = scmp.ne.s32.totalorder %s371, %s373
    %p380 = scmp.eq.s32.totalorder %s27, 1
    %p381 = por %p379, %p380
    %p382 = scmp.ne.s32.totalorder %s373, %s374
    %p383 = scmp.eq.s32.totalorder %s27, 0
    %p384 = por %p382, %p383
    %p385 = scmp.ne.s32.totalorder %s373, %s374
    %p386 = scmp.eq.s32.totalorder %s28, 1
    %p387 = por %p385, %p386
    %p389 = scmp.ne.s32.totalorder %s374, %s388
    %p390 = scmp.eq.s32.totalorder %s28, 0
    %p391 = por %p389, %p390
    %s393 = sadd.s32 %s392, 1
    %p396 = scmp.eq.s32.totalorder %s22, 1
    %p397 = scmp.ne.s32.totalorder %s392, %s394
    %p398 = scmp.eq.s32.totalorder %s22, 0
    %p399 = por %p397, %p398
    %p400 = scmp.ne.s32.totalorder %s392, %s394
    %p401 = scmp.eq.s32.totalorder %s27, 1
    %p402 = por %p400, %p401
    %p403 = scmp.ne.s32.totalorder %s394, %s395
    %p404 = scmp.eq.s32.totalorder %s27, 0
    %p405 = por %p403, %p404
    %p406 = scmp.ne.s32.totalorder %s394, %s395
    %p407 = scmp.eq.s32.totalorder %s28, 1
    %p408 = por %p406, %p407
    %p410 = scmp.ne.s32.totalorder %s395, %s409
    %p411 = scmp.eq.s32.totalorder %s28, 0
    %p412 = por %p410, %p411
    %s413 = ssub.s32 %s29, %s41
    %s414 = ssub.s32 %s30, %s37
    %s415 = sor.u32 %s413, %s414
    %p416 = scmp.eq.s32.totalorder %s415, 0
    %s418 = sadd.s32 %s417, 1
    %s419 = scalar_select %p416, %s417, %s418
    %p422 = pneg %p416
    %p423 = scmp.eq.s32.totalorder %s22, 1
    %p424 = por %p422, %p423
    %p425 = scmp.ne.s32.totalorder %s417, %s420
    %p426 = scmp.eq.s32.totalorder %s22, 0
    %p427 = por %p425, %p426
    %p428 = scmp.ne.s32.totalorder %s417, %s420
    %p429 = scmp.eq.s32.totalorder %s27, 1
    %p430 = por %p428, %p429
    %p431 = scmp.ne.s32.totalorder %s420, %s421
    %p432 = scmp.eq.s32.totalorder %s27, 0
    %p433 = por %p431, %p432
    %p434 = scmp.ne.s32.totalorder %s420, %s421
    %p435 = scmp.eq.s32.totalorder %s28, 1
    %p436 = por %p434, %p435
    %p438 = scmp.ne.s32.totalorder %s421, %s437
    %p439 = scmp.eq.s32.totalorder %s28, 0
    %p440 = por %p438, %p439
    %p441 = scmp.le.s32.totalorder 1, %s22
    %p442 = scmp.lt.s32.totalorder %s22, 3
    %p443 = pnand %p441, %p442
    %p444 = pneg %p443
    // Predicated region
    $region9: #{decoupling_forward_pallas.2} parent=5 // pred_check
      _
    $region10: #{decoupling_forward_pallas.2} parent=5 // pred_check_branch
      %446 = sbr.rel (%p443) target = $region12
    $region11: #{decoupling_forward_pallas.2} parent=5 // pred_region
      %s447 = ssub.s32 %s22, 1
      // Predicated region
      $region13: #{decoupling_forward_pallas.2} parent=11 // pred_check
        %p448 = pneg %p60
      $region14: #{decoupling_forward_pallas.2} parent=11 // pred_check_branch
        %450 = sbr.rel (%p448) target = $region16
      $region15: #{decoupling_forward_pallas.2} parent=11 // pred_region
        %s451 = smul.u32 12, %s32
        %p452 = scmp.lt.s32.totalorder %s451, 11
        %s453 = scalar_select %p452, %s451, 11
        %s454 = smul.addr %s453, 4
        %s455 = scalar_lea.vmem %s0, %s454
        %s456 = smul.u32 12, %s32
      $region16: #{decoupling_forward_pallas.2} parent=11 // pred_fallthru
        _
      // Predicated region
      $region17: #{decoupling_forward_pallas.2} parent=11 // pred_check
        %p457 = pneg %p138
      $region18: #{decoupling_forward_pallas.2} parent=11 // pred_check_branch
        %459 = sbr.rel (%p457) target = $region20
      $region19: #{decoupling_forward_pallas.2} parent=11 // pred_region
        %s460 = smul.u32 12, %s32
        %p461 = scmp.lt.s32.totalorder %s460, 11
        %s462 = scalar_select %p461, %s460, 11
        %s463 = smul.addr %s462, 8
        %s464 = scalar_lea.vmem %s3, %s463
        %s465 = smul.u32 12, %s32
      $region20: #{decoupling_forward_pallas.2} parent=11 // pred_fallthru
        _
      // Predicated region
      $region21: #{decoupling_forward_pallas.2} parent=11 // pred_check
        %p466 = pneg %p164
      $region22: #{decoupling_forward_pallas.2} parent=11 // pred_check_branch
        %468 = sbr.rel (%p466) target = $region24
      $region23: #{decoupling_forward_pallas.2} parent=11 // pred_region
        %s469 = smul.u32 12, %s32
        %p470 = scmp.lt.s32.totalorder %s469, 11
        %s471 = scalar_select %p470, %s469, 11
        %s472 = smul.addr %s471, 8
        %s473 = scalar_lea.vmem %s4, %s472
        %s474 = smul.u32 12, %s32
      $region24: #{decoupling_forward_pallas.2} parent=11 // pred_fallthru
        _
      // Predicated region
      $region25: #{decoupling_forward_pallas.2} parent=11 // pred_check
        %p475 = pneg %p237
      $region26: #{decoupling_forward_pallas.2} parent=11 // pred_check_branch
        %477 = sbr.rel (%p475) target = $region28
      $region27: #{decoupling_forward_pallas.2} parent=11 // pred_region
        _
      $region28: #{decoupling_forward_pallas.2} parent=11 // pred_fallthru
        _
      // Predicated region
      $region29: #{decoupling_forward_pallas.2} parent=11 // pred_check
        %p478 = pneg %p258
      $region30: #{decoupling_forward_pallas.2} parent=11 // pred_check_branch
        %480 = sbr.rel (%p478) target = $region32
      $region31: #{decoupling_forward_pallas.2} parent=11 // pred_region
        _
      $region32: #{decoupling_forward_pallas.2} parent=11 // pred_fallthru
        _
      // Predicated region
      $region33: #{decoupling_forward_pallas.2} parent=11 // pred_check
        %p481 = pneg %p279
      $region34: #{decoupling_forward_pallas.2} parent=11 // pred_check_branch
        %483 = sbr.rel (%p481) target = $region36
      $region35: #{decoupling_forward_pallas.2} parent=11 // pred_region
        _
      $region36: #{decoupling_forward_pallas.2} parent=11 // pred_fallthru
        _
      // Predicated region
      $region37: #{decoupling_forward_pallas.2} parent=11 // pred_check
        %p484 = pneg %p300
      $region38: #{decoupling_forward_pallas.2} parent=11 // pred_check_branch
        %486 = sbr.rel (%p484) target = $region40
      $region39: #{decoupling_forward_pallas.2} parent=11 // pred_region
        _
      $region40: #{decoupling_forward_pallas.2} parent=11 // pred_fallthru
        _
      // Predicated region
      $region41: #{decoupling_forward_pallas.2} parent=11 // pred_check
        %p487 = pneg %p321
      $region42: #{decoupling_forward_pallas.2} parent=11 // pred_check_branch
        %489 = sbr.rel (%p487) target = $region44
      $region43: #{decoupling_forward_pallas.2} parent=11 // pred_region
        _
      $region44: #{decoupling_forward_pallas.2} parent=11 // pred_fallthru
        _
      // Predicated region
      $region45: #{decoupling_forward_pallas.2} parent=11 // pred_check
        %p490 = pneg %p342
      $region46: #{decoupling_forward_pallas.2} parent=11 // pred_check_branch
        %492 = sbr.rel (%p490) target = $region48
      $region47: #{decoupling_forward_pallas.2} parent=11 // pred_region
        _
      $region48: #{decoupling_forward_pallas.2} parent=11 // pred_fallthru
        _
      // Predicated region
      $region49: #{decoupling_forward_pallas.2} parent=11 // pred_check
        %p493 = pneg %p363
      $region50: #{decoupling_forward_pallas.2} parent=11 // pred_check_branch
        %495 = sbr.rel (%p493) target = $region52
      $region51: #{decoupling_forward_pallas.2} parent=11 // pred_region
        _
      $region52: #{decoupling_forward_pallas.2} parent=11 // pred_fallthru
        _
      // Predicated region
      $region53: #{decoupling_forward_pallas.2} parent=11 // pred_check
        %p496 = pneg %p384
      $region54: #{decoupling_forward_pallas.2} parent=11 // pred_check_branch
        %498 = sbr.rel (%p496) target = $region56
      $region55: #{decoupling_forward_pallas.2} parent=11 // pred_region
        _
      $region56: #{decoupling_forward_pallas.2} parent=11 // pred_fallthru
        _
      // Predicated region
      $region57: #{decoupling_forward_pallas.2} parent=11 // pred_check
        %p499 = pneg %p405
      $region58: #{decoupling_forward_pallas.2} parent=11 // pred_check_branch
        %501 = sbr.rel (%p499) target = $region60
      $region59: #{decoupling_forward_pallas.2} parent=11 // pred_region
        _
      $region60: #{decoupling_forward_pallas.2} parent=11 // pred_fallthru
        _
    $region12: #{decoupling_forward_pallas.2} parent=5 // pred_fallthru
      _
    %p502 = scmp.lt.s32.totalorder %s22, 2
    // Predicated region
    $region61: #{decoupling_forward_pallas.2} parent=5 // pred_check
      %p503 = pneg %p502
    $region62: #{decoupling_forward_pallas.2} parent=5 // pred_check_branch
      %505 = sbr.rel (%p503) target = $region64
    $region63: #{decoupling_forward_pallas.2} parent=5 // pred_region
      // Predicated region
      $region65: #{decoupling_forward_pallas.2} parent=63 // pred_check
        %p506 = pneg %p80
      $region66: #{decoupling_forward_pallas.2} parent=63 // pred_check_branch
        %508 = sbr.rel (%p506) target = $region68
      $region67: #{decoupling_forward_pallas.2} parent=63 // pred_region
        %p509 = scmp.lt.s32.totalorder %s29, 1
        %s510 = scalar_select %p509, %s29, 1
        %s511 = smul.addr %s510, 2
        %s512 = smul.addr %s511, 4
        %s513 = scalar_lea.vmem %s1, %s512
      $region68: #{decoupling_forward_pallas.2} parent=63 // pred_fallthru
        _
      // Predicated region
      $region69: #{decoupling_forward_pallas.2} parent=63 // pred_check
        %p514 = pneg %p106
      $region70: #{decoupling_forward_pallas.2} parent=63 // pred_check_branch
        %516 = sbr.rel (%p514) target = $region72
      $region71: #{decoupling_forward_pallas.2} parent=63 // pred_region
        %p517 = scmp.lt.s32.totalorder %s29, 1
        %s518 = scalar_select %p517, %s29, 1
        %s519 = smul.addr %s518, 2
        %s520 = smul.addr %s519, 4
        %s521 = scalar_lea.vmem %s2, %s520
      $region72: #{decoupling_forward_pallas.2} parent=63 // pred_fallthru
        _
      // Predicated region
      $region73: #{decoupling_forward_pallas.2} parent=63 // pred_check
        %p522 = pneg %p184
      $region74: #{decoupling_forward_pallas.2} parent=63 // pred_check_branch
        %524 = sbr.rel (%p522) target = $region76
      $region75: #{decoupling_forward_pallas.2} parent=63 // pred_region
        %p525 = scmp.lt.s32.totalorder %s29, 1
        %s526 = scalar_select %p525, %s29, 1
        %s527 = smul.addr %s526, 2
        %s528 = smul.addr %s527, 8
        %s529 = scalar_lea.vmem %s5, %s528
      $region76: #{decoupling_forward_pallas.2} parent=63 // pred_fallthru
        _
      // Predicated region
      $region77: #{decoupling_forward_pallas.2} parent=63 // pred_check
        %p530 = pneg %p210
      $region78: #{decoupling_forward_pallas.2} parent=63 // pred_check_branch
        %532 = sbr.rel (%p530) target = $region80
      $region79: #{decoupling_forward_pallas.2} parent=63 // pred_region
        %p533 = scmp.lt.s32.totalorder %s29, 1
        %s534 = scalar_select %p533, %s29, 1
        %s535 = smul.addr %s534, 2
        %s536 = smul.addr %s535, 8
        %s537 = scalar_lea.vmem %s6, %s536
      $region80: #{decoupling_forward_pallas.2} parent=63 // pred_fallthru
        _
    $region64: #{decoupling_forward_pallas.2} parent=5 // pred_fallthru
      _
    %p538 = scmp.le.s32.totalorder 1, %s22
    %p539 = scmp.lt.s32.totalorder %s22, 3
    %p540 = pnand %p538, %p539
    %p541 = pneg %p540
    // Predicated region
    $region81: #{decoupling_forward_pallas.2} parent=5 // pred_check
      _
    $region82: #{decoupling_forward_pallas.2} parent=5 // pred_check_branch
      %543 = sbr.rel (%p540) target = $region84
    $region83: #{decoupling_forward_pallas.2} parent=5 // pred_region
      %s544 = ssub.s32 %s22, 1
      %s545 = smul.u32 12, %s32
      %p546 = scmp.lt.s32.totalorder %s545, 11
      %s547 = scalar_select %p546, %s545, 11
      %s548 = smul.addr %s547, 4
      %s549 = scalar_lea.vmem %s0, %s548
      %p550 = pneg %p60
      %p551 = pneg %p57
      %p552 = scmp.lt.s32.totalorder %s31, 1
      %s553 = scalar_select %p552, %s31, 1
      %s554 = smul.addr %s553, 2
      %s555 = smul.addr %s554, 4
      %s556 = scalar_lea.vmem %s1, %s555
      %p557 = pneg %p86
      %p558 = pneg %p83
      %p559 = scmp.lt.s32.totalorder %s31, 1
      %s560 = scalar_select %p559, %s31, 1
      %s561 = smul.addr %s560, 2
      %s562 = smul.addr %s561, 4
      %s563 = scalar_lea.vmem %s2, %s562
      %p564 = pneg %p112
      %p565 = pneg %p109
      %s566 = smul.u32 12, %s32
      %p567 = scmp.lt.s32.totalorder %s566, 11
      %s568 = scalar_select %p567, %s566, 11
      %s569 = smul.addr %s568, 8
      %s570 = scalar_lea.vmem %s3, %s569
      %p571 = pneg %p138
      %p572 = pneg %p135
      %s573 = smul.u32 12, %s32
      %p574 = scmp.lt.s32.totalorder %s573, 11
      %s575 = scalar_select %p574, %s573, 11
      %s576 = smul.addr %s575, 8
      %s577 = scalar_lea.vmem %s4, %s576
      %p578 = pneg %p164
      %p579 = pneg %p161
      %p580 = scmp.lt.s32.totalorder %s31, 1
      %s581 = scalar_select %p580, %s31, 1
      %s582 = smul.addr %s581, 2
      %s583 = smul.addr %s582, 8
      %s584 = scalar_lea.vmem %s5, %s583
      %p585 = pneg %p190
      %p586 = pneg %p187
      %p587 = scmp.lt.s32.totalorder %s31, 1
      %s588 = scalar_select %p587, %s31, 1
      %s589 = smul.addr %s588, 2
      %s590 = smul.addr %s589, 8
      %s591 = scalar_lea.vmem %s6, %s590
      %p592 = pneg %p216
      %p593 = pneg %p213
      %p594 = pneg %p237
      %p595 = pneg %p234
      %p596 = pneg %p258
      %p597 = pneg %p255
      %p598 = pneg %p279
      %p599 = pneg %p276
      %p600 = pneg %p300
      %p601 = pneg %p297
      %p602 = pneg %p321
      %p603 = pneg %p318
      %p604 = pneg %p342
      %p605 = pneg %p339
      %p606 = pneg %p363
      %p607 = pneg %p360
      %p608 = pneg %p384
      %p609 = pneg %p381
      %p610 = pneg %p405
      %p611 = pneg %p402
      %p612 = pneg %p433
      %p613 = pneg %p430
      %s614 = smul.u32 12, %s32
      %p615 = scmp.lt.s32.totalorder %s31, 1
      %s616 = scalar_select %p615, %s31, 1
      %p617 = scmp.lt.s32.totalorder %s614, 11
      %s618 = scalar_select %p617, %s614, 11
      %s619 = smul.addr %s616, 12
      %s620 = sadd.s32 %s618, %s619
      %s621 = smul.addr %s620, 8
      %s622 = scalar_lea.vmem %s16, %s621
      %s623 = smul.u32 12, %s32
      %p624 = scmp.lt.s32.totalorder %s623, 11
      %s625 = scalar_select %p624, %s623, 11
      %s626 = smul.addr %s625, 4
      %s627 = scalar_lea.vmem %s0, %s626
      %s628 = smul.u32 12, %s32
      %p629 = scmp.lt.s32.totalorder %s31, 1
      %s630 = scalar_select %p629, %s31, 1
      %s631 = smul.addr %s630, 2
      %s632 = smul.addr %s631, 4
      %s633 = scalar_lea.vmem %s1, %s632
      %p634 = scmp.lt.s32.totalorder %s31, 1
      %s635 = scalar_select %p634, %s31, 1
      %s636 = smul.addr %s635, 2
      %s637 = smul.addr %s636, 4
      %s638 = scalar_lea.vmem %s2, %s637
      %s639 = smul.u32 12, %s32
      %p640 = scmp.lt.s32.totalorder %s639, 11
      %s641 = scalar_select %p640, %s639, 11
      %s642 = smul.addr %s641, 8
      %s643 = scalar_lea.vmem %s3, %s642
      %s644 = smul.u32 12, %s32
      %s645 = smul.u32 12, %s32
      %p646 = scmp.lt.s32.totalorder %s645, 11
      %s647 = scalar_select %p646, %s645, 11
      %s648 = smul.addr %s647, 8
      %s649 = scalar_lea.vmem %s4, %s648
      %s650 = smul.u32 12, %s32
      %p651 = scmp.lt.s32.totalorder %s31, 1
      %s652 = scalar_select %p651, %s31, 1
      %s653 = smul.addr %s652, 2
      %s654 = smul.addr %s653, 8
      %s655 = scalar_lea.vmem %s5, %s654
      %p656 = scmp.lt.s32.totalorder %s31, 1
      %s657 = scalar_select %p656, %s31, 1
      %s658 = smul.addr %s657, 2
      %s659 = smul.addr %s658, 8
      %s660 = scalar_lea.vmem %s6, %s659
      %s661 = smul.u32 12, %s32
      %p662 = scmp.lt.s32.totalorder %s31, 1
      %s663 = scalar_select %p662, %s31, 1
      %p664 = scmp.lt.s32.totalorder %s661, 11
      %s665 = scalar_select %p664, %s661, 11
      %s666 = smul.addr %s663, 12
      %s667 = sadd.s32 %s665, %s666
      %s668 = smul.addr %s667, 8
      %s669 = scalar_lea.vmem %s16, %s668
      %s670 = smul.u32 12, %s32
      %p672 = scmp.eq.s32.totalorder %s32, 0
      // Predicated region
      $region85: #{decoupling_forward_pallas.2} parent=83 // pred_check
        %p673 = pneg %p672
      $region86: #{decoupling_forward_pallas.2} parent=83 // pred_check_branch
        %675 = sbr.rel (%p673) target = $region88
      $region87: #{decoupling_forward_pallas.2} parent=83 // pred_region
        %v676 = vld [vmem:[%s633] sm:$0xf]
        %v677 = vld [vmem:[%s633 + $0x4] sm:$0xf]
        %v678 = vld [vmem:[%s9] sm:$0xf]
        %v679 = vld [vmem:[%s9 + $0x4] sm:$0xf]
        %v680 = vld [vmem:[%s9 + $0x8] sm:$0xf]
        %v681 = vld [vmem:[%s9 + $0xc] sm:$0xf]
        %v682 = vld [vmem:[%s10] sm:$0x1]
        %v684 = vperm.slane %v682, 0
        %v688 = vunpack.c.l.b16 %v676
        %v689 = vunpack.c.l.b16 %v677
        %v690 = vpack.c.b16 %v689, %v688
        %v695 = vunpack.c.l.b16 %v678
        %v696 = vunpack.c.l.b16 %v679
        %v697 = vunpack.c.l.b16 %v680
        %v698 = vunpack.c.l.b16 %v681
        %v699 = vpack.c.b16 %v696, %v695
        %v700 = vpack.c.b16 %v698, %v697
        %vm703 = vcmask 261120
        %v705 = vsel %vm703, %v690, 0
        %707 = vmatpush.bf16.msra.mxu0 0
        %708 = vmatpush.bf16.msra.mxu0 0
        %709 = vmatpush.bf16.msra.mxu0 0
        %710 = vmatpush.bf16.msra.mxu0 0
        %711 = vmatpush.bf16.msra.mxu0 0
        %712 = vmatpush.bf16.msra.mxu0 0
        %713 = vmatpush.bf16.msra.mxu0 %v700
        %714 = vmatpush.bf16.msra.mxu0 %v699
        %715 = vmatmul.bf16.gmra.mxu0 %v705
        %v716 = vpop.f32.mrf.mxu0
        %v717 = vadd.f32 %v684, %v716
        %v718 = vpop.f32.mrf.mxu0
        %v719 = vadd.f32 %v684, %v718
        %720 = vdwg.mxu0
        %v721 = vld [vmem:[%s638] sm:$0xf]
        %v722 = vld [vmem:[%s638 + $0x4] sm:$0xf]
        %v723 = vld [vmem:[%s11] sm:$0xf]
        %v724 = vld [vmem:[%s11 + $0x4] sm:$0xf]
        %v725 = vld [vmem:[%s11 + $0x8] sm:$0xf]
        %v726 = vld [vmem:[%s11 + $0xc] sm:$0xf]
        %v727 = vld [vmem:[%s12] sm:$0x1]
        %v729 = vperm.slane %v727, 0
        %v733 = vunpack.c.l.b16 %v721
        %v734 = vunpack.c.l.b16 %v722
        %v735 = vpack.c.b16 %v734, %v733
        %v740 = vunpack.c.l.b16 %v723
        %v741 = vunpack.c.l.b16 %v724
        %v742 = vunpack.c.l.b16 %v725
        %v743 = vunpack.c.l.b16 %v726
        %v744 = vpack.c.b16 %v741, %v740
        %v745 = vpack.c.b16 %v743, %v742
        %v749 = vsel %vm703, %v735, 0
        %751 = vmatpush.bf16.msra.mxu0 0
        %752 = vmatpush.bf16.msra.mxu0 0
        %753 = vmatpush.bf16.msra.mxu0 0
        %754 = vmatpush.bf16.msra.mxu0 0
        %755 = vmatpush.bf16.msra.mxu0 0
        %756 = vmatpush.bf16.msra.mxu0 0
        %757 = vmatpush.bf16.msra.mxu0 %v745
        %758 = vmatpush.bf16.msra.mxu0 %v744
        %759 = vmatmul.bf16.gmra.mxu0 %v749
        %v760 = vpop.f32.mrf.mxu0
        %v761 = vadd.f32 %v729, %v760
        %v762 = vpop.f32.mrf.mxu0
        %v763 = vadd.f32 %v729, %v762
        %764 = vdwg.mxu0
        %v765 = vpack.c.bf16 %v761, %v761
        %v766 = vpack.c.bf16 %v763, %v763
        %vm767 = vcmask 257024
        %768 = vst.msk [vmem:[#allocation3] sm:$0xf] %vm767, %v765
        %769 = vst.msk [vmem:[#allocation3 + $0x4] sm:$0xf] %vm767, %v766
        %v770 = vld [vmem:[%s655] sm:$0xff]
        %v771 = vld [vmem:[%s655 + $0x8] sm:$0xff]
        %v772 = vld [vmem:[%s15] sm:$0xf]
        %vm773 = vcmask 31744
        %v775 = vsel %vm773, %v770, 0
        %v778 = vsel %vm773, %v771, 0
        %vm780 = vcmask 1043456
        %v782 = vsel %vm780, %v772, 0
        %784 = vmatpush.msra.mxu0 0.0
        %785 = vmatpush.msra.mxu0 0.0
        %786 = vmatpush.msra.mxu0 0.0
        %787 = vmatpush.msra.mxu0 0.0
        %788 = vmatpush.msra.mxu0 0.0
        %789 = vmatpush.msra.mxu0 0.0
        %790 = vmatpush.msra.mxu0 0.0
        %791 = vmatpush.msra.mxu0 0.0
        %792 = vmatpush.msra.mxu0 0.0
        %793 = vmatpush.msra.mxu0 0.0
        %794 = vmatpush.msra.mxu0 0.0
        %795 = vmatpush.msra.mxu0 0.0
        %796 = vmatpush.msra.mxu0 0.0
        %797 = vmatpush.msra.mxu0 0.0
        %798 = vmatpush.msra.mxu0 0.0
        %799 = vmatpush.msra.mxu0 %v782
        %800 = vmatmul.f32.gmra.mxu0 %v775
        %v801 = vpop.f32.mrf.mxu0
        %v802 = vadd.f32 0.0, %v801
        %803 = vmatmul.f32.gmra.mxu0 %v778
        %v804 = vpop.f32.mrf.mxu0
        %v805 = vadd.f32 0.0, %v804
        %806 = vdwg.mxu0
        %v807 = vld [vmem:[%s660] sm:$0xff]
        %v808 = vld [vmem:[%s660 + $0x8] sm:$0xff]
        %v810 = vsel %vm773, %v807, 0
        %v813 = vsel %vm773, %v808, 0
        %815 = vmatpush.msra.mxu0 0.0
        %816 = vmatpush.msra.mxu0 0.0
        %817 = vmatpush.msra.mxu0 0.0
        %818 = vmatpush.msra.mxu0 0.0
        %819 = vmatpush.msra.mxu0 0.0
        %820 = vmatpush.msra.mxu0 0.0
        %821 = vmatpush.msra.mxu0 0.0
        %822 = vmatpush.msra.mxu0 0.0
        %823 = vmatpush.msra.mxu0 0.0
        %824 = vmatpush.msra.mxu0 0.0
        %825 = vmatpush.msra.mxu0 0.0
        %826 = vmatpush.msra.mxu0 0.0
        %827 = vmatpush.msra.mxu0 0.0
        %828 = vmatpush.msra.mxu0 0.0
        %829 = vmatpush.msra.mxu0 0.0
        %830 = vmatpush.msra.mxu0 %v782
        %831 = vmatmul.f32.gmra.mxu0 %v810
        %v832 = vpop.f32.mrf.mxu0
        %v833 = vadd.f32 0.0, %v832
        %834 = vmatmul.f32.gmra.mxu0 %v813
        %v835 = vpop.f32.mrf.mxu0
        %v836 = vadd.f32 0.0, %v835
        %837 = vdwg.mxu0
        %v838 = vsub.f32 0.0, %v717
        %v839 = vsub.f32 0.0, %v719
        %842 = vrot.lane.b32.xlu0 %v838, 120
        %v843 = vpop.permute.xlu0 %842
        %844 = vrot.lane.b32.xlu0 %v839, 120
        %v845 = vpop.permute.xlu0 %844
        %850 = vrot.lane.b32.xlu0 %v717, 8
        %v851 = vpop.permute.xlu0 %850
        %852 = vrot.lane.b32.xlu0 %v719, 8
        %v853 = vpop.permute.xlu0 %852
        %vm856 = vcmask 64512
        %v857 = vsel %vm856, %v843, %v851
        %v858 = vsel %vm856, %v845, %v853
        %vm859 = vcmask 97280
        %v860 = vsel %vm859, %v857, %v851
        %v861 = vsel %vm859, %v858, %v853
        %862 = vrot.lane.b32.xlu0 %v717, 16
        %v863 = vpop.permute.xlu0 %862
        %864 = vrot.lane.b32.xlu0 %v719, 16
        %v865 = vpop.permute.xlu0 %864
        %vm868 = vcmask 130048
        %v869 = vsel %vm868, %v717, %v863
        %v870 = vsel %vm868, %v719, %v865
        %873 = vrot.lane.b32.xlu0 %v860, 16
        %v874 = vpop.permute.xlu0 %873
        %875 = vrot.lane.b32.xlu0 %v861, 16
        %v876 = vpop.permute.xlu0 %875
        %v879 = vsel %vm868, %v860, %v874
        %v880 = vsel %vm868, %v861, %v876
        %v881 = vmul.f32 %v869, %v802
        %v882 = vmul.f32 %v870, %v805
        %v883 = vmul.f32 %v879, %v833
        %v884 = vmul.f32 %v880, %v836
        %v885 = vadd.f32 %v881, %v883
        %v886 = vadd.f32 %v882, %v884
        %v887 = vpack.c.bf16 %v885, %v885
        %v888 = vpack.c.bf16 %v886, %v886
        %889 = vst.msk [vmem:[#allocation2] sm:$0xf] %vm767, %v887
        %890 = vst.msk [vmem:[#allocation2 + $0x4] sm:$0xf] %vm767, %v888
        %891 = vrot.lane.b32.xlu0 %v838, 104
        %v892 = vpop.permute.xlu0 %891
        %893 = vrot.lane.b32.xlu0 %v839, 104
        %v894 = vpop.permute.xlu0 %893
        %897 = vrot.lane.b32.xlu0 %v717, 120
        %v898 = vpop.permute.xlu0 %897
        %899 = vrot.lane.b32.xlu0 %v719, 120
        %v900 = vpop.permute.xlu0 %899
        %v903 = vsel %vm856, %v892, %v898
        %v904 = vsel %vm856, %v894, %v900
        %v905 = vsel %vm859, %v903, %v898
        %v906 = vsel %vm859, %v904, %v900
        %907 = vrot.lane.b32.xlu0 %v717, 112
        %v908 = vpop.permute.xlu0 %907
        %909 = vrot.lane.b32.xlu0 %v719, 112
        %v910 = vpop.permute.xlu0 %909
        %v913 = vsel %vm868, %v908, %v717
        %v914 = vsel %vm868, %v910, %v719
        %917 = vrot.lane.b32.xlu0 %v905, 16
        %v918 = vpop.permute.xlu0 %917
        %919 = vrot.lane.b32.xlu0 %v906, 16
        %v920 = vpop.permute.xlu0 %919
        %v923 = vsel %vm868, %v905, %v918
        %v924 = vsel %vm868, %v906, %v920
        %927 = vrot.lane.b32.xlu0 %v802, 96
        %v928 = vpop.permute.xlu0 %927
        %929 = vrot.lane.b32.xlu0 %v805, 96
        %v930 = vpop.permute.xlu0 %929
        %v933 = vmul.f32 %v913, %v928
        %v934 = vmul.f32 %v914, %v930
        %937 = vrot.lane.b32.xlu0 %v833, 96
        %v938 = vpop.permute.xlu0 %937
        %939 = vrot.lane.b32.xlu0 %v836, 96
        %v940 = vpop.permute.xlu0 %939
        %v943 = vmul.f32 %v923, %v938
        %v944 = vmul.f32 %v924, %v940
        %v945 = vadd.f32 %v933, %v943
        %v946 = vadd.f32 %v934, %v944
        %v947 = vpack.c.bf16 %v945, %v945
        %v948 = vpack.c.bf16 %v946, %v946
        %951 = vrot.lane.b32.xlu0 %v947, 32
        %v952 = vpop.permute.xlu0 %951
        %953 = vrot.lane.b32.xlu0 %v948, 32
        %v954 = vpop.permute.xlu0 %953
        %vm957 = vcmask 519424
        %958 = vst.msk [vmem:[#allocation2] sm:$0xf] %vm957, %v952
        %959 = vst.msk [vmem:[#allocation2 + $0x4] sm:$0xf] %vm957, %v954
      $region88: #{decoupling_forward_pallas.2} parent=83 // pred_fallthru
        _
      %v960 = vld [vmem:[%s627] sm:$0xf]
      %v961 = vld [vmem:[%s627 + $0x4] sm:$0xf]
      %v962 = vld [vmem:[%s627 + $0x8] sm:$0xf]
      %v963 = vld [vmem:[%s627 + $0xc] sm:$0xf]
      %v964 = vld [vmem:[%s627 + $0x10] sm:$0xf]
      %v965 = vld [vmem:[%s627 + $0x14] sm:$0xf]
      %v966 = vld [vmem:[%s627 + $0x18] sm:$0xf]
      %v967 = vld [vmem:[%s627 + $0x1c] sm:$0xf]
      %v968 = vld [vmem:[%s627 + $0x20] sm:$0xf]
      %v969 = vld [vmem:[%s627 + $0x24] sm:$0xf]
      %v970 = vld [vmem:[%s627 + $0x28] sm:$0xf]
      %v971 = vld [vmem:[%s627 + $0x2c] sm:$0xf]
      %v972 = vld [vmem:[%s7] sm:$0xf]
      %v973 = vld [vmem:[%s7 + $0x4] sm:$0xf]
      %v974 = vld [vmem:[%s7 + $0x8] sm:$0xf]
      %v975 = vld [vmem:[%s7 + $0xc] sm:$0xf]
      %v976 = vld [vmem:[%s8] sm:$0x1]
      %v978 = vperm.slane %v976, 0
      %v992 = vunpack.c.l.b16 %v960
      %v993 = vunpack.c.l.b16 %v961
      %v994 = vunpack.c.l.b16 %v962
      %v995 = vunpack.c.l.b16 %v963
      %v996 = vunpack.c.l.b16 %v964
      %v997 = vunpack.c.l.b16 %v965
      %v998 = vunpack.c.l.b16 %v966
      %v999 = vunpack.c.l.b16 %v967
      %v1000 = vunpack.c.l.b16 %v968
      %v1001 = vunpack.c.l.b16 %v969
      %v1002 = vunpack.c.l.b16 %v970
      %v1003 = vunpack.c.l.b16 %v971
      %v1004 = vpack.c.b16 %v993, %v992
      %v1005 = vpack.c.b16 %v995, %v994
      %v1006 = vpack.c.b16 %v997, %v996
      %v1007 = vpack.c.b16 %v999, %v998
      %v1008 = vpack.c.b16 %v1001, %v1000
      %v1009 = vpack.c.b16 %v1003, %v1002
      %v1014 = vunpack.c.l.b16 %v972
      %v1015 = vunpack.c.l.b16 %v973
      %v1016 = vunpack.c.l.b16 %v974
      %v1017 = vunpack.c.l.b16 %v975
      %v1018 = vpack.c.b16 %v1015, %v1014
      %v1019 = vpack.c.b16 %v1017, %v1016
      %vm1022 = vcmask 261120
      %v1024 = vsel %vm1022, %v1004, 0
      %v1027 = vsel %vm1022, %v1005, 0
      %v1030 = vsel %vm1022, %v1006, 0
      %v1033 = vsel %vm1022, %v1007, 0
      %v1036 = vsel %vm1022, %v1008, 0
      %v1039 = vsel %vm1022, %v1009, 0
      %1041 = vmatpush.bf16.msra.mxu0 0
      %1042 = vmatpush.bf16.msra.mxu0 0
      %1043 = vmatpush.bf16.msra.mxu0 0
      %1044 = vmatpush.bf16.msra.mxu0 0
      %1045 = vmatpush.bf16.msra.mxu0 0
      %1046 = vmatpush.bf16.msra.mxu0 0
      %1047 = vmatpush.bf16.msra.mxu0 %v1019
      %1048 = vmatpush.bf16.msra.mxu0 %v1018
      %1049 = vmatmul.bf16.gmra.mxu0 %v1024
      %v1050 = vpop.f32.mrf.mxu0
      %v1051 = vadd.f32 %v978, %v1050
      %v1052 = vpop.f32.mrf.mxu0
      %v1053 = vadd.f32 %v978, %v1052
      %1054 = vmatmul.bf16.gmra.mxu0 %v1027
      %v1055 = vpop.f32.mrf.mxu0
      %v1056 = vadd.f32 %v978, %v1055
      %v1057 = vpop.f32.mrf.mxu0
      %v1058 = vadd.f32 %v978, %v1057
      %1059 = vmatmul.bf16.gmra.mxu0 %v1030
      %v1060 = vpop.f32.mrf.mxu0
      %v1061 = vadd.f32 %v978, %v1060
      %v1062 = vpop.f32.mrf.mxu0
      %v1063 = vadd.f32 %v978, %v1062
      %1064 = vmatmul.bf16.gmra.mxu0 %v1033
      %v1065 = vpop.f32.mrf.mxu0
      %v1066 = vadd.f32 %v978, %v1065
      %v1067 = vpop.f32.mrf.mxu0
      %v1068 = vadd.f32 %v978, %v1067
      %1069 = vmatmul.bf16.gmra.mxu0 %v1036
      %v1070 = vpop.f32.mrf.mxu0
      %v1071 = vadd.f32 %v978, %v1070
      %v1072 = vpop.f32.mrf.mxu0
      %v1073 = vadd.f32 %v978, %v1072
      %1074 = vmatmul.bf16.gmra.mxu0 %v1039
      %v1075 = vpop.f32.mrf.mxu0
      %v1076 = vadd.f32 %v978, %v1075
      %v1077 = vpop.f32.mrf.mxu0
      %v1078 = vadd.f32 %v978, %v1077
      %1079 = vdwg.mxu0
      %v1080 = vld [vmem:[%s643] sm:$0xff]
      %v1081 = vld [vmem:[%s643 + $0x8] sm:$0xff]
      %v1082 = vld [vmem:[%s643 + $0x10] sm:$0xff]
      %v1083 = vld [vmem:[%s643 + $0x18] sm:$0xff]
      %v1084 = vld [vmem:[%s643 + $0x20] sm:$0xff]
      %v1085 = vld [vmem:[%s643 + $0x28] sm:$0xff]
      %v1086 = vld [vmem:[%s643 + $0x30] sm:$0xff]
      %v1087 = vld [vmem:[%s643 + $0x38] sm:$0xff]
      %v1088 = vld [vmem:[%s643 + $0x40] sm:$0xff]
      %v1089 = vld [vmem:[%s643 + $0x48] sm:$0xff]
      %v1090 = vld [vmem:[%s643 + $0x50] sm:$0xff]
      %v1091 = vld [vmem:[%s643 + $0x58] sm:$0xff]
      %v1092 = vld [vmem:[%s15] sm:$0xf]
      %vm1093 = vcmask 31744
      %v1095 = vsel %vm1093, %v1080, 0
      %v1098 = vsel %vm1093, %v1081, 0
      %v1101 = vsel %vm1093, %v1082, 0
      %v1104 = vsel %vm1093, %v1083, 0
      %v1107 = vsel %vm1093, %v1084, 0
      %v1110 = vsel %vm1093, %v1085, 0
      %v1113 = vsel %vm1093, %v1086, 0
      %v1116 = vsel %vm1093, %v1087, 0
      %v1119 = vsel %vm1093, %v1088, 0
      %v1122 = vsel %vm1093, %v1089, 0
      %v1125 = vsel %vm1093, %v1090, 0
      %v1128 = vsel %vm1093, %v1091, 0
      %vm1130 = vcmask 1043456
      %v1132 = vsel %vm1130, %v1092, 0
      %1134 = vmatpush.msra.mxu0 0.0
      %1135 = vmatpush.msra.mxu0 0.0
      %1136 = vmatpush.msra.mxu0 0.0
      %1137 = vmatpush.msra.mxu0 0.0
      %1138 = vmatpush.msra.mxu0 0.0
      %1139 = vmatpush.msra.mxu0 0.0
      %1140 = vmatpush.msra.mxu0 0.0
      %1141 = vmatpush.msra.mxu0 0.0
      %1142 = vmatpush.msra.mxu0 0.0
      %1143 = vmatpush.msra.mxu0 0.0
      %1144 = vmatpush.msra.mxu0 0.0
      %1145 = vmatpush.msra.mxu0 0.0
      %1146 = vmatpush.msra.mxu0 0.0
      %1147 = vmatpush.msra.mxu0 0.0
      %1148 = vmatpush.msra.mxu0 0.0
      %1149 = vmatpush.msra.mxu0 %v1132
      %1150 = vmatmul.f32.gmra.mxu0 %v1095
      %v1151 = vpop.f32.mrf.mxu0
      %v1152 = vadd.f32 0.0, %v1151
      %1153 = vmatmul.f32.gmra.mxu0 %v1098
      %v1154 = vpop.f32.mrf.mxu0
      %v1155 = vadd.f32 0.0, %v1154
      %1156 = vmatmul.f32.gmra.mxu0 %v1101
      %v1157 = vpop.f32.mrf.mxu0
      %v1158 = vadd.f32 0.0, %v1157
      %1159 = vmatmul.f32.gmra.mxu0 %v1104
      %v1160 = vpop.f32.mrf.mxu0
      %v1161 = vadd.f32 0.0, %v1160
      %1162 = vmatmul.f32.gmra.mxu0 %v1107
      %v1163 = vpop.f32.mrf.mxu0
      %v1164 = vadd.f32 0.0, %v1163
      %1165 = vmatmul.f32.gmra.mxu0 %v1110
      %v1166 = vpop.f32.mrf.mxu0
      %v1167 = vadd.f32 0.0, %v1166
      %1168 = vmatmul.f32.gmra.mxu0 %v1113
      %v1169 = vpop.f32.mrf.mxu0
      %v1170 = vadd.f32 0.0, %v1169
      %1171 = vmatmul.f32.gmra.mxu0 %v1116
      %v1172 = vpop.f32.mrf.mxu0
      %v1173 = vadd.f32 0.0, %v1172
      %1174 = vmatmul.f32.gmra.mxu0 %v1119
      %v1175 = vpop.f32.mrf.mxu0
      %v1176 = vadd.f32 0.0, %v1175
      %1177 = vmatmul.f32.gmra.mxu0 %v1122
      %v1178 = vpop.f32.mrf.mxu0
      %v1179 = vadd.f32 0.0, %v1178
      %1180 = vmatmul.f32.gmra.mxu0 %v1125
      %v1181 = vpop.f32.mrf.mxu0
      %v1182 = vadd.f32 0.0, %v1181
      %1183 = vmatmul.f32.gmra.mxu0 %v1128
      %v1184 = vpop.f32.mrf.mxu0
      %v1185 = vadd.f32 0.0, %v1184
      %1186 = vdwg.mxu0
      %v1187 = vld [vmem:[%s649] sm:$0xff]
      %v1188 = vld [vmem:[%s649 + $0x8] sm:$0xff]
      %v1189 = vld [vmem:[%s649 + $0x10] sm:$0xff]
      %v1190 = vld [vmem:[%s649 + $0x18] sm:$0xff]
      %v1191 = vld [vmem:[%s649 + $0x20] sm:$0xff]
      %v1192 = vld [vmem:[%s649 + $0x28] sm:$0xff]
      %v1193 = vld [vmem:[%s649 + $0x30] sm:$0xff]
      %v1194 = vld [vmem:[%s649 + $0x38] sm:$0xff]
      %v1195 = vld [vmem:[%s649 + $0x40] sm:$0xff]
      %v1196 = vld [vmem:[%s649 + $0x48] sm:$0xff]
      %v1197 = vld [vmem:[%s649 + $0x50] sm:$0xff]
      %v1198 = vld [vmem:[%s649 + $0x58] sm:$0xff]
      %v1200 = vsel %vm1093, %v1187, 0
      %v1203 = vsel %vm1093, %v1188, 0
      %v1206 = vsel %vm1093, %v1189, 0
      %v1209 = vsel %vm1093, %v1190, 0
      %v1212 = vsel %vm1093, %v1191, 0
      %v1215 = vsel %vm1093, %v1192, 0
      %v1218 = vsel %vm1093, %v1193, 0
      %v1221 = vsel %vm1093, %v1194, 0
      %v1224 = vsel %vm1093, %v1195, 0
      %v1227 = vsel %vm1093, %v1196, 0
      %v1230 = vsel %vm1093, %v1197, 0
      %v1233 = vsel %vm1093, %v1198, 0
      %1235 = vmatpush.msra.mxu0 0.0
      %1236 = vmatpush.msra.mxu0 0.0
      %1237 = vmatpush.msra.mxu0 0.0
      %1238 = vmatpush.msra.mxu0 0.0
      %1239 = vmatpush.msra.mxu0 0.0
      %1240 = vmatpush.msra.mxu0 0.0
      %1241 = vmatpush.msra.mxu0 0.0
      %1242 = vmatpush.msra.mxu0 0.0
      %1243 = vmatpush.msra.mxu0 0.0
      %1244 = vmatpush.msra.mxu0 0.0
      %1245 = vmatpush.msra.mxu0 0.0
      %1246 = vmatpush.msra.mxu0 0.0
      %1247 = vmatpush.msra.mxu0 0.0
      %1248 = vmatpush.msra.mxu0 0.0
      %1249 = vmatpush.msra.mxu0 0.0
      %1250 = vmatpush.msra.mxu0 %v1132
      %1251 = vmatmul.f32.gmra.mxu0 %v1200
      %v1252 = vpop.f32.mrf.mxu0
      %v1253 = vadd.f32 0.0, %v1252
      %1254 = vmatmul.f32.gmra.mxu0 %v1203
      %v1255 = vpop.f32.mrf.mxu0
      %v1256 = vadd.f32 0.0, %v1255
      %1257 = vmatmul.f32.gmra.mxu0 %v1206
      %v1258 = vpop.f32.mrf.mxu0
      %v1259 = vadd.f32 0.0, %v1258
      %1260 = vmatmul.f32.gmra.mxu0 %v1209
      %v1261 = vpop.f32.mrf.mxu0
      %v1262 = vadd.f32 0.0, %v1261
      %1263 = vmatmul.f32.gmra.mxu0 %v1212
      %v1264 = vpop.f32.mrf.mxu0
      %v1265 = vadd.f32 0.0, %v1264
      %1266 = vmatmul.f32.gmra.mxu0 %v1215
      %v1267 = vpop.f32.mrf.mxu0
      %v1268 = vadd.f32 0.0, %v1267
      %1269 = vmatmul.f32.gmra.mxu0 %v1218
      %v1270 = vpop.f32.mrf.mxu0
      %v1271 = vadd.f32 0.0, %v1270
      %1272 = vmatmul.f32.gmra.mxu0 %v1221
      %v1273 = vpop.f32.mrf.mxu0
      %v1274 = vadd.f32 0.0, %v1273
      %1275 = vmatmul.f32.gmra.mxu0 %v1224
      %v1276 = vpop.f32.mrf.mxu0
      %v1277 = vadd.f32 0.0, %v1276
      %1278 = vmatmul.f32.gmra.mxu0 %v1227
      %v1279 = vpop.f32.mrf.mxu0
      %v1280 = vadd.f32 0.0, %v1279
      %1281 = vmatmul.f32.gmra.mxu0 %v1230
      %v1282 = vpop.f32.mrf.mxu0
      %v1283 = vadd.f32 0.0, %v1282
      %1284 = vmatmul.f32.gmra.mxu0 %v1233
      %v1285 = vpop.f32.mrf.mxu0
      %v1286 = vadd.f32 0.0, %v1285
      %1287 = vdwg.mxu0
      %v1288 = vsub.f32 0.0, %v1051
      %v1289 = vsub.f32 0.0, %v1053
      %v1290 = vsub.f32 0.0, %v1056
      %v1291 = vsub.f32 0.0, %v1058
      %v1292 = vsub.f32 0.0, %v1061
      %v1293 = vsub.f32 0.0, %v1063
      %v1294 = vsub.f32 0.0, %v1066
      %v1295 = vsub.f32 0.0, %v1068
      %v1296 = vsub.f32 0.0, %v1071
      %v1297 = vsub.f32 0.0, %v1073
      %v1298 = vsub.f32 0.0, %v1076
      %v1299 = vsub.f32 0.0, %v1078
      %1312 = vrot.lane.b32.xlu0 %v1288, 124
      %v1313 = vpop.permute.xlu0 %1312
      %1314 = vrot.lane.b32.xlu0 %v1289, 124
      %v1315 = vpop.permute.xlu0 %1314
      %1316 = vrot.lane.b32.xlu0 %v1290, 124
      %v1317 = vpop.permute.xlu0 %1316
      %1318 = vrot.lane.b32.xlu0 %v1291, 124
      %v1319 = vpop.permute.xlu0 %1318
      %1320 = vrot.lane.b32.xlu0 %v1292, 124
      %v1321 = vpop.permute.xlu0 %1320
      %1322 = vrot.lane.b32.xlu0 %v1293, 124
      %v1323 = vpop.permute.xlu0 %1322
      %1324 = vrot.lane.b32.xlu0 %v1294, 124
      %v1325 = vpop.permute.xlu0 %1324
      %1326 = vrot.lane.b32.xlu0 %v1295, 124
      %v1327 = vpop.permute.xlu0 %1326
      %1328 = vrot.lane.b32.xlu0 %v1296, 124
      %v1329 = vpop.permute.xlu0 %1328
      %1330 = vrot.lane.b32.xlu0 %v1297, 124
      %v1331 = vpop.permute.xlu0 %1330
      %1332 = vrot.lane.b32.xlu0 %v1298, 124
      %v1333 = vpop.permute.xlu0 %1332
      %1334 = vrot.lane.b32.xlu0 %v1299, 124
      %v1335 = vpop.permute.xlu0 %1334
      %1360 = vrot.lane.b32.xlu0 %v1051, 4
      %v1361 = vpop.permute.xlu0 %1360
      %1362 = vrot.lane.b32.xlu0 %v1053, 4
      %v1363 = vpop.permute.xlu0 %1362
      %1364 = vrot.lane.b32.xlu0 %v1056, 4
      %v1365 = vpop.permute.xlu0 %1364
      %1366 = vrot.lane.b32.xlu0 %v1058, 4
      %v1367 = vpop.permute.xlu0 %1366
      %1368 = vrot.lane.b32.xlu0 %v1061, 4
      %v1369 = vpop.permute.xlu0 %1368
      %1370 = vrot.lane.b32.xlu0 %v1063, 4
      %v1371 = vpop.permute.xlu0 %1370
      %1372 = vrot.lane.b32.xlu0 %v1066, 4
      %v1373 = vpop.permute.xlu0 %1372
      %1374 = vrot.lane.b32.xlu0 %v1068, 4
      %v1375 = vpop.permute.xlu0 %1374
      %1376 = vrot.lane.b32.xlu0 %v1071, 4
      %v1377 = vpop.permute.xlu0 %1376
      %1378 = vrot.lane.b32.xlu0 %v1073, 4
      %v1379 = vpop.permute.xlu0 %1378
      %1380 = vrot.lane.b32.xlu0 %v1076, 4
      %v1381 = vpop.permute.xlu0 %1380
      %1382 = vrot.lane.b32.xlu0 %v1078, 4
      %v1383 = vpop.permute.xlu0 %1382
      %1396 = vrot.lane.b32.xlu0 %v1051, 124
      %v1397 = vpop.permute.xlu0 %1396
      %1398 = vrot.lane.b32.xlu0 %v1053, 124
      %v1399 = vpop.permute.xlu0 %1398
      %1400 = vrot.lane.b32.xlu0 %v1056, 124
      %v1401 = vpop.permute.xlu0 %1400
      %1402 = vrot.lane.b32.xlu0 %v1058, 124
      %v1403 = vpop.permute.xlu0 %1402
      %1404 = vrot.lane.b32.xlu0 %v1061, 124
      %v1405 = vpop.permute.xlu0 %1404
      %1406 = vrot.lane.b32.xlu0 %v1063, 124
      %v1407 = vpop.permute.xlu0 %1406
      %1408 = vrot.lane.b32.xlu0 %v1066, 124
      %v1409 = vpop.permute.xlu0 %1408
      %1410 = vrot.lane.b32.xlu0 %v1068, 124
      %v1411 = vpop.permute.xlu0 %1410
      %1412 = vrot.lane.b32.xlu0 %v1071, 124
      %v1413 = vpop.permute.xlu0 %1412
      %1414 = vrot.lane.b32.xlu0 %v1073, 124
      %v1415 = vpop.permute.xlu0 %1414
      %1416 = vrot.lane.b32.xlu0 %v1076, 124
      %v1417 = vpop.permute.xlu0 %1416
      %1418 = vrot.lane.b32.xlu0 %v1078, 124
      %v1419 = vpop.permute.xlu0 %1418
      %1432 = vrot.lane.b32.xlu0 %v1288, 4
      %v1433 = vpop.permute.xlu0 %1432
      %1434 = vrot.lane.b32.xlu0 %v1289, 4
      %v1435 = vpop.permute.xlu0 %1434
      %1436 = vrot.lane.b32.xlu0 %v1290, 4
      %v1437 = vpop.permute.xlu0 %1436
      %1438 = vrot.lane.b32.xlu0 %v1291, 4
      %v1439 = vpop.permute.xlu0 %1438
      %1440 = vrot.lane.b32.xlu0 %v1292, 4
      %v1441 = vpop.permute.xlu0 %1440
      %1442 = vrot.lane.b32.xlu0 %v1293, 4
      %v1443 = vpop.permute.xlu0 %1442
      %1444 = vrot.lane.b32.xlu0 %v1294, 4
      %v1445 = vpop.permute.xlu0 %1444
      %1446 = vrot.lane.b32.xlu0 %v1295, 4
      %v1447 = vpop.permute.xlu0 %1446
      %1448 = vrot.lane.b32.xlu0 %v1296, 4
      %v1449 = vpop.permute.xlu0 %1448
      %1450 = vrot.lane.b32.xlu0 %v1297, 4
      %v1451 = vpop.permute.xlu0 %1450
      %1452 = vrot.lane.b32.xlu0 %v1298, 4
      %v1453 = vpop.permute.xlu0 %1452
      %1454 = vrot.lane.b32.xlu0 %v1299, 4
      %v1455 = vpop.permute.xlu0 %1454
      %v1468 = vsel %vm1093, %v1313, %v1361
      %v1469 = vsel %vm1093, %v1315, %v1363
      %v1470 = vsel %vm1093, %v1317, %v1365
      %v1471 = vsel %vm1093, %v1319, %v1367
      %v1472 = vsel %vm1093, %v1321, %v1369
      %v1473 = vsel %vm1093, %v1323, %v1371
      %v1474 = vsel %vm1093, %v1325, %v1373
      %v1475 = vsel %vm1093, %v1327, %v1375
      %v1476 = vsel %vm1093, %v1329, %v1377
      %v1477 = vsel %vm1093, %v1331, %v1379
      %v1478 = vsel %vm1093, %v1333, %v1381
      %v1479 = vsel %vm1093, %v1335, %v1383
      %vm1480 = vcmask 64512
      %v1481 = vsel %vm1480, %v1468, %v1397
      %v1482 = vsel %vm1480, %v1469, %v1399
      %v1483 = vsel %vm1480, %v1470, %v1401
      %v1484 = vsel %vm1480, %v1471, %v1403
      %v1485 = vsel %vm1480, %v1472, %v1405
      %v1486 = vsel %vm1480, %v1473, %v1407
      %v1487 = vsel %vm1480, %v1474, %v1409
      %v1488 = vsel %vm1480, %v1475, %v1411
      %v1489 = vsel %vm1480, %v1476, %v1413
      %v1490 = vsel %vm1480, %v1477, %v1415
      %v1491 = vsel %vm1480, %v1478, %v1417
      %v1492 = vsel %vm1480, %v1479, %v1419
      %vm1493 = vcmask 97280
      %v1494 = vsel %vm1493, %v1481, %v1433
      %v1495 = vsel %vm1493, %v1482, %v1435
      %v1496 = vsel %vm1493, %v1483, %v1437
      %v1497 = vsel %vm1493, %v1484, %v1439
      %v1498 = vsel %vm1493, %v1485, %v1441
      %v1499 = vsel %vm1493, %v1486, %v1443
      %v1500 = vsel %vm1493, %v1487, %v1445
      %v1501 = vsel %vm1493, %v1488, %v1447
      %v1502 = vsel %vm1493, %v1489, %v1449
      %v1503 = vsel %vm1493, %v1490, %v1451
      %v1504 = vsel %vm1493, %v1491, %v1453
      %v1505 = vsel %vm1493, %v1492, %v1455
      %1506 = vrot.lane.b32.xlu0 %v1051, 16
      %v1507 = vpop.permute.xlu0 %1506
      %1508 = vrot.lane.b32.xlu0 %v1053, 16
      %v1509 = vpop.permute.xlu0 %1508
      %1510 = vrot.lane.b32.xlu0 %v1056, 16
      %v1511 = vpop.permute.xlu0 %1510
      %1512 = vrot.lane.b32.xlu0 %v1058, 16
      %v1513 = vpop.permute.xlu0 %1512
      %1514 = vrot.lane.b32.xlu0 %v1061, 16
      %v1515 = vpop.permute.xlu0 %1514
      %1516 = vrot.lane.b32.xlu0 %v1063, 16
      %v1517 = vpop.permute.xlu0 %1516
      %1518 = vrot.lane.b32.xlu0 %v1066, 16
      %v1519 = vpop.permute.xlu0 %1518
      %1520 = vrot.lane.b32.xlu0 %v1068, 16
      %v1521 = vpop.permute.xlu0 %1520
      %1522 = vrot.lane.b32.xlu0 %v1071, 16
      %v1523 = vpop.permute.xlu0 %1522
      %1524 = vrot.lane.b32.xlu0 %v1073, 16
      %v1525 = vpop.permute.xlu0 %1524
      %1526 = vrot.lane.b32.xlu0 %v1076, 16
      %v1527 = vpop.permute.xlu0 %1526
      %1528 = vrot.lane.b32.xlu0 %v1078, 16
      %v1529 = vpop.permute.xlu0 %1528
      %vm1542 = vcmask 130048
      %v1543 = vsel %vm1542, %v1051, %v1507
      %v1544 = vsel %vm1542, %v1053, %v1509
      %v1545 = vsel %vm1542, %v1056, %v1511
      %v1546 = vsel %vm1542, %v1058, %v1513
      %v1547 = vsel %vm1542, %v1061, %v1515
      %v1548 = vsel %vm1542, %v1063, %v1517
      %v1549 = vsel %vm1542, %v1066, %v1519
      %v1550 = vsel %vm1542, %v1068, %v1521
      %v1551 = vsel %vm1542, %v1071, %v1523
      %v1552 = vsel %vm1542, %v1073, %v1525
      %v1553 = vsel %vm1542, %v1076, %v1527
      %v1554 = vsel %vm1542, %v1078, %v1529
      %1567 = vrot.lane.b32.xlu0 %v1494, 16
      %v1568 = vpop.permute.xlu0 %1567
      %1569 = vrot.lane.b32.xlu0 %v1495, 16
      %v1570 = vpop.permute.xlu0 %1569
      %1571 = vrot.lane.b32.xlu0 %v1496, 16
      %v1572 = vpop.permute.xlu0 %1571
      %1573 = vrot.lane.b32.xlu0 %v1497, 16
      %v1574 = vpop.permute.xlu0 %1573
      %1575 = vrot.lane.b32.xlu0 %v1498, 16
      %v1576 = vpop.permute.xlu0 %1575
      %1577 = vrot.lane.b32.xlu0 %v1499, 16
      %v1578 = vpop.permute.xlu0 %1577
      %1579 = vrot.lane.b32.xlu0 %v1500, 16
      %v1580 = vpop.permute.xlu0 %1579
      %1581 = vrot.lane.b32.xlu0 %v1501, 16
      %v1582 = vpop.permute.xlu0 %1581
      %1583 = vrot.lane.b32.xlu0 %v1502, 16
      %v1584 = vpop.permute.xlu0 %1583
      %1585 = vrot.lane.b32.xlu0 %v1503, 16
      %v1586 = vpop.permute.xlu0 %1585
      %1587 = vrot.lane.b32.xlu0 %v1504, 16
      %v1588 = vpop.permute.xlu0 %1587
      %1589 = vrot.lane.b32.xlu0 %v1505, 16
      %v1590 = vpop.permute.xlu0 %1589
      %v1603 = vsel %vm1542, %v1494, %v1568
      %v1604 = vsel %vm1542, %v1495, %v1570
      %v1605 = vsel %vm1542, %v1496, %v1572
      %v1606 = vsel %vm1542, %v1497, %v1574
      %v1607 = vsel %vm1542, %v1498, %v1576
      %v1608 = vsel %vm1542, %v1499, %v1578
      %v1609 = vsel %vm1542, %v1500, %v1580
      %v1610 = vsel %vm1542, %v1501, %v1582
      %v1611 = vsel %vm1542, %v1502, %v1584
      %v1612 = vsel %vm1542, %v1503, %v1586
      %v1613 = vsel %vm1542, %v1504, %v1588
      %v1614 = vsel %vm1542, %v1505, %v1590
      %v1615 = vmul.f32 %v1543, %v1152
      %v1616 = vmul.f32 %v1544, %v1155
      %v1617 = vmul.f32 %v1545, %v1158
      %v1618 = vmul.f32 %v1546, %v1161
      %v1619 = vmul.f32 %v1547, %v1164
      %v1620 = vmul.f32 %v1548, %v1167
      %v1621 = vmul.f32 %v1549, %v1170
      %v1622 = vmul.f32 %v1550, %v1173
      %v1623 = vmul.f32 %v1551, %v1176
      %v1624 = vmul.f32 %v1552, %v1179
      %v1625 = vmul.f32 %v1553, %v1182
      %v1626 = vmul.f32 %v1554, %v1185
      %v1627 = vmul.f32 %v1603, %v1253
      %v1628 = vmul.f32 %v1604, %v1256
      %v1629 = vmul.f32 %v1605, %v1259
      %v1630 = vmul.f32 %v1606, %v1262
      %v1631 = vmul.f32 %v1607, %v1265
      %v1632 = vmul.f32 %v1608, %v1268
      %v1633 = vmul.f32 %v1609, %v1271
      %v1634 = vmul.f32 %v1610, %v1274
      %v1635 = vmul.f32 %v1611, %v1277
      %v1636 = vmul.f32 %v1612, %v1280
      %v1637 = vmul.f32 %v1613, %v1283
      %v1638 = vmul.f32 %v1614, %v1286
      %v1639 = vadd.f32 %v1615, %v1627
      %v1640 = vadd.f32 %v1616, %v1628
      %v1641 = vadd.f32 %v1617, %v1629
      %v1642 = vadd.f32 %v1618, %v1630
      %v1643 = vadd.f32 %v1619, %v1631
      %v1644 = vadd.f32 %v1620, %v1632
      %v1645 = vadd.f32 %v1621, %v1633
      %v1646 = vadd.f32 %v1622, %v1634
      %v1647 = vadd.f32 %v1623, %v1635
      %v1648 = vadd.f32 %v1624, %v1636
      %v1649 = vadd.f32 %v1625, %v1637
      %v1650 = vadd.f32 %v1626, %v1638
      %v1651 = vpack.c.bf16 %v1640, %v1639
      %v1652 = vpack.c.bf16 %v1642, %v1641
      %v1653 = vpack.c.bf16 %v1644, %v1643
      %v1654 = vpack.c.bf16 %v1646, %v1645
      %v1655 = vpack.c.bf16 %v1648, %v1647
      %v1656 = vpack.c.bf16 %v1650, %v1649
      %v1657 = vld [vmem:[#allocation2] sm:$0xf]
      %v1658 = vld [vmem:[#allocation2 + $0x4] sm:$0xf]
      %v1661 = vunpack.c.l.b16 %v1657
      %v1662 = vunpack.c.l.b16 %v1658
      %v1663 = vpack.c.b16 %v1662, %v1661
      %v1665 = vsel %vm1022, %v1651, 0
      %v1668 = vsel %vm1022, %v1652, 0
      %v1671 = vsel %vm1022, %v1653, 0
      %v1674 = vsel %vm1022, %v1654, 0
      %v1677 = vsel %vm1022, %v1655, 0
      %v1680 = vsel %vm1022, %v1656, 0
      %v1683 = vsel %vm1022, %v1663, 0
      %1685 = vmatpush.bf16.xpose.msra.mxu0 0
      %1686 = vmatpush.bf16.xpose.msra.mxu0 0
      %1687 = vmatpush.bf16.xpose.msra.mxu0 0
      %1688 = vmatpush.bf16.xpose.msra.mxu0 0
      %1689 = vmatpush.bf16.xpose.msra.mxu0 0
      %1690 = vmatpush.bf16.xpose.msra.mxu0 0
      %1691 = vmatpush.bf16.xpose.msra.mxu0 0
      %1692 = vmatpush.bf16.xpose.msra.mxu0 %v1683
      %1693 = vmatmul.bf16.gmra.mxu0 %v1665
      %v1694 = vpop.f32.mrf.mxu0
      %v1695 = vadd.f32 0.0, %v1694
      %v1696 = vpop.f32.mrf.mxu0
      %v1697 = vadd.f32 0.0, %v1696
      %1698 = vmatmul.bf16.gmra.mxu0 %v1668
      %v1699 = vpop.f32.mrf.mxu0
      %v1700 = vadd.f32 0.0, %v1699
      %v1701 = vpop.f32.mrf.mxu0
      %v1702 = vadd.f32 0.0, %v1701
      %1703 = vmatmul.bf16.gmra.mxu0 %v1671
      %v1704 = vpop.f32.mrf.mxu0
      %v1705 = vadd.f32 0.0, %v1704
      %v1706 = vpop.f32.mrf.mxu0
      %v1707 = vadd.f32 0.0, %v1706
      %1708 = vmatmul.bf16.gmra.mxu0 %v1674
      %v1709 = vpop.f32.mrf.mxu0
      %v1710 = vadd.f32 0.0, %v1709
      %v1711 = vpop.f32.mrf.mxu0
      %v1712 = vadd.f32 0.0, %v1711
      %1713 = vmatmul.bf16.gmra.mxu0 %v1677
      %v1714 = vpop.f32.mrf.mxu0
      %v1715 = vadd.f32 0.0, %v1714
      %v1716 = vpop.f32.mrf.mxu0
      %v1717 = vadd.f32 0.0, %v1716
      %1718 = vmatmul.bf16.gmra.mxu0 %v1680
      %v1719 = vpop.f32.mrf.mxu0
      %v1720 = vadd.f32 0.0, %v1719
      %v1721 = vpop.f32.mrf.mxu0
      %v1722 = vadd.f32 0.0, %v1721
      %1723 = vdwg.mxu0
      %v1724 = vmul.f32 %v1695, 0.125
      %v1725 = vmul.f32 %v1697, 0.125
      %v1726 = vmul.f32 %v1700, 0.125
      %v1727 = vmul.f32 %v1702, 0.125
      %v1728 = vmul.f32 %v1705, 0.125
      %v1729 = vmul.f32 %v1707, 0.125
      %v1730 = vmul.f32 %v1710, 0.125
      %v1731 = vmul.f32 %v1712, 0.125
      %v1732 = vmul.f32 %v1715, 0.125
      %v1733 = vmul.f32 %v1717, 0.125
      %v1734 = vmul.f32 %v1720, 0.125
      %v1735 = vmul.f32 %v1722, 0.125
      %v1736 = vsel %vm1542, %v1724, -inf
      %1737 = vmax.xlane.f32.xlu0 %v1736
      %v1738 = vpop.xlane.xlu0 %1737
      %v1739 = vsel %vm1542, %v1725, -inf
      %1740 = vmax.xlane.f32.xlu0 %v1739
      %v1741 = vpop.xlane.xlu0 %1740
      %v1742 = vsel %vm1542, %v1726, -inf
      %1743 = vmax.xlane.f32.xlu0 %v1742
      %v1744 = vpop.xlane.xlu0 %1743
      %v1745 = vsel %vm1542, %v1727, -inf
      %1746 = vmax.xlane.f32.xlu0 %v1745
      %v1747 = vpop.xlane.xlu0 %1746
      %v1748 = vsel %vm1542, %v1728, -inf
      %1749 = vmax.xlane.f32.xlu0 %v1748
      %v1750 = vpop.xlane.xlu0 %1749
      %v1751 = vsel %vm1542, %v1729, -inf
      %1752 = vmax.xlane.f32.xlu0 %v1751
      %v1753 = vpop.xlane.xlu0 %1752
      %v1754 = vsel %vm1542, %v1730, -inf
      %1755 = vmax.xlane.f32.xlu0 %v1754
      %v1756 = vpop.xlane.xlu0 %1755
      %v1757 = vsel %vm1542, %v1731, -inf
      %1758 = vmax.xlane.f32.xlu0 %v1757
      %v1759 = vpop.xlane.xlu0 %1758
      %v1760 = vsel %vm1542, %v1732, -inf
      %1761 = vmax.xlane.f32.xlu0 %v1760
      %v1762 = vpop.xlane.xlu0 %1761
      %v1763 = vsel %vm1542, %v1733, -inf
      %1764 = vmax.xlane.f32.xlu0 %v1763
      %v1765 = vpop.xlane.xlu0 %1764
      %v1766 = vsel %vm1542, %v1734, -inf
      %1767 = vmax.xlane.f32.xlu0 %v1766
      %v1768 = vpop.xlane.xlu0 %1767
      %v1769 = vsel %vm1542, %v1735, -inf
      %1770 = vmax.xlane.f32.xlu0 %v1769
      %v1771 = vpop.xlane.xlu0 %1770
      %v1772 = vsub.f32 %v1724, %v1738
      %v1773 = vsub.f32 %v1725, %v1741
      %v1774 = vsub.f32 %v1726, %v1744
      %v1775 = vsub.f32 %v1727, %v1747
      %v1776 = vsub.f32 %v1728, %v1750
      %v1777 = vsub.f32 %v1729, %v1753
      %v1778 = vsub.f32 %v1730, %v1756
      %v1779 = vsub.f32 %v1731, %v1759
      %v1780 = vsub.f32 %v1732, %v1762
      %v1781 = vsub.f32 %v1733, %v1765
      %v1782 = vsub.f32 %v1734, %v1768
      %v1783 = vsub.f32 %v1735, %v1771
      %v1784 = vmul.f32 %v1772, 1.442695
      %v1785 = vpow.pop %v1784
      %v1786 = vmul.f32 %v1773, 1.442695
      %v1787 = vpow.pop %v1786
      %v1788 = vmul.f32 %v1774, 1.442695
      %v1789 = vpow.pop %v1788
      %v1790 = vmul.f32 %v1775, 1.442695
      %v1791 = vpow.pop %v1790
      %v1792 = vmul.f32 %v1776, 1.442695
      %v1793 = vpow.pop %v1792
      %v1794 = vmul.f32 %v1777, 1.442695
      %v1795 = vpow.pop %v1794
      %v1796 = vmul.f32 %v1778, 1.442695
      %v1797 = vpow.pop %v1796
      %v1798 = vmul.f32 %v1779, 1.442695
      %v1799 = vpow.pop %v1798
      %v1800 = vmul.f32 %v1780, 1.442695
      %v1801 = vpow.pop %v1800
      %v1802 = vmul.f32 %v1781, 1.442695
      %v1803 = vpow.pop %v1802
      %v1804 = vmul.f32 %v1782, 1.442695
      %v1805 = vpow.pop %v1804
      %v1806 = vmul.f32 %v1783, 1.442695
      %v1807 = vpow.pop %v1806
      %v1808 = vsel %vm1542, %v1785, 0.0
      %1809 = vadd.xlane.f32.xlu0 %v1808
      %v1810 = vpop.xlane.xlu0 %1809
      %v1811 = vsel %vm1542, %v1787, 0.0
      %1812 = vadd.xlane.f32.xlu0 %v1811
      %v1813 = vpop.xlane.xlu0 %1812
      %v1814 = vsel %vm1542, %v1789, 0.0
      %1815 = vadd.xlane.f32.xlu0 %v1814
      %v1816 = vpop.xlane.xlu0 %1815
      %v1817 = vsel %vm1542, %v1791, 0.0
      %1818 = vadd.xlane.f32.xlu0 %v1817
      %v1819 = vpop.xlane.xlu0 %1818
      %v1820 = vsel %vm1542, %v1793, 0.0
      %1821 = vadd.xlane.f32.xlu0 %v1820
      %v1822 = vpop.xlane.xlu0 %1821
      %v1823 = vsel %vm1542, %v1795, 0.0
      %1824 = vadd.xlane.f32.xlu0 %v1823
      %v1825 = vpop.xlane.xlu0 %1824
      %v1826 = vsel %vm1542, %v1797, 0.0
      %1827 = vadd.xlane.f32.xlu0 %v1826
      %v1828 = vpop.xlane.xlu0 %1827
      %v1829 = vsel %vm1542, %v1799, 0.0
      %1830 = vadd.xlane.f32.xlu0 %v1829
      %v1831 = vpop.xlane.xlu0 %1830
      %v1832 = vsel %vm1542, %v1801, 0.0
      %1833 = vadd.xlane.f32.xlu0 %v1832
      %v1834 = vpop.xlane.xlu0 %1833
      %v1835 = vsel %vm1542, %v1803, 0.0
      %1836 = vadd.xlane.f32.xlu0 %v1835
      %v1837 = vpop.xlane.xlu0 %1836
      %v1838 = vsel %vm1542, %v1805, 0.0
      %1839 = vadd.xlane.f32.xlu0 %v1838
      %v1840 = vpop.xlane.xlu0 %1839
      %v1841 = vsel %vm1542, %v1807, 0.0
      %1842 = vadd.xlane.f32.xlu0 %v1841
      %v1843 = vpop.xlane.xlu0 %1842
      %v1844 = vpack.c.bf16 %v1787, %v1785
      %v1845 = vpack.c.bf16 %v1791, %v1789
      %v1846 = vpack.c.bf16 %v1795, %v1793
      %v1847 = vpack.c.bf16 %v1799, %v1797
      %v1848 = vpack.c.bf16 %v1803, %v1801
      %v1849 = vpack.c.bf16 %v1807, %v1805
      %v1850 = vrcp.pop %v1810
      %v1851 = vrcp.pop %v1813
      %v1852 = vrcp.pop %v1816
      %v1853 = vrcp.pop %v1819
      %v1854 = vrcp.pop %v1822
      %v1855 = vrcp.pop %v1825
      %v1856 = vrcp.pop %v1828
      %v1857 = vrcp.pop %v1831
      %v1858 = vrcp.pop %v1834
      %v1859 = vrcp.pop %v1837
      %v1860 = vrcp.pop %v1840
      %v1861 = vrcp.pop %v1843
      %v1862 = vld [vmem:[#allocation3] sm:$0xf]
      %v1863 = vld [vmem:[#allocation3 + $0x4] sm:$0xf]
      %v1866 = vunpack.c.l.b16 %v1862
      %v1867 = vunpack.c.l.b16 %v1863
      %v1868 = vpack.c.b16 %v1867, %v1866
      %v1871 = vsel %vm1542, %v1844, 0
      %v1874 = vsel %vm1542, %v1845, 0
      %v1877 = vsel %vm1542, %v1846, 0
      %v1880 = vsel %vm1542, %v1847, 0
      %v1883 = vsel %vm1542, %v1848, 0
      %v1886 = vsel %vm1542, %v1849, 0
      %1888 = vmatpush.bf16.msra.mxu0 0
      %1889 = vmatpush.bf16.msra.mxu0 0
      %1890 = vmatpush.bf16.msra.mxu0 0
      %1891 = vmatpush.bf16.msra.mxu0 0
      %1892 = vmatpush.bf16.msra.mxu0 0
      %1893 = vmatpush.bf16.msra.mxu0 0
      %1894 = vmatpush.bf16.msra.mxu0 0
      %1895 = vmatpush.bf16.msra.mxu0 %v1868
      %1896 = vmatmul.bf16.gmra.mxu0 %v1871
      %v1897 = vpop.f32.mrf.mxu0
      %v1898 = vadd.f32 0.0, %v1897
      %v1899 = vpop.f32.mrf.mxu0
      %v1900 = vadd.f32 0.0, %v1899
      %1901 = vmatmul.bf16.gmra.mxu0 %v1874
      %v1902 = vpop.f32.mrf.mxu0
      %v1903 = vadd.f32 0.0, %v1902
      %v1904 = vpop.f32.mrf.mxu0
      %v1905 = vadd.f32 0.0, %v1904
      %1906 = vmatmul.bf16.gmra.mxu0 %v1877
      %v1907 = vpop.f32.mrf.mxu0
      %v1908 = vadd.f32 0.0, %v1907
      %v1909 = vpop.f32.mrf.mxu0
      %v1910 = vadd.f32 0.0, %v1909
      %1911 = vmatmul.bf16.gmra.mxu0 %v1880
      %v1912 = vpop.f32.mrf.mxu0
      %v1913 = vadd.f32 0.0, %v1912
      %v1914 = vpop.f32.mrf.mxu0
      %v1915 = vadd.f32 0.0, %v1914
      %1916 = vmatmul.bf16.gmra.mxu0 %v1883
      %v1917 = vpop.f32.mrf.mxu0
      %v1918 = vadd.f32 0.0, %v1917
      %v1919 = vpop.f32.mrf.mxu0
      %v1920 = vadd.f32 0.0, %v1919
      %1921 = vmatmul.bf16.gmra.mxu0 %v1886
      %v1922 = vpop.f32.mrf.mxu0
      %v1923 = vadd.f32 0.0, %v1922
      %v1924 = vpop.f32.mrf.mxu0
      %v1925 = vadd.f32 0.0, %v1924
      %1926 = vdwg.mxu0
      %v1927 = vmul.f32 %v1898, %v1850
      %v1928 = vmul.f32 %v1900, %v1851
      %v1929 = vmul.f32 %v1903, %v1852
      %v1930 = vmul.f32 %v1905, %v1853
      %v1931 = vmul.f32 %v1908, %v1854
      %v1932 = vmul.f32 %v1910, %v1855
      %v1933 = vmul.f32 %v1913, %v1856
      %v1934 = vmul.f32 %v1915, %v1857
      %v1935 = vmul.f32 %v1918, %v1858
      %v1936 = vmul.f32 %v1920, %v1859
      %v1937 = vmul.f32 %v1923, %v1860
      %v1938 = vmul.f32 %v1925, %v1861
      %v1939 = vpack.c.bf16 %v1927, %v1927
      %v1940 = vpack.c.bf16 %v1928, %v1928
      %v1941 = vpack.c.bf16 %v1929, %v1929
      %v1942 = vpack.c.bf16 %v1930, %v1930
      %v1943 = vpack.c.bf16 %v1931, %v1931
      %v1944 = vpack.c.bf16 %v1932, %v1932
      %v1945 = vpack.c.bf16 %v1933, %v1933
      %v1946 = vpack.c.bf16 %v1934, %v1934
      %v1947 = vpack.c.bf16 %v1935, %v1935
      %v1948 = vpack.c.bf16 %v1936, %v1936
      %v1949 = vpack.c.bf16 %v1937, %v1937
      %v1950 = vpack.c.bf16 %v1938, %v1938
      %vm1951 = vcmask 125952
      %1952 = vst.msk [vmem:[#allocation4] sm:$0xf] %vm1951, %v1939
      %1953 = vst.msk [vmem:[#allocation4 + $0x4] sm:$0xf] %vm1951, %v1940
      %1954 = vst.msk [vmem:[#allocation4 + $0x8] sm:$0xf] %vm1951, %v1941
      %1955 = vst.msk [vmem:[#allocation4 + $0xc] sm:$0xf] %vm1951, %v1942
      %1956 = vst.msk [vmem:[#allocation4 + $0x10] sm:$0xf] %vm1951, %v1943
      %1957 = vst.msk [vmem:[#allocation4 + $0x14] sm:$0xf] %vm1951, %v1944
      %1958 = vst.msk [vmem:[#allocation4 + $0x18] sm:$0xf] %vm1951, %v1945
      %1959 = vst.msk [vmem:[#allocation4 + $0x1c] sm:$0xf] %vm1951, %v1946
      %1960 = vst.msk [vmem:[#allocation4 + $0x20] sm:$0xf] %vm1951, %v1947
      %1961 = vst.msk [vmem:[#allocation4 + $0x24] sm:$0xf] %vm1951, %v1948
      %1962 = vst.msk [vmem:[#allocation4 + $0x28] sm:$0xf] %vm1951, %v1949
      %1963 = vst.msk [vmem:[#allocation4 + $0x2c] sm:$0xf] %vm1951, %v1950
      %1964 = vrot.lane.b32.xlu0 %v1288, 108
      %v1965 = vpop.permute.xlu0 %1964
      %1966 = vrot.lane.b32.xlu0 %v1289, 108
      %v1967 = vpop.permute.xlu0 %1966
      %1968 = vrot.lane.b32.xlu0 %v1290, 108
      %v1969 = vpop.permute.xlu0 %1968
      %1970 = vrot.lane.b32.xlu0 %v1291, 108
      %v1971 = vpop.permute.xlu0 %1970
      %1972 = vrot.lane.b32.xlu0 %v1292, 108
      %v1973 = vpop.permute.xlu0 %1972
      %1974 = vrot.lane.b32.xlu0 %v1293, 108
      %v1975 = vpop.permute.xlu0 %1974
      %1976 = vrot.lane.b32.xlu0 %v1294, 108
      %v1977 = vpop.permute.xlu0 %1976
      %1978 = vrot.lane.b32.xlu0 %v1295, 108
      %v1979 = vpop.permute.xlu0 %1978
      %1980 = vrot.lane.b32.xlu0 %v1296, 108
      %v1981 = vpop.permute.xlu0 %1980
      %1982 = vrot.lane.b32.xlu0 %v1297, 108
      %v1983 = vpop.permute.xlu0 %1982
      %1984 = vrot.lane.b32.xlu0 %v1298, 108
      %v1985 = vpop.permute.xlu0 %1984
      %1986 = vrot.lane.b32.xlu0 %v1299, 108
      %v1987 = vpop.permute.xlu0 %1986
      %2000 = vrot.lane.b32.xlu0 %v1051, 116
      %v2001 = vpop.permute.xlu0 %2000
      %2002 = vrot.lane.b32.xlu0 %v1053, 116
      %v2003 = vpop.permute.xlu0 %2002
      %2004 = vrot.lane.b32.xlu0 %v1056, 116
      %v2005 = vpop.permute.xlu0 %2004
      %2006 = vrot.lane.b32.xlu0 %v1058, 116
      %v2007 = vpop.permute.xlu0 %2006
      %2008 = vrot.lane.b32.xlu0 %v1061, 116
      %v2009 = vpop.permute.xlu0 %2008
      %2010 = vrot.lane.b32.xlu0 %v1063, 116
      %v2011 = vpop.permute.xlu0 %2010
      %2012 = vrot.lane.b32.xlu0 %v1066, 116
      %v2013 = vpop.permute.xlu0 %2012
      %2014 = vrot.lane.b32.xlu0 %v1068, 116
      %v2015 = vpop.permute.xlu0 %2014
      %2016 = vrot.lane.b32.xlu0 %v1071, 116
      %v2017 = vpop.permute.xlu0 %2016
      %2018 = vrot.lane.b32.xlu0 %v1073, 116
      %v2019 = vpop.permute.xlu0 %2018
      %2020 = vrot.lane.b32.xlu0 %v1076, 116
      %v2021 = vpop.permute.xlu0 %2020
      %2022 = vrot.lane.b32.xlu0 %v1078, 116
      %v2023 = vpop.permute.xlu0 %2022
      %2036 = vrot.lane.b32.xlu0 %v1051, 108
      %v2037 = vpop.permute.xlu0 %2036
      %2038 = vrot.lane.b32.xlu0 %v1053, 108
      %v2039 = vpop.permute.xlu0 %2038
      %2040 = vrot.lane.b32.xlu0 %v1056, 108
      %v2041 = vpop.permute.xlu0 %2040
      %2042 = vrot.lane.b32.xlu0 %v1058, 108
      %v2043 = vpop.permute.xlu0 %2042
      %2044 = vrot.lane.b32.xlu0 %v1061, 108
      %v2045 = vpop.permute.xlu0 %2044
      %2046 = vrot.lane.b32.xlu0 %v1063, 108
      %v2047 = vpop.permute.xlu0 %2046
      %2048 = vrot.lane.b32.xlu0 %v1066, 108
      %v2049 = vpop.permute.xlu0 %2048
      %2050 = vrot.lane.b32.xlu0 %v1068, 108
      %v2051 = vpop.permute.xlu0 %2050
      %2052 = vrot.lane.b32.xlu0 %v1071, 108
      %v2053 = vpop.permute.xlu0 %2052
      %2054 = vrot.lane.b32.xlu0 %v1073, 108
      %v2055 = vpop.permute.xlu0 %2054
      %2056 = vrot.lane.b32.xlu0 %v1076, 108
      %v2057 = vpop.permute.xlu0 %2056
      %2058 = vrot.lane.b32.xlu0 %v1078, 108
      %v2059 = vpop.permute.xlu0 %2058
      %2072 = vrot.lane.b32.xlu0 %v1288, 116
      %v2073 = vpop.permute.xlu0 %2072
      %2074 = vrot.lane.b32.xlu0 %v1289, 116
      %v2075 = vpop.permute.xlu0 %2074
      %2076 = vrot.lane.b32.xlu0 %v1290, 116
      %v2077 = vpop.permute.xlu0 %2076
      %2078 = vrot.lane.b32.xlu0 %v1291, 116
      %v2079 = vpop.permute.xlu0 %2078
      %2080 = vrot.lane.b32.xlu0 %v1292, 116
      %v2081 = vpop.permute.xlu0 %2080
      %2082 = vrot.lane.b32.xlu0 %v1293, 116
      %v2083 = vpop.permute.xlu0 %2082
      %2084 = vrot.lane.b32.xlu0 %v1294, 116
      %v2085 = vpop.permute.xlu0 %2084
      %2086 = vrot.lane.b32.xlu0 %v1295, 116
      %v2087 = vpop.permute.xlu0 %2086
      %2088 = vrot.lane.b32.xlu0 %v1296, 116
      %v2089 = vpop.permute.xlu0 %2088
      %2090 = vrot.lane.b32.xlu0 %v1297, 116
      %v2091 = vpop.permute.xlu0 %2090
      %2092 = vrot.lane.b32.xlu0 %v1298, 116
      %v2093 = vpop.permute.xlu0 %2092
      %2094 = vrot.lane.b32.xlu0 %v1299, 116
      %v2095 = vpop.permute.xlu0 %2094
      %v2108 = vsel %vm1093, %v1965, %v2001
      %v2109 = vsel %vm1093, %v1967, %v2003
      %v2110 = vsel %vm1093, %v1969, %v2005
      %v2111 = vsel %vm1093, %v1971, %v2007
      %v2112 = vsel %vm1093, %v1973, %v2009
      %v2113 = vsel %vm1093, %v1975, %v2011
      %v2114 = vsel %vm1093, %v1977, %v2013
      %v2115 = vsel %vm1093, %v1979, %v2015
      %v2116 = vsel %vm1093, %v1981, %v2017
      %v2117 = vsel %vm1093, %v1983, %v2019
      %v2118 = vsel %vm1093, %v1985, %v2021
      %v2119 = vsel %vm1093, %v1987, %v2023
      %v2120 = vsel %vm1480, %v2108, %v2037
      %v2121 = vsel %vm1480, %v2109, %v2039
      %v2122 = vsel %vm1480, %v2110, %v2041
      %v2123 = vsel %vm1480, %v2111, %v2043
      %v2124 = vsel %vm1480, %v2112, %v2045
      %v2125 = vsel %vm1480, %v2113, %v2047
      %v2126 = vsel %vm1480, %v2114, %v2049
      %v2127 = vsel %vm1480, %v2115, %v2051
      %v2128 = vsel %vm1480, %v2116, %v2053
      %v2129 = vsel %vm1480, %v2117, %v2055
      %v2130 = vsel %vm1480, %v2118, %v2057
      %v2131 = vsel %vm1480, %v2119, %v2059
      %v2132 = vsel %vm1493, %v2120, %v2073
      %v2133 = vsel %vm1493, %v2121, %v2075
      %v2134 = vsel %vm1493, %v2122, %v2077
      %v2135 = vsel %vm1493, %v2123, %v2079
      %v2136 = vsel %vm1493, %v2124, %v2081
      %v2137 = vsel %vm1493, %v2125, %v2083
      %v2138 = vsel %vm1493, %v2126, %v2085
      %v2139 = vsel %vm1493, %v2127, %v2087
      %v2140 = vsel %vm1493, %v2128, %v2089
      %v2141 = vsel %vm1493, %v2129, %v2091
      %v2142 = vsel %vm1493, %v2130, %v2093
      %v2143 = vsel %vm1493, %v2131, %v2095
      %2144 = vrot.lane.b32.xlu0 %v1051, 112
      %v2145 = vpop.permute.xlu0 %2144
      %2146 = vrot.lane.b32.xlu0 %v1053, 112
      %v2147 = vpop.permute.xlu0 %2146
      %2148 = vrot.lane.b32.xlu0 %v1056, 112
      %v2149 = vpop.permute.xlu0 %2148
      %2150 = vrot.lane.b32.xlu0 %v1058, 112
      %v2151 = vpop.permute.xlu0 %2150
      %2152 = vrot.lane.b32.xlu0 %v1061, 112
      %v2153 = vpop.permute.xlu0 %2152
      %2154 = vrot.lane.b32.xlu0 %v1063, 112
      %v2155 = vpop.permute.xlu0 %2154
      %2156 = vrot.lane.b32.xlu0 %v1066, 112
      %v2157 = vpop.permute.xlu0 %2156
      %2158 = vrot.lane.b32.xlu0 %v1068, 112
      %v2159 = vpop.permute.xlu0 %2158
      %2160 = vrot.lane.b32.xlu0 %v1071, 112
      %v2161 = vpop.permute.xlu0 %2160
      %2162 = vrot.lane.b32.xlu0 %v1073, 112
      %v2163 = vpop.permute.xlu0 %2162
      %2164 = vrot.lane.b32.xlu0 %v1076, 112
      %v2165 = vpop.permute.xlu0 %2164
      %2166 = vrot.lane.b32.xlu0 %v1078, 112
      %v2167 = vpop.permute.xlu0 %2166
      %v2180 = vsel %vm1542, %v2145, %v1051
      %v2181 = vsel %vm1542, %v2147, %v1053
      %v2182 = vsel %vm1542, %v2149, %v1056
      %v2183 = vsel %vm1542, %v2151, %v1058
      %v2184 = vsel %vm1542, %v2153, %v1061
      %v2185 = vsel %vm1542, %v2155, %v1063
      %v2186 = vsel %vm1542, %v2157, %v1066
      %v2187 = vsel %vm1542, %v2159, %v1068
      %v2188 = vsel %vm1542, %v2161, %v1071
      %v2189 = vsel %vm1542, %v2163, %v1073
      %v2190 = vsel %vm1542, %v2165, %v1076
      %v2191 = vsel %vm1542, %v2167, %v1078
      %2204 = vrot.lane.b32.xlu0 %v2132, 16
      %v2205 = vpop.permute.xlu0 %2204
      %2206 = vrot.lane.b32.xlu0 %v2133, 16
      %v2207 = vpop.permute.xlu0 %2206
      %2208 = vrot.lane.b32.xlu0 %v2134, 16
      %v2209 = vpop.permute.xlu0 %2208
      %2210 = vrot.lane.b32.xlu0 %v2135, 16
      %v2211 = vpop.permute.xlu0 %2210
      %2212 = vrot.lane.b32.xlu0 %v2136, 16
      %v2213 = vpop.permute.xlu0 %2212
      %2214 = vrot.lane.b32.xlu0 %v2137, 16
      %v2215 = vpop.permute.xlu0 %2214
      %2216 = vrot.lane.b32.xlu0 %v2138, 16
      %v2217 = vpop.permute.xlu0 %2216
      %2218 = vrot.lane.b32.xlu0 %v2139, 16
      %v2219 = vpop.permute.xlu0 %2218
      %2220 = vrot.lane.b32.xlu0 %v2140, 16
      %v2221 = vpop.permute.xlu0 %2220
      %2222 = vrot.lane.b32.xlu0 %v2141, 16
      %v2223 = vpop.permute.xlu0 %2222
      %2224 = vrot.lane.b32.xlu0 %v2142, 16
      %v2225 = vpop.permute.xlu0 %2224
      %2226 = vrot.lane.b32.xlu0 %v2143, 16
      %v2227 = vpop.permute.xlu0 %2226
      %v2240 = vsel %vm1542, %v2132, %v2205
      %v2241 = vsel %vm1542, %v2133, %v2207
      %v2242 = vsel %vm1542, %v2134, %v2209
      %v2243 = vsel %vm1542, %v2135, %v2211
      %v2244 = vsel %vm1542, %v2136, %v2213
      %v2245 = vsel %vm1542, %v2137, %v2215
      %v2246 = vsel %vm1542, %v2138, %v2217
      %v2247 = vsel %vm1542, %v2139, %v2219
      %v2248 = vsel %vm1542, %v2140, %v2221
      %v2249 = vsel %vm1542, %v2141, %v2223
      %v2250 = vsel %vm1542, %v2142, %v2225
      %v2251 = vsel %vm1542, %v2143, %v2227
      %2264 = vrot.lane.b32.xlu0 %v1152, 96
      %v2265 = vpop.permute.xlu0 %2264
      %2266 = vrot.lane.b32.xlu0 %v1155, 96
      %v2267 = vpop.permute.xlu0 %2266
      %2268 = vrot.lane.b32.xlu0 %v1158, 96
      %v2269 = vpop.permute.xlu0 %2268
      %2270 = vrot.lane.b32.xlu0 %v1161, 96
      %v2271 = vpop.permute.xlu0 %2270
      %2272 = vrot.lane.b32.xlu0 %v1164, 96
      %v2273 = vpop.permute.xlu0 %2272
      %2274 = vrot.lane.b32.xlu0 %v1167, 96
      %v2275 = vpop.permute.xlu0 %2274
      %2276 = vrot.lane.b32.xlu0 %v1170, 96
      %v2277 = vpop.permute.xlu0 %2276
      %2278 = vrot.lane.b32.xlu0 %v1173, 96
      %v2279 = vpop.permute.xlu0 %2278
      %2280 = vrot.lane.b32.xlu0 %v1176, 96
      %v2281 = vpop.permute.xlu0 %2280
      %2282 = vrot.lane.b32.xlu0 %v1179, 96
      %v2283 = vpop.permute.xlu0 %2282
      %2284 = vrot.lane.b32.xlu0 %v1182, 96
      %v2285 = vpop.permute.xlu0 %2284
      %2286 = vrot.lane.b32.xlu0 %v1185, 96
      %v2287 = vpop.permute.xlu0 %2286
      %v2300 = vmul.f32 %v2180, %v2265
      %v2301 = vmul.f32 %v2181, %v2267
      %v2302 = vmul.f32 %v2182, %v2269
      %v2303 = vmul.f32 %v2183, %v2271
      %v2304 = vmul.f32 %v2184, %v2273
      %v2305 = vmul.f32 %v2185, %v2275
      %v2306 = vmul.f32 %v2186, %v2277
      %v2307 = vmul.f32 %v2187, %v2279
      %v2308 = vmul.f32 %v2188, %v2281
      %v2309 = vmul.f32 %v2189, %v2283
      %v2310 = vmul.f32 %v2190, %v2285
      %v2311 = vmul.f32 %v2191, %v2287
      %2324 = vrot.lane.b32.xlu0 %v1253, 96
      %v2325 = vpop.permute.xlu0 %2324
      %2326 = vrot.lane.b32.xlu0 %v1256, 96
      %v2327 = vpop.permute.xlu0 %2326
      %2328 = vrot.lane.b32.xlu0 %v1259, 96
      %v2329 = vpop.permute.xlu0 %2328
      %2330 = vrot.lane.b32.xlu0 %v1262, 96
      %v2331 = vpop.permute.xlu0 %2330
      %2332 = vrot.lane.b32.xlu0 %v1265, 96
      %v2333 = vpop.permute.xlu0 %2332
      %2334 = vrot.lane.b32.xlu0 %v1268, 96
      %v2335 = vpop.permute.xlu0 %2334
      %2336 = vrot.lane.b32.xlu0 %v1271, 96
      %v2337 = vpop.permute.xlu0 %2336
      %2338 = vrot.lane.b32.xlu0 %v1274, 96
      %v2339 = vpop.permute.xlu0 %2338
      %2340 = vrot.lane.b32.xlu0 %v1277, 96
      %v2341 = vpop.permute.xlu0 %2340
      %2342 = vrot.lane.b32.xlu0 %v1280, 96
      %v2343 = vpop.permute.xlu0 %2342
      %2344 = vrot.lane.b32.xlu0 %v1283, 96
      %v2345 = vpop.permute.xlu0 %2344
      %2346 = vrot.lane.b32.xlu0 %v1286, 96
      %v2347 = vpop.permute.xlu0 %2346
      %v2360 = vmul.f32 %v2240, %v2325
      %v2361 = vmul.f32 %v2241, %v2327
      %v2362 = vmul.f32 %v2242, %v2329
      %v2363 = vmul.f32 %v2243, %v2331
      %v2364 = vmul.f32 %v2244, %v2333
      %v2365 = vmul.f32 %v2245, %v2335
      %v2366 = vmul.f32 %v2246, %v2337
      %v2367 = vmul.f32 %v2247, %v2339
      %v2368 = vmul.f32 %v2248, %v2341
      %v2369 = vmul.f32 %v2249, %v2343
      %v2370 = vmul.f32 %v2250, %v2345
      %v2371 = vmul.f32 %v2251, %v2347
      %v2372 = vadd.f32 %v2300, %v2360
      %v2373 = vadd.f32 %v2301, %v2361
      %v2374 = vadd.f32 %v2302, %v2362
      %v2375 = vadd.f32 %v2303, %v2363
      %v2376 = vadd.f32 %v2304, %v2364
      %v2377 = vadd.f32 %v2305, %v2365
      %v2378 = vadd.f32 %v2306, %v2366
      %v2379 = vadd.f32 %v2307, %v2367
      %v2380 = vadd.f32 %v2308, %v2368
      %v2381 = vadd.f32 %v2309, %v2369
      %v2382 = vadd.f32 %v2310, %v2370
      %v2383 = vadd.f32 %v2311, %v2371
      %v2384 = vpack.c.bf16 %v2373, %v2372
      %v2385 = vpack.c.bf16 %v2375, %v2374
      %v2386 = vpack.c.bf16 %v2377, %v2376
      %v2387 = vpack.c.bf16 %v2379, %v2378
      %v2388 = vpack.c.bf16 %v2381, %v2380
      %v2389 = vpack.c.bf16 %v2383, %v2382
      %v2390 = vld [vmem:[#allocation2] sm:$0xf]
      %v2391 = vld [vmem:[#allocation2 + $0x4] sm:$0xf]
      %v2394 = vunpack.c.l.b16 %v2390
      %v2395 = vunpack.c.l.b16 %v2391
      %v2396 = vpack.c.b16 %v2395, %v2394
      %2397 = vrot.lane.b32.xlu0 %v2396, 96
      %v2398 = vpop.permute.xlu0 %2397
      %v2400 = vsel %vm1022, %v2384, 0
      %v2403 = vsel %vm1022, %v2385, 0
      %v2406 = vsel %vm1022, %v2386, 0
      %v2409 = vsel %vm1022, %v2387, 0
      %v2412 = vsel %vm1022, %v2388, 0
      %v2415 = vsel %vm1022, %v2389, 0
      %v2418 = vsel %vm1022, %v2398, 0
      %2420 = vmatpush.bf16.xpose.msra.mxu0 0
      %2421 = vmatpush.bf16.xpose.msra.mxu0 0
      %2422 = vmatpush.bf16.xpose.msra.mxu0 0
      %2423 = vmatpush.bf16.xpose.msra.mxu0 0
      %2424 = vmatpush.bf16.xpose.msra.mxu0 0
      %2425 = vmatpush.bf16.xpose.msra.mxu0 0
      %2426 = vmatpush.bf16.xpose.msra.mxu0 0
      %2427 = vmatpush.bf16.xpose.msra.mxu0 %v2418
      %2428 = vmatmul.bf16.gmra.mxu0 %v2400
      %v2429 = vpop.f32.mrf.mxu0
      %v2430 = vadd.f32 0.0, %v2429
      %v2431 = vpop.f32.mrf.mxu0
      %v2432 = vadd.f32 0.0, %v2431
      %2433 = vmatmul.bf16.gmra.mxu0 %v2403
      %v2434 = vpop.f32.mrf.mxu0
      %v2435 = vadd.f32 0.0, %v2434
      %v2436 = vpop.f32.mrf.mxu0
      %v2437 = vadd.f32 0.0, %v2436
      %2438 = vmatmul.bf16.gmra.mxu0 %v2406
      %v2439 = vpop.f32.mrf.mxu0
      %v2440 = vadd.f32 0.0, %v2439
      %v2441 = vpop.f32.mrf.mxu0
      %v2442 = vadd.f32 0.0, %v2441
      %2443 = vmatmul.bf16.gmra.mxu0 %v2409
      %v2444 = vpop.f32.mrf.mxu0
      %v2445 = vadd.f32 0.0, %v2444
      %v2446 = vpop.f32.mrf.mxu0
      %v2447 = vadd.f32 0.0, %v2446
      %2448 = vmatmul.bf16.gmra.mxu0 %v2412
      %v2449 = vpop.f32.mrf.mxu0
      %v2450 = vadd.f32 0.0, %v2449
      %v2451 = vpop.f32.mrf.mxu0
      %v2452 = vadd.f32 0.0, %v2451
      %2453 = vmatmul.bf16.gmra.mxu0 %v2415
      %v2454 = vpop.f32.mrf.mxu0
      %v2455 = vadd.f32 0.0, %v2454
      %v2456 = vpop.f32.mrf.mxu0
      %v2457 = vadd.f32 0.0, %v2456
      %2458 = vdwg.mxu0
      %v2459 = vmul.f32 %v2430, 0.125
      %v2460 = vmul.f32 %v2432, 0.125
      %v2461 = vmul.f32 %v2435, 0.125
      %v2462 = vmul.f32 %v2437, 0.125
      %v2463 = vmul.f32 %v2440, 0.125
      %v2464 = vmul.f32 %v2442, 0.125
      %v2465 = vmul.f32 %v2445, 0.125
      %v2466 = vmul.f32 %v2447, 0.125
      %v2467 = vmul.f32 %v2450, 0.125
      %v2468 = vmul.f32 %v2452, 0.125
      %v2469 = vmul.f32 %v2455, 0.125
      %v2470 = vmul.f32 %v2457, 0.125
      %v2471 = vsel %vm1542, %v2459, -inf
      %2472 = vmax.xlane.f32.xlu0 %v2471
      %v2473 = vpop.xlane.xlu0 %2472
      %v2474 = vsel %vm1542, %v2460, -inf
      %2475 = vmax.xlane.f32.xlu0 %v2474
      %v2476 = vpop.xlane.xlu0 %2475
      %v2477 = vsel %vm1542, %v2461, -inf
      %2478 = vmax.xlane.f32.xlu0 %v2477
      %v2479 = vpop.xlane.xlu0 %2478
      %v2480 = vsel %vm1542, %v2462, -inf
      %2481 = vmax.xlane.f32.xlu0 %v2480
      %v2482 = vpop.xlane.xlu0 %2481
      %v2483 = vsel %vm1542, %v2463, -inf
      %2484 = vmax.xlane.f32.xlu0 %v2483
      %v2485 = vpop.xlane.xlu0 %2484
      %v2486 = vsel %vm1542, %v2464, -inf
      %2487 = vmax.xlane.f32.xlu0 %v2486
      %v2488 = vpop.xlane.xlu0 %2487
      %v2489 = vsel %vm1542, %v2465, -inf
      %2490 = vmax.xlane.f32.xlu0 %v2489
      %v2491 = vpop.xlane.xlu0 %2490
      %v2492 = vsel %vm1542, %v2466, -inf
      %2493 = vmax.xlane.f32.xlu0 %v2492
      %v2494 = vpop.xlane.xlu0 %2493
      %v2495 = vsel %vm1542, %v2467, -inf
      %2496 = vmax.xlane.f32.xlu0 %v2495
      %v2497 = vpop.xlane.xlu0 %2496
      %v2498 = vsel %vm1542, %v2468, -inf
      %2499 = vmax.xlane.f32.xlu0 %v2498
      %v2500 = vpop.xlane.xlu0 %2499
      %v2501 = vsel %vm1542, %v2469, -inf
      %2502 = vmax.xlane.f32.xlu0 %v2501
      %v2503 = vpop.xlane.xlu0 %2502
      %v2504 = vsel %vm1542, %v2470, -inf
      %2505 = vmax.xlane.f32.xlu0 %v2504
      %v2506 = vpop.xlane.xlu0 %2505
      %v2507 = vsub.f32 %v2459, %v2473
      %v2508 = vsub.f32 %v2460, %v2476
      %v2509 = vsub.f32 %v2461, %v2479
      %v2510 = vsub.f32 %v2462, %v2482
      %v2511 = vsub.f32 %v2463, %v2485
      %v2512 = vsub.f32 %v2464, %v2488
      %v2513 = vsub.f32 %v2465, %v2491
      %v2514 = vsub.f32 %v2466, %v2494
      %v2515 = vsub.f32 %v2467, %v2497
      %v2516 = vsub.f32 %v2468, %v2500
      %v2517 = vsub.f32 %v2469, %v2503
      %v2518 = vsub.f32 %v2470, %v2506
      %v2519 = vmul.f32 %v2507, 1.442695
      %v2520 = vpow.pop %v2519
      %v2521 = vmul.f32 %v2508, 1.442695
      %v2522 = vpow.pop %v2521
      %v2523 = vmul.f32 %v2509, 1.442695
      %v2524 = vpow.pop %v2523
      %v2525 = vmul.f32 %v2510, 1.442695
      %v2526 = vpow.pop %v2525
      %v2527 = vmul.f32 %v2511, 1.442695
      %v2528 = vpow.pop %v2527
      %v2529 = vmul.f32 %v2512, 1.442695
      %v2530 = vpow.pop %v2529
      %v2531 = vmul.f32 %v2513, 1.442695
      %v2532 = vpow.pop %v2531
      %v2533 = vmul.f32 %v2514, 1.442695
      %v2534 = vpow.pop %v2533
      %v2535 = vmul.f32 %v2515, 1.442695
      %v2536 = vpow.pop %v2535
      %v2537 = vmul.f32 %v2516, 1.442695
      %v2538 = vpow.pop %v2537
      %v2539 = vmul.f32 %v2517, 1.442695
      %v2540 = vpow.pop %v2539
      %v2541 = vmul.f32 %v2518, 1.442695
      %v2542 = vpow.pop %v2541
      %v2543 = vsel %vm1542, %v2520, 0.0
      %2544 = vadd.xlane.f32.xlu0 %v2543
      %v2545 = vpop.xlane.xlu0 %2544
      %v2546 = vsel %vm1542, %v2522, 0.0
      %2547 = vadd.xlane.f32.xlu0 %v2546
      %v2548 = vpop.xlane.xlu0 %2547
      %v2549 = vsel %vm1542, %v2524, 0.0
      %2550 = vadd.xlane.f32.xlu0 %v2549
      %v2551 = vpop.xlane.xlu0 %2550
      %v2552 = vsel %vm1542, %v2526, 0.0
      %2553 = vadd.xlane.f32.xlu0 %v2552
      %v2554 = vpop.xlane.xlu0 %2553
      %v2555 = vsel %vm1542, %v2528, 0.0
      %2556 = vadd.xlane.f32.xlu0 %v2555
      %v2557 = vpop.xlane.xlu0 %2556
      %v2558 = vsel %vm1542, %v2530, 0.0
      %2559 = vadd.xlane.f32.xlu0 %v2558
      %v2560 = vpop.xlane.xlu0 %2559
      %v2561 = vsel %vm1542, %v2532, 0.0
      %2562 = vadd.xlane.f32.xlu0 %v2561
      %v2563 = vpop.xlane.xlu0 %2562
      %v2564 = vsel %vm1542, %v2534, 0.0
      %2565 = vadd.xlane.f32.xlu0 %v2564
      %v2566 = vpop.xlane.xlu0 %2565
      %v2567 = vsel %vm1542, %v2536, 0.0
      %2568 = vadd.xlane.f32.xlu0 %v2567
      %v2569 = vpop.xlane.xlu0 %2568
      %v2570 = vsel %vm1542, %v2538, 0.0
      %2571 = vadd.xlane.f32.xlu0 %v2570
      %v2572 = vpop.xlane.xlu0 %2571
      %v2573 = vsel %vm1542, %v2540, 0.0
      %2574 = vadd.xlane.f32.xlu0 %v2573
      %v2575 = vpop.xlane.xlu0 %2574
      %v2576 = vsel %vm1542, %v2542, 0.0
      %2577 = vadd.xlane.f32.xlu0 %v2576
      %v2578 = vpop.xlane.xlu0 %2577
      %v2579 = vpack.c.bf16 %v2522, %v2520
      %v2580 = vpack.c.bf16 %v2526, %v2524
      %v2581 = vpack.c.bf16 %v2530, %v2528
      %v2582 = vpack.c.bf16 %v2534, %v2532
      %v2583 = vpack.c.bf16 %v2538, %v2536
      %v2584 = vpack.c.bf16 %v2542, %v2540
      %v2585 = vrcp.pop %v2545
      %v2586 = vrcp.pop %v2548
      %v2587 = vrcp.pop %v2551
      %v2588 = vrcp.pop %v2554
      %v2589 = vrcp.pop %v2557
      %v2590 = vrcp.pop %v2560
      %v2591 = vrcp.pop %v2563
      %v2592 = vrcp.pop %v2566
      %v2593 = vrcp.pop %v2569
      %v2594 = vrcp.pop %v2572
      %v2595 = vrcp.pop %v2575
      %v2596 = vrcp.pop %v2578
      %v2597 = vld [vmem:[#allocation3] sm:$0xf]
      %v2598 = vld [vmem:[#allocation3 + $0x4] sm:$0xf]
      %v2601 = vunpack.c.l.b16 %v2597
      %v2602 = vunpack.c.l.b16 %v2598
      %v2603 = vpack.c.b16 %v2602, %v2601
      %2604 = vrot.lane.b32.xlu0 %v2603, 112
      %v2605 = vpop.permute.xlu0 %2604
      %v2608 = vsel %vm1542, %v2579, 0
      %v2611 = vsel %vm1542, %v2580, 0
      %v2614 = vsel %vm1542, %v2581, 0
      %v2617 = vsel %vm1542, %v2582, 0
      %v2620 = vsel %vm1542, %v2583, 0
      %v2623 = vsel %vm1542, %v2584, 0
      %2625 = vmatpush.bf16.msra.mxu0 0
      %2626 = vmatpush.bf16.msra.mxu0 0
      %2627 = vmatpush.bf16.msra.mxu0 0
      %2628 = vmatpush.bf16.msra.mxu0 0
      %2629 = vmatpush.bf16.msra.mxu0 0
      %2630 = vmatpush.bf16.msra.mxu0 0
      %2631 = vmatpush.bf16.msra.mxu0 0
      %2632 = vmatpush.bf16.msra.mxu0 %v2605
      %2633 = vmatmul.bf16.gmra.mxu0 %v2608
      %v2634 = vpop.f32.mrf.mxu0
      %v2635 = vadd.f32 0.0, %v2634
      %v2636 = vpop.f32.mrf.mxu0
      %v2637 = vadd.f32 0.0, %v2636
      %2638 = vmatmul.bf16.gmra.mxu0 %v2611
      %v2639 = vpop.f32.mrf.mxu0
      %v2640 = vadd.f32 0.0, %v2639
      %v2641 = vpop.f32.mrf.mxu0
      %v2642 = vadd.f32 0.0, %v2641
      %2643 = vmatmul.bf16.gmra.mxu0 %v2614
      %v2644 = vpop.f32.mrf.mxu0
      %v2645 = vadd.f32 0.0, %v2644
      %v2646 = vpop.f32.mrf.mxu0
      %v2647 = vadd.f32 0.0, %v2646
      %2648 = vmatmul.bf16.gmra.mxu0 %v2617
      %v2649 = vpop.f32.mrf.mxu0
      %v2650 = vadd.f32 0.0, %v2649
      %v2651 = vpop.f32.mrf.mxu0
      %v2652 = vadd.f32 0.0, %v2651
      %2653 = vmatmul.bf16.gmra.mxu0 %v2620
      %v2654 = vpop.f32.mrf.mxu0
      %v2655 = vadd.f32 0.0, %v2654
      %v2656 = vpop.f32.mrf.mxu0
      %v2657 = vadd.f32 0.0, %v2656
      %2658 = vmatmul.bf16.gmra.mxu0 %v2623
      %v2659 = vpop.f32.mrf.mxu0
      %v2660 = vadd.f32 0.0, %v2659
      %v2661 = vpop.f32.mrf.mxu0
      %v2662 = vadd.f32 0.0, %v2661
      %2663 = vdwg.mxu0
      %v2664 = vmul.f32 %v2635, %v2585
      %v2665 = vmul.f32 %v2637, %v2586
      %v2666 = vmul.f32 %v2640, %v2587
      %v2667 = vmul.f32 %v2642, %v2588
      %v2668 = vmul.f32 %v2645, %v2589
      %v2669 = vmul.f32 %v2647, %v2590
      %v2670 = vmul.f32 %v2650, %v2591
      %v2671 = vmul.f32 %v2652, %v2592
      %v2672 = vmul.f32 %v2655, %v2593
      %v2673 = vmul.f32 %v2657, %v2594
      %v2674 = vmul.f32 %v2660, %v2595
      %v2675 = vmul.f32 %v2662, %v2596
      %v2676 = vpack.c.bf16 %v2664, %v2664
      %v2677 = vpack.c.bf16 %v2665, %v2665
      %v2678 = vpack.c.bf16 %v2666, %v2666
      %v2679 = vpack.c.bf16 %v2667, %v2667
      %v2680 = vpack.c.bf16 %v2668, %v2668
      %v2681 = vpack.c.bf16 %v2669, %v2669
      %v2682 = vpack.c.bf16 %v2670, %v2670
      %v2683 = vpack.c.bf16 %v2671, %v2671
      %v2684 = vpack.c.bf16 %v2672, %v2672
      %v2685 = vpack.c.bf16 %v2673, %v2673
      %v2686 = vpack.c.bf16 %v2674, %v2674
      %v2687 = vpack.c.bf16 %v2675, %v2675
      %2700 = vrot.lane.b32.xlu0 %v2676, 16
      %v2701 = vpop.permute.xlu0 %2700
      %2702 = vrot.lane.b32.xlu0 %v2677, 16
      %v2703 = vpop.permute.xlu0 %2702
      %2704 = vrot.lane.b32.xlu0 %v2678, 16
      %v2705 = vpop.permute.xlu0 %2704
      %2706 = vrot.lane.b32.xlu0 %v2679, 16
      %v2707 = vpop.permute.xlu0 %2706
      %2708 = vrot.lane.b32.xlu0 %v2680, 16
      %v2709 = vpop.permute.xlu0 %2708
      %2710 = vrot.lane.b32.xlu0 %v2681, 16
      %v2711 = vpop.permute.xlu0 %2710
      %2712 = vrot.lane.b32.xlu0 %v2682, 16
      %v2713 = vpop.permute.xlu0 %2712
      %2714 = vrot.lane.b32.xlu0 %v2683, 16
      %v2715 = vpop.permute.xlu0 %2714
      %2716 = vrot.lane.b32.xlu0 %v2684, 16
      %v2717 = vpop.permute.xlu0 %2716
      %2718 = vrot.lane.b32.xlu0 %v2685, 16
      %v2719 = vpop.permute.xlu0 %2718
      %2720 = vrot.lane.b32.xlu0 %v2686, 16
      %v2721 = vpop.permute.xlu0 %2720
      %2722 = vrot.lane.b32.xlu0 %v2687, 16
      %v2723 = vpop.permute.xlu0 %2722
      %vm2736 = vcmask 257152
      %2737 = vst.msk [vmem:[#allocation4] sm:$0xf] %vm2736, %v2701
      %2738 = vst.msk [vmem:[#allocation4 + $0x4] sm:$0xf] %vm2736, %v2703
      %2739 = vst.msk [vmem:[#allocation4 + $0x8] sm:$0xf] %vm2736, %v2705
      %2740 = vst.msk [vmem:[#allocation4 + $0xc] sm:$0xf] %vm2736, %v2707
      %2741 = vst.msk [vmem:[#allocation4 + $0x10] sm:$0xf] %vm2736, %v2709
      %2742 = vst.msk [vmem:[#allocation4 + $0x14] sm:$0xf] %vm2736, %v2711
      %2743 = vst.msk [vmem:[#allocation4 + $0x18] sm:$0xf] %vm2736, %v2713
      %2744 = vst.msk [vmem:[#allocation4 + $0x1c] sm:$0xf] %vm2736, %v2715
      %2745 = vst.msk [vmem:[#allocation4 + $0x20] sm:$0xf] %vm2736, %v2717
      %2746 = vst.msk [vmem:[#allocation4 + $0x24] sm:$0xf] %vm2736, %v2719
      %2747 = vst.msk [vmem:[#allocation4 + $0x28] sm:$0xf] %vm2736, %v2721
      %2748 = vst.msk [vmem:[#allocation4 + $0x2c] sm:$0xf] %vm2736, %v2723
      %v2749 = vld [vmem:[#allocation4] sm:$0xf]
      %v2750 = vld [vmem:[#allocation4 + $0x4] sm:$0xf]
      %v2751 = vld [vmem:[#allocation4 + $0x8] sm:$0xf]
      %v2752 = vld [vmem:[#allocation4 + $0xc] sm:$0xf]
      %v2753 = vld [vmem:[#allocation4 + $0x10] sm:$0xf]
      %v2754 = vld [vmem:[#allocation4 + $0x14] sm:$0xf]
      %v2755 = vld [vmem:[#allocation4 + $0x18] sm:$0xf]
      %v2756 = vld [vmem:[#allocation4 + $0x1c] sm:$0xf]
      %v2757 = vld [vmem:[#allocation4 + $0x20] sm:$0xf]
      %v2758 = vld [vmem:[#allocation4 + $0x24] sm:$0xf]
      %v2759 = vld [vmem:[#allocation4 + $0x28] sm:$0xf]
      %v2760 = vld [vmem:[#allocation4 + $0x2c] sm:$0xf]
      %v2761 = vld [vmem:[%s13] sm:$0xf]
      %v2762 = vld [vmem:[%s13 + $0x4] sm:$0xf]
      %v2763 = vld [vmem:[%s13 + $0x8] sm:$0xf]
      %v2764 = vld [vmem:[%s13 + $0xc] sm:$0xf]
      %v2765 = vld [vmem:[%s14] sm:$0x1]
      %v2767 = vperm.slane %v2765, 0
      %v2781 = vunpack.c.l.b16 %v2749
      %v2782 = vunpack.c.l.b16 %v2750
      %v2783 = vunpack.c.l.b16 %v2751
      %v2784 = vunpack.c.l.b16 %v2752
      %v2785 = vunpack.c.l.b16 %v2753
      %v2786 = vunpack.c.l.b16 %v2754
      %v2787 = vunpack.c.l.b16 %v2755
      %v2788 = vunpack.c.l.b16 %v2756
      %v2789 = vunpack.c.l.b16 %v2757
      %v2790 = vunpack.c.l.b16 %v2758
      %v2791 = vunpack.c.l.b16 %v2759
      %v2792 = vunpack.c.l.b16 %v2760
      %v2793 = vpack.c.b16 %v2782, %v2781
      %v2794 = vpack.c.b16 %v2784, %v2783
      %v2795 = vpack.c.b16 %v2786, %v2785
      %v2796 = vpack.c.b16 %v2788, %v2787
      %v2797 = vpack.c.b16 %v2790, %v2789
      %v2798 = vpack.c.b16 %v2792, %v2791
      %v2803 = vunpack.c.l.b16 %v2761
      %v2804 = vunpack.c.l.b16 %v2762
      %v2805 = vunpack.c.l.b16 %v2763
      %v2806 = vunpack.c.l.b16 %v2764
      %v2807 = vpack.c.b16 %v2804, %v2803
      %v2808 = vpack.c.b16 %v2806, %v2805
      %v2812 = vsel %vm1022, %v2793, 0
      %v2815 = vsel %vm1022, %v2794, 0
      %v2818 = vsel %vm1022, %v2795, 0
      %v2821 = vsel %vm1022, %v2796, 0
      %v2824 = vsel %vm1022, %v2797, 0
      %v2827 = vsel %vm1022, %v2798, 0
      %2829 = vmatpush.bf16.msra.mxu0 0
      %2830 = vmatpush.bf16.msra.mxu0 0
      %2831 = vmatpush.bf16.msra.mxu0 0
      %2832 = vmatpush.bf16.msra.mxu0 0
      %2833 = vmatpush.bf16.msra.mxu0 0
      %2834 = vmatpush.bf16.msra.mxu0 0
      %2835 = vmatpush.bf16.msra.mxu0 %v2808
      %2836 = vmatpush.bf16.msra.mxu0 %v2807
      %2837 = vmatmul.bf16.gmra.mxu0 %v2812
      %v2838 = vpop.f32.mrf.mxu0
      %v2839 = vadd.f32 %v2767, %v2838
      %v2840 = vpop.f32.mrf.mxu0
      %v2841 = vadd.f32 %v2767, %v2840
      %2842 = vmatmul.bf16.gmra.mxu0 %v2815
      %v2843 = vpop.f32.mrf.mxu0
      %v2844 = vadd.f32 %v2767, %v2843
      %v2845 = vpop.f32.mrf.mxu0
      %v2846 = vadd.f32 %v2767, %v2845
      %2847 = vmatmul.bf16.gmra.mxu0 %v2818
      %v2848 = vpop.f32.mrf.mxu0
      %v2849 = vadd.f32 %v2767, %v2848
      %v2850 = vpop.f32.mrf.mxu0
      %v2851 = vadd.f32 %v2767, %v2850
      %2852 = vmatmul.bf16.gmra.mxu0 %v2821
      %v2853 = vpop.f32.mrf.mxu0
      %v2854 = vadd.f32 %v2767, %v2853
      %v2855 = vpop.f32.mrf.mxu0
      %v2856 = vadd.f32 %v2767, %v2855
      %2857 = vmatmul.bf16.gmra.mxu0 %v2824
      %v2858 = vpop.f32.mrf.mxu0
      %v2859 = vadd.f32 %v2767, %v2858
      %v2860 = vpop.f32.mrf.mxu0
      %v2861 = vadd.f32 %v2767, %v2860
      %2862 = vmatmul.bf16.gmra.mxu0 %v2827
      %v2863 = vpop.f32.mrf.mxu0
      %v2864 = vadd.f32 %v2767, %v2863
      %v2865 = vpop.f32.mrf.mxu0
      %v2866 = vadd.f32 %v2767, %v2865
      %2867 = vdwg.mxu0
      %2868 = vst.msk [vmem:[%s669] sm:$0xff] %vm1022, %v2839
      %2869 = vst.msk [vmem:[%s669 + $0x8] sm:$0xff] %vm1022, %v2841
      %2870 = vst.msk [vmem:[%s669 + $0x10] sm:$0xff] %vm1022, %v2844
      %2871 = vst.msk [vmem:[%s669 + $0x18] sm:$0xff] %vm1022, %v2846
      %2872 = vst.msk [vmem:[%s669 + $0x20] sm:$0xff] %vm1022, %v2849
      %2873 = vst.msk [vmem:[%s669 + $0x28] sm:$0xff] %vm1022, %v2851
      %2874 = vst.msk [vmem:[%s669 + $0x30] sm:$0xff] %vm1022, %v2854
      %2875 = vst.msk [vmem:[%s669 + $0x38] sm:$0xff] %vm1022, %v2856
      %2876 = vst.msk [vmem:[%s669 + $0x40] sm:$0xff] %vm1022, %v2859
      %2877 = vst.msk [vmem:[%s669 + $0x48] sm:$0xff] %vm1022, %v2861
      %2878 = vst.msk [vmem:[%s669 + $0x50] sm:$0xff] %vm1022, %v2864
      %2879 = vst.msk [vmem:[%s669 + $0x58] sm:$0xff] %vm1022, %v2866
      %s2880 = smul.u32 12, %s32
      %p2881 = scmp.lt.s32.totalorder %s31, 1
      %s2882 = scalar_select %p2881, %s31, 1
      %p2883 = scmp.lt.s32.totalorder %s2880, 11
      %s2884 = scalar_select %p2883, %s2880, 11
      %s2885 = smul.addr %s2882, 12
      %s2886 = sadd.s32 %s2884, %s2885
      %s2887 = smul.addr %s2886, 8
      %s2888 = scalar_lea.vmem %s16, %s2887
      // Predicated region
      $region89: #{decoupling_forward_pallas.2} parent=83 // pred_check
        %p2889 = pneg %p430
      $region90: #{decoupling_forward_pallas.2} parent=83 // pred_check_branch
        %2891 = sbr.rel (%p2889) target = $region92
      $region91: #{decoupling_forward_pallas.2} parent=83 // pred_region
        %s2892 = smul.u32 12, %s32
      $region92: #{decoupling_forward_pallas.2} parent=83 // pred_fallthru
        _
    $region84: #{decoupling_forward_pallas.2} parent=5 // pred_fallthru
      _
    %p2893 = scmp.le.s32.totalorder 2, %s22
    // Predicated region
    $region93: #{decoupling_forward_pallas.2} parent=5 // pred_check
      %p2894 = pneg %p2893
    $region94: #{decoupling_forward_pallas.2} parent=5 // pred_check_branch
      %2896 = sbr.rel (%p2894) target = $region96
    $region95: #{decoupling_forward_pallas.2} parent=5 // pred_region
      %s2897 = ssub.s32 %s22, 2
      // Predicated region
      $region97: #{decoupling_forward_pallas.2} parent=95 // pred_check
        %p2898 = pneg %p436
      $region98: #{decoupling_forward_pallas.2} parent=95 // pred_check_branch
        %2900 = sbr.rel (%p2898) target = $region100
      $region99: #{decoupling_forward_pallas.2} parent=95 // pred_region
        %s2901 = smul.u32 12, %s34
        %p2902 = scmp.lt.s32.totalorder %s33, 1
        %s2903 = scalar_select %p2902, %s33, 1
        %p2904 = scmp.lt.s32.totalorder %s2901, 11
        %s2905 = scalar_select %p2904, %s2901, 11
        %s2906 = smul.addr %s2903, 12
        %s2907 = sadd.s32 %s2905, %s2906
        %s2908 = smul.addr %s2907, 8
        %s2909 = scalar_lea.vmem %s16, %s2908
      $region100: #{decoupling_forward_pallas.2} parent=95 // pred_fallthru
        _
    $region96: #{decoupling_forward_pallas.2} parent=5 // pred_fallthru
      _
  $region6: #{decoupling_forward_pallas.2} parent=0 // loop_footer
    %s26 = sadd.s32 1, %s22
  $region7: #{decoupling_forward_pallas.2} parent=0 // loop_footer_branch
    %21 = sbr.rel target = $region3
  $region8: #{decoupling_forward_pallas.2} parent=0 // loop_exit
    _

// kernel: decoupling_forward_pallas.3
$region0: #{decoupling_forward_pallas.3}
  #allocation0 [shape = 'u32[]', space=smem, size = 0x4, offset = 0x4, fixed_abs, tag = 'smem constant byte address 0x4 - core index']
  #allocation1 [shape = 'u32[72,128]{1,0:T(1,128)}', space=vmem, size = 0x9000, scoped, tag = 'internal scratch']
  #allocation2 [shape = 'bf16[96,64]{1,0:T(8,128)(2,1)}', space=vmem, size = 0x6000, scoped, tag = 'scratch operand']
  #allocation3 [shape = 'bf16[96,32]{1,0:T(8,128)(2,1)}', space=vmem, size = 0x6000, scoped, tag = 'scratch operand']
  #allocation4 [shape = 'bf16[16,32]{1,0:T(8,128)(2,1)}', space=vmem, size = 0x1000, scoped, tag = 'scratch operand']
  %s0 = inlined_call_operand.vmem [shape: bf16[2,16,32], index: 0, kind: input, shape index: {}]
  %s1 = inlined_call_operand.vmem [shape: bf16[2,96,32], index: 1, kind: input, shape index: {}, may-alias: {1,2}]
  %s2 = inlined_call_operand.vmem [shape: bf16[2,96,32], index: 2, kind: input, shape index: {}, may-alias: {1,2}]
  %s3 = inlined_call_operand.vmem [shape: f32[2,16,4], index: 3, kind: input, shape index: {}]
  %s4 = inlined_call_operand.vmem [shape: f32[2,16,4], index: 4, kind: input, shape index: {}]
  %s5 = inlined_call_operand.vmem [shape: f32[2,96,4], index: 5, kind: input, shape index: {}]
  %s6 = inlined_call_operand.vmem [shape: f32[2,96,4], index: 6, kind: input, shape index: {}]
  %s7 = inlined_call_operand.vmem [shape: bf16[32,32], index: 7, kind: input, shape index: {}]
  %s8 = inlined_call_operand.vmem [shape: f32[1,32], index: 8, kind: input, shape index: {}]
  %s9 = inlined_call_operand.vmem [shape: bf16[32,32], index: 9, kind: input, shape index: {}]
  %s10 = inlined_call_operand.vmem [shape: f32[1,32], index: 10, kind: input, shape index: {}]
  %s11 = inlined_call_operand.vmem [shape: bf16[32,32], index: 11, kind: input, shape index: {}]
  %s12 = inlined_call_operand.vmem [shape: f32[1,32], index: 12, kind: input, shape index: {}]
  %s13 = inlined_call_operand.vmem [shape: bf16[32,32], index: 13, kind: input, shape index: {}]
  %s14 = inlined_call_operand.vmem [shape: f32[1,32], index: 14, kind: input, shape index: {}]
  %s15 = inlined_call_operand.vmem [shape: f32[4,64], index: 15, kind: input, shape index: {}]
  %s16 = inlined_call_operand.hbm [shape: f32[2,16,32], index: 16, kind: output, shape index: {}]
  %s17 = sld [smem:[#allocation0]]
  $region101: #{decoupling_forward_pallas.3} parent=0
    _
  %s19 = ssub.s32 1, %s17
  %s20 = scalar_select 0, %s19, %s17
  $region1: #{decoupling_forward_pallas.3} parent=0
    #allocation5 [shape = 'u8[16384]{0}', space=vmem, size = 0x4000, scoped, tag = 'output window, operand 0']
    #allocation6 [shape = 's32[2]{0}', space=sflag, size = 0x8, scoped, tag = 'scoped memory for decoupling_forward_pallas.3']
    %21 = vsyncpa [#allocation6], 0
    %s22 = scalar_lea.sflag [#allocation6], 1
    %23 = vsyncpa %s22, 0
    loop: start=0, step=1, limit=4
    $region2: #{decoupling_forward_pallas.3} parent=1 // loop_pre_header
      _
    $region3: #{decoupling_forward_pallas.3} parent=1 // loop_header
      %s25 = sphi 0, %s29
      %p26 = scmp.ge.s32.totalorder %s25, 4
      %s32 = sphi 0, %s44
      %s33 = sphi 0, %s40
      %s34 = sphi 0, %s32
      %s35 = sphi 0, %s33
      %s36 = sphi 0, %s34
      %s37 = sphi 0, %s35
      %s49 = sphi 0, %s51
      %s52 = sphi 0, %s49
      %s53 = sphi 0, %s52
      %s69 = sphi 0, %s53
      %s75 = sphi 0, %s77
      %s78 = sphi 0, %s75
      %s79 = sphi 0, %s78
      %s95 = sphi 0, %s79
      %s101 = sphi 0, %s103
      %s104 = sphi 0, %s101
      %s105 = sphi 0, %s104
      %s121 = sphi 0, %s105
      %s129 = sphi 0, %s131
      %s132 = sphi 0, %s129
      %s133 = sphi 0, %s132
      %s149 = sphi 0, %s133
      %s157 = sphi 0, %s159
      %s160 = sphi 0, %s157
      %s161 = sphi 0, %s160
      %s177 = sphi 0, %s161
      %s183 = sphi 0, %s185
      %s186 = sphi 0, %s183
      %s187 = sphi 0, %s186
      %s203 = sphi 0, %s187
      %s209 = sphi 0, %s211
      %s212 = sphi 0, %s209
      %s213 = sphi 0, %s212
      %s229 = sphi 0, %s213
      %s233 = sphi 0, %s233
      %s235 = sphi 0, %s233
      %s236 = sphi 0, %s235
      %s250 = sphi 0, %s236
      %s254 = sphi 0, %s254
      %s256 = sphi 0, %s254
      %s257 = sphi 0, %s256
      %s271 = sphi 0, %s257
      %s275 = sphi 0, %s275
      %s277 = sphi 0, %s275
      %s278 = sphi 0, %s277
      %s292 = sphi 0, %s278
      %s296 = sphi 0, %s296
      %s298 = sphi 0, %s296
      %s299 = sphi 0, %s298
      %s313 = sphi 0, %s299
      %s317 = sphi 0, %s317
      %s319 = sphi 0, %s317
      %s320 = sphi 0, %s319
      %s334 = sphi 0, %s320
      %s338 = sphi 0, %s338
      %s340 = sphi 0, %s338
      %s341 = sphi 0, %s340
      %s355 = sphi 0, %s341
      %s359 = sphi 0, %s359
      %s361 = sphi 0, %s359
      %s362 = sphi 0, %s361
      %s376 = sphi 0, %s362
      %s380 = sphi 0, %s380
      %s382 = sphi 0, %s380
      %s383 = sphi 0, %s382
      %s397 = sphi 0, %s383
      %s401 = sphi 0, %s401
      %s403 = sphi 0, %s401
      %s404 = sphi 0, %s403
      %s418 = sphi 0, %s404
      %s426 = sphi 0, %s428
      %s429 = sphi 0, %s426
      %s430 = sphi 0, %s429
      %s446 = sphi 0, %s430
    $region4: #{decoupling_forward_pallas.3} parent=1 // loop_header_branch
      %28 = sbr.rel (%p26) target = $region8
    $region5: #{decoupling_forward_pallas.3} parent=1 // loop_body
      %s30 = ssub.s32 %s25, 1
      %s31 = ssub.s32 %s25, 2
      %s38 = sadd.s32 1, %s33
      %p39 = scmp.ge.s32.totalorder %s38, 1
      %s40 = scalar_select %p39, 0, %s38
      %s41 = sadd.s32 1, %s32
      %s42 = scalar_select %p39, %s41, %s32
      %p43 = scmp.ge.s32.totalorder %s42, 2
      %s44 = scalar_select %p43, 0, %s42
      %s45 = ssub.s32 %s32, %s44
      %s46 = ssub.s32 %s33, %s40
      %s47 = sor.u32 %s45, %s46
      %p48 = scmp.eq.s32.totalorder %s47, 0
      %s50 = sadd.s32 %s49, 1
      %s51 = scalar_select %p48, %s49, %s50
      %p54 = pneg %p48
      %p55 = scmp.eq.s32.totalorder %s25, 1
      %p56 = por %p54, %p55
      %p57 = scmp.ne.s32.totalorder %s49, %s52
      %p58 = scmp.eq.s32.totalorder %s25, 0
      %p59 = por %p57, %p58
      %p60 = scmp.ne.s32.totalorder %s49, %s52
      %p61 = scmp.eq.s32.totalorder %s30, 1
      %p62 = por %p60, %p61
      %p63 = scmp.ne.s32.totalorder %s52, %s53
      %p64 = scmp.eq.s32.totalorder %s30, 0
      %p65 = por %p63, %p64
      %p66 = scmp.ne.s32.totalorder %s52, %s53
      %p67 = scmp.eq.s32.totalorder %s31, 1
      %p68 = por %p66, %p67
      %p70 = scmp.ne.s32.totalorder %s53, %s69
      %p71 = scmp.eq.s32.totalorder %s31, 0
      %p72 = por %p70, %p71
      %s73 = ssub.s32 %s32, %s44
      %p74 = scmp.eq.s32.totalorder %s73, 0
      %s76 = sadd.s32 %s75, 1
      %s77 = scalar_select %p74, %s75, %s76
      %p80 = pneg %p74
      %p81 = scmp.eq.s32.totalorder %s25, 1
      %p82 = por %p80, %p81
      %p83 = scmp.ne.s32.totalorder %s75, %s78
      %p84 = scmp.eq.s32.totalorder %s25, 0
      %p85 = por %p83, %p84
      %p86 = scmp.ne.s32.totalorder %s75, %s78
      %p87 = scmp.eq.s32.totalorder %s30, 1
      %p88 = por %p86, %p87
      %p89 = scmp.ne.s32.totalorder %s78, %s79
      %p90 = scmp.eq.s32.totalorder %s30, 0
      %p91 = por %p89, %p90
      %p92 = scmp.ne.s32.totalorder %s78, %s79
      %p93 = scmp.eq.s32.totalorder %s31, 1
      %p94 = por %p92, %p93
      %p96 = scmp.ne.s32.totalorder %s79, %s95
      %p97 = scmp.eq.s32.totalorder %s31, 0
      %p98 = por %p96, %p97
      %s99 = ssub.s32 %s32, %s44
      %p100 = scmp.eq.s32.totalorder %s99, 0
      %s102 = sadd.s32 %s101, 1
      %s103 = scalar_select %p100, %s101, %s102
      %p106 = pneg %p100
      %p107 = scmp.eq.s32.totalorder %s25, 1
      %p108 = por %p106, %p107
      %p109 = scmp.ne.s32.totalorder %s101, %s104
      %p110 = scmp.eq.s32.totalorder %s25, 0
      %p111 = por %p109, %p110
      %p112 = scmp.ne.s32.totalorder %s101, %s104
      %p113 = scmp.eq.s32.totalorder %s30, 1
      %p114 = por %p112, %p113
      %p115 = scmp.ne.s32.totalorder %s104, %s105
      %p116 = scmp.eq.s32.totalorder %s30, 0
      %p117 = por %p115, %p116
      %p118 = scmp.ne.s32.totalorder %s104, %s105
      %p119 = scmp.eq.s32.totalorder %s31, 1
      %p120 = por %p118, %p119
      %p122 = scmp.ne.s32.totalorder %s105, %s121
      %p123 = scmp.eq.s32.totalorder %s31, 0
      %p124 = por %p122, %p123
      %s125 = ssub.s32 %s32, %s44
      %s126 = ssub.s32 %s33, %s40
      %s127 = sor.u32 %s125, %s126
      %p128 = scmp.eq.s32.totalorder %s127, 0
      %s130 = sadd.s32 %s129, 1
      %s131 = scalar_select %p128, %s129, %s130
      %p134 = pneg %p128
      %p135 = scmp.eq.s32.totalorder %s25, 1
      %p136 = por %p134, %p135
      %p137 = scmp.ne.s32.totalorder %s129, %s132
      %p138 = scmp.eq.s32.totalorder %s25, 0
      %p139 = por %p137, %p138
      %p140 = scmp.ne.s32.totalorder %s129, %s132
      %p141 = scmp.eq.s32.totalorder %s30, 1
      %p142 = por %p140, %p141
      %p143 = scmp.ne.s32.totalorder %s132, %s133
      %p144 = scmp.eq.s32.totalorder %s30, 0
      %p145 = por %p143, %p144
      %p146 = scmp.ne.s32.totalorder %s132, %s133
      %p147 = scmp.eq.s32.totalorder %s31, 1
      %p148 = por %p146, %p147
      %p150 = scmp.ne.s32.totalorder %s133, %s149
      %p151 = scmp.eq.s32.totalorder %s31, 0
      %p152 = por %p150, %p151
      %s153 = ssub.s32 %s32, %s44
      %s154 = ssub.s32 %s33, %s40
      %s155 = sor.u32 %s153, %s154
      %p156 = scmp.eq.s32.totalorder %s155, 0
      %s158 = sadd.s32 %s157, 1
      %s159 = scalar_select %p156, %s157, %s158
      %p162 = pneg %p156
      %p163 = scmp.eq.s32.totalorder %s25, 1
      %p164 = por %p162, %p163
      %p165 = scmp.ne.s32.totalorder %s157, %s160
      %p166 = scmp.eq.s32.totalorder %s25, 0
      %p167 = por %p165, %p166
      %p168 = scmp.ne.s32.totalorder %s157, %s160
      %p169 = scmp.eq.s32.totalorder %s30, 1
      %p170 = por %p168, %p169
      %p171 = scmp.ne.s32.totalorder %s160, %s161
      %p172 = scmp.eq.s32.totalorder %s30, 0
      %p173 = por %p171, %p172
      %p174 = scmp.ne.s32.totalorder %s160, %s161
      %p175 = scmp.eq.s32.totalorder %s31, 1
      %p176 = por %p174, %p175
      %p178 = scmp.ne.s32.totalorder %s161, %s177
      %p179 = scmp.eq.s32.totalorder %s31, 0
      %p180 = por %p178, %p179
      %s181 = ssub.s32 %s32, %s44
      %p182 = scmp.eq.s32.totalorder %s181, 0
      %s184 = sadd.s32 %s183, 1
      %s185 = scalar_select %p182, %s183, %s184
      %p188 = pneg %p182
      %p189 = scmp.eq.s32.totalorder %s25, 1
      %p190 = por %p188, %p189
      %p191 = scmp.ne.s32.totalorder %s183, %s186
      %p192 = scmp.eq.s32.totalorder %s25, 0
      %p193 = por %p191, %p192
      %p194 = scmp.ne.s32.totalorder %s183, %s186
      %p195 = scmp.eq.s32.totalorder %s30, 1
      %p196 = por %p194, %p195
      %p197 = scmp.ne.s32.totalorder %s186, %s187
      %p198 = scmp.eq.s32.totalorder %s30, 0
      %p199 = por %p197, %p198
      %p200 = scmp.ne.s32.totalorder %s186, %s187
      %p201 = scmp.eq.s32.totalorder %s31, 1
      %p202 = por %p200, %p201
      %p204 = scmp.ne.s32.totalorder %s187, %s203
      %p205 = scmp.eq.s32.totalorder %s31, 0
      %p206 = por %p204, %p205
      %s207 = ssub.s32 %s32, %s44
      %p208 = scmp.eq.s32.totalorder %s207, 0
      %s210 = sadd.s32 %s209, 1
      %s211 = scalar_select %p208, %s209, %s210
      %p214 = pneg %p208
      %p215 = scmp.eq.s32.totalorder %s25, 1
      %p216 = por %p214, %p215
      %p217 = scmp.ne.s32.totalorder %s209, %s212
      %p218 = scmp.eq.s32.totalorder %s25, 0
      %p219 = por %p217, %p218
      %p220 = scmp.ne.s32.totalorder %s209, %s212
      %p221 = scmp.eq.s32.totalorder %s30, 1
      %p222 = por %p220, %p221
      %p223 = scmp.ne.s32.totalorder %s212, %s213
      %p224 = scmp.eq.s32.totalorder %s30, 0
      %p225 = por %p223, %p224
      %p226 = scmp.ne.s32.totalorder %s212, %s213
      %p227 = scmp.eq.s32.totalorder %s31, 1
      %p228 = por %p226, %p227
      %p230 = scmp.ne.s32.totalorder %s213, %s229
      %p231 = scmp.eq.s32.totalorder %s31, 0
      %p232 = por %p230, %p231
      %s234 = sadd.s32 %s233, 1
      %p237 = scmp.eq.s32.totalorder %s25, 1
      %p238 = scmp.ne.s32.totalorder %s233, %s235
      %p239 = scmp.eq.s32.totalorder %s25, 0
      %p240 = por %p238, %p239
      %p241 = scmp.ne.s32.totalorder %s233, %s235
      %p242 = scmp.eq.s32.totalorder %s30, 1
      %p243 = por %p241, %p242
      %p244 = scmp.ne.s32.totalorder %s235, %s236
      %p245 = scmp.eq.s32.totalorder %s30, 0
      %p246 = por %p244, %p245
      %p247 = scmp.ne.s32.totalorder %s235, %s236
      %p248 = scmp.eq.s32.totalorder %s31, 1
      %p249 = por %p247, %p248
      %p251 = scmp.ne.s32.totalorder %s236, %s250
      %p252 = scmp.eq.s32.totalorder %s31, 0
      %p253 = por %p251, %p252
      %s255 = sadd.s32 %s254, 1
      %p258 = scmp.eq.s32.totalorder %s25, 1
      %p259 = scmp.ne.s32.totalorder %s254, %s256
      %p260 = scmp.eq.s32.totalorder %s25, 0
      %p261 = por %p259, %p260
      %p262 = scmp.ne.s32.totalorder %s254, %s256
      %p263 = scmp.eq.s32.totalorder %s30, 1
      %p264 = por %p262, %p263
      %p265 = scmp.ne.s32.totalorder %s256, %s257
      %p266 = scmp.eq.s32.totalorder %s30, 0
      %p267 = por %p265, %p266
      %p268 = scmp.ne.s32.totalorder %s256, %s257
      %p269 = scmp.eq.s32.totalorder %s31, 1
      %p270 = por %p268, %p269
      %p272 = scmp.ne.s32.totalorder %s257, %s271
      %p273 = scmp.eq.s32.totalorder %s31, 0
      %p274 = por %p272, %p273
      %s276 = sadd.s32 %s275, 1
      %p279 = scmp.eq.s32.totalorder %s25, 1
      %p280 = scmp.ne.s32.totalorder %s275, %s277
      %p281 = scmp.eq.s32.totalorder %s25, 0
      %p282 = por %p280, %p281
      %p283 = scmp.ne.s32.totalorder %s275, %s277
      %p284 = scmp.eq.s32.totalorder %s30, 1
      %p285 = por %p283, %p284
      %p286 = scmp.ne.s32.totalorder %s277, %s278
      %p287 = scmp.eq.s32.totalorder %s30, 0
      %p288 = por %p286, %p287
      %p289 = scmp.ne.s32.totalorder %s277, %s278
      %p290 = scmp.eq.s32.totalorder %s31, 1
      %p291 = por %p289, %p290
      %p293 = scmp.ne.s32.totalorder %s278, %s292
      %p294 = scmp.eq.s32.totalorder %s31, 0
      %p295 = por %p293, %p294
      %s297 = sadd.s32 %s296, 1
      %p300 = scmp.eq.s32.totalorder %s25, 1
      %p301 = scmp.ne.s32.totalorder %s296, %s298
      %p302 = scmp.eq.s32.totalorder %s25, 0
      %p303 = por %p301, %p302
      %p304 = scmp.ne.s32.totalorder %s296, %s298
      %p305 = scmp.eq.s32.totalorder %s30, 1
      %p306 = por %p304, %p305
      %p307 = scmp.ne.s32.totalorder %s298, %s299
      %p308 = scmp.eq.s32.totalorder %s30, 0
      %p309 = por %p307, %p308
      %p310 = scmp.ne.s32.totalorder %s298, %s299
      %p311 = scmp.eq.s32.totalorder %s31, 1
      %p312 = por %p310, %p311
      %p314 = scmp.ne.s32.totalorder %s299, %s313
      %p315 = scmp.eq.s32.totalorder %s31, 0
      %p316 = por %p314, %p315
      %s318 = sadd.s32 %s317, 1
      %p321 = scmp.eq.s32.totalorder %s25, 1
      %p322 = scmp.ne.s32.totalorder %s317, %s319
      %p323 = scmp.eq.s32.totalorder %s25, 0
      %p324 = por %p322, %p323
      %p325 = scmp.ne.s32.totalorder %s317, %s319
      %p326 = scmp.eq.s32.totalorder %s30, 1
      %p327 = por %p325, %p326
      %p328 = scmp.ne.s32.totalorder %s319, %s320
      %p329 = scmp.eq.s32.totalorder %s30, 0
      %p330 = por %p328, %p329
      %p331 = scmp.ne.s32.totalorder %s319, %s320
      %p332 = scmp.eq.s32.totalorder %s31, 1
      %p333 = por %p331, %p332
      %p335 = scmp.ne.s32.totalorder %s320, %s334
      %p336 = scmp.eq.s32.totalorder %s31, 0
      %p337 = por %p335, %p336
      %s339 = sadd.s32 %s338, 1
      %p342 = scmp.eq.s32.totalorder %s25, 1
      %p343 = scmp.ne.s32.totalorder %s338, %s340
      %p344 = scmp.eq.s32.totalorder %s25, 0
      %p345 = por %p343, %p344
      %p346 = scmp.ne.s32.totalorder %s338, %s340
      %p347 = scmp.eq.s32.totalorder %s30, 1
      %p348 = por %p346, %p347
      %p349 = scmp.ne.s32.totalorder %s340, %s341
      %p350 = scmp.eq.s32.totalorder %s30, 0
      %p351 = por %p349, %p350
      %p352 = scmp.ne.s32.totalorder %s340, %s341
      %p353 = scmp.eq.s32.totalorder %s31, 1
      %p354 = por %p352, %p353
      %p356 = scmp.ne.s32.totalorder %s341, %s355
      %p357 = scmp.eq.s32.totalorder %s31, 0
      %p358 = por %p356, %p357
      %s360 = sadd.s32 %s359, 1
      %p363 = scmp.eq.s32.totalorder %s25, 1
      %p364 = scmp.ne.s32.totalorder %s359, %s361
      %p365 = scmp.eq.s32.totalorder %s25, 0
      %p366 = por %p364, %p365
      %p367 = scmp.ne.s32.totalorder %s359, %s361
      %p368 = scmp.eq.s32.totalorder %s30, 1
      %p369 = por %p367, %p368
      %p370 = scmp.ne.s32.totalorder %s361, %s362
      %p371 = scmp.eq.s32.totalorder %s30, 0
      %p372 = por %p370, %p371
      %p373 = scmp.ne.s32.totalorder %s361, %s362
      %p374 = scmp.eq.s32.totalorder %s31, 1
      %p375 = por %p373, %p374
      %p377 = scmp.ne.s32.totalorder %s362, %s376
      %p378 = scmp.eq.s32.totalorder %s31, 0
      %p379 = por %p377, %p378
      %s381 = sadd.s32 %s380, 1
      %p384 = scmp.eq.s32.totalorder %s25, 1
      %p385 = scmp.ne.s32.totalorder %s380, %s382
      %p386 = scmp.eq.s32.totalorder %s25, 0
      %p387 = por %p385, %p386
      %p388 = scmp.ne.s32.totalorder %s380, %s382
      %p389 = scmp.eq.s32.totalorder %s30, 1
      %p390 = por %p388, %p389
      %p391 = scmp.ne.s32.totalorder %s382, %s383
      %p392 = scmp.eq.s32.totalorder %s30, 0
      %p393 = por %p391, %p392
      %p394 = scmp.ne.s32.totalorder %s382, %s383
      %p395 = scmp.eq.s32.totalorder %s31, 1
      %p396 = por %p394, %p395
      %p398 = scmp.ne.s32.totalorder %s383, %s397
      %p399 = scmp.eq.s32.totalorder %s31, 0
      %p400 = por %p398, %p399
      %s402 = sadd.s32 %s401, 1
      %p405 = scmp.eq.s32.totalorder %s25, 1
      %p406 = scmp.ne.s32.totalorder %s401, %s403
      %p407 = scmp.eq.s32.totalorder %s25, 0
      %p408 = por %p406, %p407
      %p409 = scmp.ne.s32.totalorder %s401, %s403
      %p410 = scmp.eq.s32.totalorder %s30, 1
      %p411 = por %p409, %p410
      %p412 = scmp.ne.s32.totalorder %s403, %s404
      %p413 = scmp.eq.s32.totalorder %s30, 0
      %p414 = por %p412, %p413
      %p415 = scmp.ne.s32.totalorder %s403, %s404
      %p416 = scmp.eq.s32.totalorder %s31, 1
      %p417 = por %p415, %p416
      %p419 = scmp.ne.s32.totalorder %s404, %s418
      %p420 = scmp.eq.s32.totalorder %s31, 0
      %p421 = por %p419, %p420
      %s422 = ssub.s32 %s32, %s44
      %s423 = ssub.s32 %s33, %s40
      %s424 = sor.u32 %s422, %s423
      %p425 = scmp.eq.s32.totalorder %s424, 0
      %s427 = sadd.s32 %s426, 1
      %s428 = scalar_select %p425, %s426, %s427
      %p431 = pneg %p425
      %p432 = scmp.eq.s32.totalorder %s25, 1
      %p433 = por %p431, %p432
      %p434 = scmp.ne.s32.totalorder %s426, %s429
      %p435 = scmp.eq.s32.totalorder %s25, 0
      %p436 = por %p434, %p435
      %p437 = scmp.ne.s32.totalorder %s426, %s429
      %p438 = scmp.eq.s32.totalorder %s30, 1
      %p439 = por %p437, %p438
      %p440 = scmp.ne.s32.totalorder %s429, %s430
      %p441 = scmp.eq.s32.totalorder %s30, 0
      %p442 = por %p440, %p441
      %p443 = scmp.ne.s32.totalorder %s429, %s430
      %p444 = scmp.eq.s32.totalorder %s31, 1
      %p445 = por %p443, %p444
      %p447 = scmp.ne.s32.totalorder %s430, %s446
      %p448 = scmp.eq.s32.totalorder %s31, 0
      %p449 = por %p447, %p448
      %p450 = scmp.le.s32.totalorder 1, %s25
      %p451 = scmp.lt.s32.totalorder %s25, 3
      %p452 = pnand %p450, %p451
      %p453 = pneg %p452
      // Predicated region
      $region9: #{decoupling_forward_pallas.3} parent=5 // pred_check
        _
      $region10: #{decoupling_forward_pallas.3} parent=5 // pred_check_branch
        %455 = sbr.rel (%p452) target = $region12
      $region11: #{decoupling_forward_pallas.3} parent=5 // pred_region
        %s456 = ssub.s32 %s25, 1
        // Predicated region
        $region13: #{decoupling_forward_pallas.3} parent=11 // pred_check
          %p457 = pneg %p246
        $region14: #{decoupling_forward_pallas.3} parent=11 // pred_check_branch
          %459 = sbr.rel (%p457) target = $region16
        $region15: #{decoupling_forward_pallas.3} parent=11 // pred_region
          _
        $region16: #{decoupling_forward_pallas.3} parent=11 // pred_fallthru
          _
        // Predicated region
        $region17: #{decoupling_forward_pallas.3} parent=11 // pred_check
          %p460 = pneg %p267
        $region18: #{decoupling_forward_pallas.3} parent=11 // pred_check_branch
          %462 = sbr.rel (%p460) target = $region20
        $region19: #{decoupling_forward_pallas.3} parent=11 // pred_region
          _
        $region20: #{decoupling_forward_pallas.3} parent=11 // pred_fallthru
          _
        // Predicated region
        $region21: #{decoupling_forward_pallas.3} parent=11 // pred_check
          %p463 = pneg %p288
        $region22: #{decoupling_forward_pallas.3} parent=11 // pred_check_branch
          %465 = sbr.rel (%p463) target = $region24
        $region23: #{decoupling_forward_pallas.3} parent=11 // pred_region
          _
        $region24: #{decoupling_forward_pallas.3} parent=11 // pred_fallthru
          _
        // Predicated region
        $region25: #{decoupling_forward_pallas.3} parent=11 // pred_check
          %p466 = pneg %p309
        $region26: #{decoupling_forward_pallas.3} parent=11 // pred_check_branch
          %468 = sbr.rel (%p466) target = $region28
        $region27: #{decoupling_forward_pallas.3} parent=11 // pred_region
          _
        $region28: #{decoupling_forward_pallas.3} parent=11 // pred_fallthru
          _
        // Predicated region
        $region29: #{decoupling_forward_pallas.3} parent=11 // pred_check
          %p469 = pneg %p330
        $region30: #{decoupling_forward_pallas.3} parent=11 // pred_check_branch
          %471 = sbr.rel (%p469) target = $region32
        $region31: #{decoupling_forward_pallas.3} parent=11 // pred_region
          _
        $region32: #{decoupling_forward_pallas.3} parent=11 // pred_fallthru
          _
        // Predicated region
        $region33: #{decoupling_forward_pallas.3} parent=11 // pred_check
          %p472 = pneg %p351
        $region34: #{decoupling_forward_pallas.3} parent=11 // pred_check_branch
          %474 = sbr.rel (%p472) target = $region36
        $region35: #{decoupling_forward_pallas.3} parent=11 // pred_region
          _
        $region36: #{decoupling_forward_pallas.3} parent=11 // pred_fallthru
          _
        // Predicated region
        $region37: #{decoupling_forward_pallas.3} parent=11 // pred_check
          %p475 = pneg %p372
        $region38: #{decoupling_forward_pallas.3} parent=11 // pred_check_branch
          %477 = sbr.rel (%p475) target = $region40
        $region39: #{decoupling_forward_pallas.3} parent=11 // pred_region
          _
        $region40: #{decoupling_forward_pallas.3} parent=11 // pred_fallthru
          _
        // Predicated region
        $region41: #{decoupling_forward_pallas.3} parent=11 // pred_check
          %p478 = pneg %p393
        $region42: #{decoupling_forward_pallas.3} parent=11 // pred_check_branch
          %480 = sbr.rel (%p478) target = $region44
        $region43: #{decoupling_forward_pallas.3} parent=11 // pred_region
          _
        $region44: #{decoupling_forward_pallas.3} parent=11 // pred_fallthru
          _
        // Predicated region
        $region45: #{decoupling_forward_pallas.3} parent=11 // pred_check
          %p481 = pneg %p414
        $region46: #{decoupling_forward_pallas.3} parent=11 // pred_check_branch
          %483 = sbr.rel (%p481) target = $region48
        $region47: #{decoupling_forward_pallas.3} parent=11 // pred_region
          _
        $region48: #{decoupling_forward_pallas.3} parent=11 // pred_fallthru
          _
      $region12: #{decoupling_forward_pallas.3} parent=5 // pred_fallthru
        _
      %p484 = scmp.lt.s32.totalorder %s25, 2
      // Predicated region
      $region49: #{decoupling_forward_pallas.3} parent=5 // pred_check
        %p485 = pneg %p484
      $region50: #{decoupling_forward_pallas.3} parent=5 // pred_check_branch
        %487 = sbr.rel (%p485) target = $region52
      $region51: #{decoupling_forward_pallas.3} parent=5 // pred_region
        // Predicated region
        $region53: #{decoupling_forward_pallas.3} parent=51 // pred_check
          %p488 = pneg %p59
        $region54: #{decoupling_forward_pallas.3} parent=51 // pred_check_branch
          %490 = sbr.rel (%p488) target = $region56
        $region55: #{decoupling_forward_pallas.3} parent=51 // pred_region
          %s491 = smul.u32 2, %s33
          %p492 = scmp.lt.s32.totalorder %s32, 1
          %s493 = scalar_select %p492, %s32, 1
          %p494 = scmp.lt.s32.totalorder %s491, 1
          %s495 = scalar_select %p494, %s491, 1
          %s496 = smul.addr %s493, 2
          %s497 = sadd.s32 %s495, %s496
          %s498 = smul.addr %s497, 4
          %s499 = scalar_lea.vmem %s0, %s498
          %s500 = smul.u32 2, %s33
        $region56: #{decoupling_forward_pallas.3} parent=51 // pred_fallthru
          _
        // Predicated region
        $region57: #{decoupling_forward_pallas.3} parent=51 // pred_check
          %p501 = pneg %p85
        $region58: #{decoupling_forward_pallas.3} parent=51 // pred_check_branch
          %503 = sbr.rel (%p501) target = $region60
        $region59: #{decoupling_forward_pallas.3} parent=51 // pred_region
          %p504 = scmp.lt.s32.totalorder %s32, 1
          %s505 = scalar_select %p504, %s32, 1
          %s506 = smul.addr %s505, 12
          %s507 = smul.addr %s506, 4
          %s508 = scalar_lea.vmem %s1, %s507
        $region60: #{decoupling_forward_pallas.3} parent=51 // pred_fallthru
          _
        // Predicated region
        $region61: #{decoupling_forward_pallas.3} parent=51 // pred_check
          %p509 = pneg %p111
        $region62: #{decoupling_forward_pallas.3} parent=51 // pred_check_branch
          %511 = sbr.rel (%p509) target = $region64
        $region63: #{decoupling_forward_pallas.3} parent=51 // pred_region
          %p512 = scmp.lt.s32.totalorder %s32, 1
          %s513 = scalar_select %p512, %s32, 1
          %s514 = smul.addr %s513, 12
          %s515 = smul.addr %s514, 4
          %s516 = scalar_lea.vmem %s2, %s515
        $region64: #{decoupling_forward_pallas.3} parent=51 // pred_fallthru
          _
        // Predicated region
        $region65: #{decoupling_forward_pallas.3} parent=51 // pred_check
          %p517 = pneg %p139
        $region66: #{decoupling_forward_pallas.3} parent=51 // pred_check_branch
          %519 = sbr.rel (%p517) target = $region68
        $region67: #{decoupling_forward_pallas.3} parent=51 // pred_region
          %s520 = smul.u32 2, %s33
          %p521 = scmp.lt.s32.totalorder %s32, 1
          %s522 = scalar_select %p521, %s32, 1
          %p523 = scmp.lt.s32.totalorder %s520, 1
          %s524 = scalar_select %p523, %s520, 1
          %s525 = smul.addr %s522, 2
          %s526 = sadd.s32 %s524, %s525
          %s527 = smul.addr %s526, 8
          %s528 = scalar_lea.vmem %s3, %s527
          %s529 = smul.u32 2, %s33
        $region68: #{decoupling_forward_pallas.3} parent=51 // pred_fallthru
          _
        // Predicated region
        $region69: #{decoupling_forward_pallas.3} parent=51 // pred_check
          %p530 = pneg %p167
        $region70: #{decoupling_forward_pallas.3} parent=51 // pred_check_branch
          %532 = sbr.rel (%p530) target = $region72
        $region71: #{decoupling_forward_pallas.3} parent=51 // pred_region
          %s533 = smul.u32 2, %s33
          %p534 = scmp.lt.s32.totalorder %s32, 1
          %s535 = scalar_select %p534, %s32, 1
          %p536 = scmp.lt.s32.totalorder %s533, 1
          %s537 = scalar_select %p536, %s533, 1
          %s538 = smul.addr %s535, 2
          %s539 = sadd.s32 %s537, %s538
          %s540 = smul.addr %s539, 8
          %s541 = scalar_lea.vmem %s4, %s540
          %s542 = smul.u32 2, %s33
        $region72: #{decoupling_forward_pallas.3} parent=51 // pred_fallthru
          _
        // Predicated region
        $region73: #{decoupling_forward_pallas.3} parent=51 // pred_check
          %p543 = pneg %p193
        $region74: #{decoupling_forward_pallas.3} parent=51 // pred_check_branch
          %545 = sbr.rel (%p543) target = $region76
        $region75: #{decoupling_forward_pallas.3} parent=51 // pred_region
          %p546 = scmp.lt.s32.totalorder %s32, 1
          %s547 = scalar_select %p546, %s32, 1
          %s548 = smul.addr %s547, 12
          %s549 = smul.addr %s548, 8
          %s550 = scalar_lea.vmem %s5, %s549
        $region76: #{decoupling_forward_pallas.3} parent=51 // pred_fallthru
          _
        // Predicated region
        $region77: #{decoupling_forward_pallas.3} parent=51 // pred_check
          %p551 = pneg %p219
        $region78: #{decoupling_forward_pallas.3} parent=51 // pred_check_branch
          %553 = sbr.rel (%p551) target = $region80
        $region79: #{decoupling_forward_pallas.3} parent=51 // pred_region
          %p554 = scmp.lt.s32.totalorder %s32, 1
          %s555 = scalar_select %p554, %s32, 1
          %s556 = smul.addr %s555, 12
          %s557 = smul.addr %s556, 8
          %s558 = scalar_lea.vmem %s6, %s557
        $region80: #{decoupling_forward_pallas.3} parent=51 // pred_fallthru
          _
      $region52: #{decoupling_forward_pallas.3} parent=5 // pred_fallthru
        _
      %p559 = scmp.le.s32.totalorder 1, %s25
      %p560 = scmp.lt.s32.totalorder %s25, 3
      %p561 = pnand %p559, %p560
      %p562 = pneg %p561
      // Predicated region
      $region81: #{decoupling_forward_pallas.3} parent=5 // pred_check
        _
      $region82: #{decoupling_forward_pallas.3} parent=5 // pred_check_branch
        %564 = sbr.rel (%p561) target = $region84
      $region83: #{decoupling_forward_pallas.3} parent=5 // pred_region
        %s565 = ssub.s32 %s25, 1
        %s566 = smul.u32 2, %s35
        %p567 = scmp.lt.s32.totalorder %s34, 1
        %s568 = scalar_select %p567, %s34, 1
        %p569 = scmp.lt.s32.totalorder %s566, 1
        %s570 = scalar_select %p569, %s566, 1
        %s571 = smul.addr %s568, 2
        %s572 = sadd.s32 %s570, %s571
        %s573 = smul.addr %s572, 4
        %s574 = scalar_lea.vmem %s0, %s573
        %p575 = pneg %p65
        %p576 = pneg %p62
        %p577 = scmp.lt.s32.totalorder %s34, 1
        %s578 = scalar_select %p577, %s34, 1
        %s579 = smul.addr %s578, 12
        %s580 = smul.addr %s579, 4
        %s581 = scalar_lea.vmem %s1, %s580
        %p582 = pneg %p91
        %p583 = pneg %p88
        %p584 = scmp.lt.s32.totalorder %s34, 1
        %s585 = scalar_select %p584, %s34, 1
        %s586 = smul.addr %s585, 12
        %s587 = smul.addr %s586, 4
        %s588 = scalar_lea.vmem %s2, %s587
        %p589 = pneg %p117
        %p590 = pneg %p114
        %s591 = smul.u32 2, %s35
        %p592 = scmp.lt.s32.totalorder %s34, 1
        %s593 = scalar_select %p592, %s34, 1
        %p594 = scmp.lt.s32.totalorder %s591, 1
        %s595 = scalar_select %p594, %s591, 1
        %s596 = smul.addr %s593, 2
        %s597 = sadd.s32 %s595, %s596
        %s598 = smul.addr %s597, 8
        %s599 = scalar_lea.vmem %s3, %s598
        %p600 = pneg %p145
        %p601 = pneg %p142
        %s602 = smul.u32 2, %s35
        %p603 = scmp.lt.s32.totalorder %s34, 1
        %s604 = scalar_select %p603, %s34, 1
        %p605 = scmp.lt.s32.totalorder %s602, 1
        %s606 = scalar_select %p605, %s602, 1
        %s607 = smul.addr %s604, 2
        %s608 = sadd.s32 %s606, %s607
        %s609 = smul.addr %s608, 8
        %s610 = scalar_lea.vmem %s4, %s609
        %p611 = pneg %p173
        %p612 = pneg %p170
        %p613 = scmp.lt.s32.totalorder %s34, 1
        %s614 = scalar_select %p613, %s34, 1
        %s615 = smul.addr %s614, 12
        %s616 = smul.addr %s615, 8
        %s617 = scalar_lea.vmem %s5, %s616
        %p618 = pneg %p199
        %p619 = pneg %p196
        %p620 = scmp.lt.s32.totalorder %s34, 1
        %s621 = scalar_select %p620, %s34, 1
        %s622 = smul.addr %s621, 12
        %s623 = smul.addr %s622, 8
        %s624 = scalar_lea.vmem %s6, %s623
        %p625 = pneg %p225
        %p626 = pneg %p222
        %p627 = pneg %p246
        %p628 = pneg %p243
        %p629 = pneg %p267
        %p630 = pneg %p264
        %p631 = pneg %p288
        %p632 = pneg %p285
        %p633 = pneg %p309
        %p634 = pneg %p306
        %p635 = pneg %p330
        %p636 = pneg %p327
        %p637 = pneg %p351
        %p638 = pneg %p348
        %p639 = pneg %p372
        %p640 = pneg %p369
        %p641 = pneg %p393
        %p642 = pneg %p390
        %p643 = pneg %p414
        %p644 = pneg %p411
        %p645 = pneg %p442
        %p646 = pneg %p439
        %s647 = sand.u32 %s429, 1
        %s648 = scalar_lea.sflag [#allocation6], %s647
        %s649 = sand.u32 %s429, 1
        %s650 = smul.addr %s649, 16
        %s651 = scalar_lea.vmem [#allocation5], %s650
        %s652 = smul.u32 2, %s35
        %p653 = scmp.lt.s32.totalorder %s34, 1
        %s654 = scalar_select %p653, %s34, 1
        %p655 = scmp.lt.s32.totalorder %s652, 1
        %s656 = scalar_select %p655, %s652, 1
        %s657 = smul.addr %s654, 2
        %s658 = sadd.s32 %s656, %s657
        %s659 = smul.addr %s658, 4
        %s660 = scalar_lea.vmem %s0, %s659
        %s661 = smul.u32 2, %s35
        %p662 = scmp.lt.s32.totalorder %s34, 1
        %s663 = scalar_select %p662, %s34, 1
        %s664 = smul.addr %s663, 12
        %s665 = smul.addr %s664, 4
        %s666 = scalar_lea.vmem %s1, %s665
        %p667 = scmp.lt.s32.totalorder %s34, 1
        %s668 = scalar_select %p667, %s34, 1
        %s669 = smul.addr %s668, 12
        %s670 = smul.addr %s669, 4
        %s671 = scalar_lea.vmem %s2, %s670
        %s672 = smul.u32 2, %s35
        %p673 = scmp.lt.s32.totalorder %s34, 1
        %s674 = scalar_select %p673, %s34, 1
        %p675 = scmp.lt.s32.totalorder %s672, 1
        %s676 = scalar_select %p675, %s672, 1
        %s677 = smul.addr %s674, 2
        %s678 = sadd.s32 %s676, %s677
        %s679 = smul.addr %s678, 8
        %s680 = scalar_lea.vmem %s3, %s679
        %s681 = smul.u32 2, %s35
        %s682 = smul.u32 2, %s35
        %p683 = scmp.lt.s32.totalorder %s34, 1
        %s684 = scalar_select %p683, %s34, 1
        %p685 = scmp.lt.s32.totalorder %s682, 1
        %s686 = scalar_select %p685, %s682, 1
        %s687 = smul.addr %s684, 2
        %s688 = sadd.s32 %s686, %s687
        %s689 = smul.addr %s688, 8
        %s690 = scalar_lea.vmem %s4, %s689
        %s691 = smul.u32 2, %s35
        %p692 = scmp.lt.s32.totalorder %s34, 1
        %s693 = scalar_select %p692, %s34, 1
        %s694 = smul.addr %s693, 12
        %s695 = smul.addr %s694, 8
        %s696 = scalar_lea.vmem %s5, %s695
        %p697 = scmp.lt.s32.totalorder %s34, 1
        %s698 = scalar_select %p697, %s34, 1
        %s699 = smul.addr %s698, 12
        %s700 = smul.addr %s699, 8
        %s701 = scalar_lea.vmem %s6, %s700
        %s702 = smul.u32 2, %s35
        %p704 = scmp.eq.s32.totalorder %s35, 0
        // Predicated region
        $region85: #{decoupling_forward_pallas.3} parent=83 // pred_check
          %p705 = pneg %p704
        $region86: #{decoupling_forward_pallas.3} parent=83 // pred_check_branch
          %707 = sbr.rel (%p705) target = $region88
        $region87: #{decoupling_forward_pallas.3} parent=83 // pred_region
          %v708 = vld [vmem:[%s666] sm:$0xf]
          %v709 = vld [vmem:[%s666 + $0x4] sm:$0xf]
          %v710 = vld [vmem:[%s666 + $0x8] sm:$0xf]
          %v711 = vld [vmem:[%s666 + $0xc] sm:$0xf]
          %v712 = vld [vmem:[%s666 + $0x10] sm:$0xf]
          %v713 = vld [vmem:[%s666 + $0x14] sm:$0xf]
          %v714 = vld [vmem:[%s666 + $0x18] sm:$0xf]
          %v715 = vld [vmem:[%s666 + $0x1c] sm:$0xf]
          %v716 = vld [vmem:[%s666 + $0x20] sm:$0xf]
          %v717 = vld [vmem:[%s666 + $0x24] sm:$0xf]
          %v718 = vld [vmem:[%s666 + $0x28] sm:$0xf]
          %v719 = vld [vmem:[%s666 + $0x2c] sm:$0xf]
          %v720 = vld [vmem:[%s9] sm:$0xf]
          %v721 = vld [vmem:[%s9 + $0x4] sm:$0xf]
          %v722 = vld [vmem:[%s9 + $0x8] sm:$0xf]
          %v723 = vld [vmem:[%s9 + $0xc] sm:$0xf]
          %v724 = vld [vmem:[%s10] sm:$0x1]
          %v726 = vperm.slane %v724, 0
          %v740 = vunpack.c.l.b16 %v708
          %v741 = vunpack.c.l.b16 %v709
          %v742 = vunpack.c.l.b16 %v710
          %v743 = vunpack.c.l.b16 %v711
          %v744 = vunpack.c.l.b16 %v712
          %v745 = vunpack.c.l.b16 %v713
          %v746 = vunpack.c.l.b16 %v714
          %v747 = vunpack.c.l.b16 %v715
          %v748 = vunpack.c.l.b16 %v716
          %v749 = vunpack.c.l.b16 %v717
          %v750 = vunpack.c.l.b16 %v718
          %v751 = vunpack.c.l.b16 %v719
          %v752 = vpack.c.b16 %v741, %v740
          %v753 = vpack.c.b16 %v743, %v742
          %v754 = vpack.c.b16 %v745, %v744
          %v755 = vpack.c.b16 %v747, %v746
          %v756 = vpack.c.b16 %v749, %v748
          %v757 = vpack.c.b16 %v751, %v750
          %v762 = vunpack.c.l.b16 %v720
          %v763 = vunpack.c.l.b16 %v721
          %v764 = vunpack.c.l.b16 %v722
          %v765 = vunpack.c.l.b16 %v723
          %v766 = vpack.c.b16 %v763, %v762
          %v767 = vpack.c.b16 %v765, %v764
          %vm770 = vcmask 261120
          %v772 = vsel %vm770, %v752, 0
          %v775 = vsel %vm770, %v753, 0
          %v778 = vsel %vm770, %v754, 0
          %v781 = vsel %vm770, %v755, 0
          %v784 = vsel %vm770, %v756, 0
          %v787 = vsel %vm770, %v757, 0
          %789 = vmatpush.bf16.msra.mxu0 0
          %790 = vmatpush.bf16.msra.mxu0 0
          %791 = vmatpush.bf16.msra.mxu0 0
          %792 = vmatpush.bf16.msra.mxu0 0
          %793 = vmatpush.bf16.msra.mxu0 0
          %794 = vmatpush.bf16.msra.mxu0 0
          %795 = vmatpush.bf16.msra.mxu0 %v767
          %796 = vmatpush.bf16.msra.mxu0 %v766
          %797 = vmatmul.bf16.gmra.mxu0 %v772
          %v798 = vpop.f32.mrf.mxu0
          %v799 = vadd.f32 %v726, %v798
          %v800 = vpop.f32.mrf.mxu0
          %v801 = vadd.f32 %v726, %v800
          %802 = vmatmul.bf16.gmra.mxu0 %v775
          %v803 = vpop.f32.mrf.mxu0
          %v804 = vadd.f32 %v726, %v803
          %v805 = vpop.f32.mrf.mxu0
          %v806 = vadd.f32 %v726, %v805
          %807 = vmatmul.bf16.gmra.mxu0 %v778
          %v808 = vpop.f32.mrf.mxu0
          %v809 = vadd.f32 %v726, %v808
          %v810 = vpop.f32.mrf.mxu0
          %v811 = vadd.f32 %v726, %v810
          %812 = vmatmul.bf16.gmra.mxu0 %v781
          %v813 = vpop.f32.mrf.mxu0
          %v814 = vadd.f32 %v726, %v813
          %v815 = vpop.f32.mrf.mxu0
          %v816 = vadd.f32 %v726, %v815
          %817 = vmatmul.bf16.gmra.mxu0 %v784
          %v818 = vpop.f32.mrf.mxu0
          %v819 = vadd.f32 %v726, %v818
          %v820 = vpop.f32.mrf.mxu0
          %v821 = vadd.f32 %v726, %v820
          %822 = vmatmul.bf16.gmra.mxu0 %v787
          %v823 = vpop.f32.mrf.mxu0
          %v824 = vadd.f32 %v726, %v823
          %v825 = vpop.f32.mrf.mxu0
          %v826 = vadd.f32 %v726, %v825
          %827 = vdwg.mxu0
          %v828 = vld [vmem:[%s671] sm:$0xf]
          %v829 = vld [vmem:[%s671 + $0x4] sm:$0xf]
          %v830 = vld [vmem:[%s671 + $0x8] sm:$0xf]
          %v831 = vld [vmem:[%s671 + $0xc] sm:$0xf]
          %v832 = vld [vmem:[%s671 + $0x10] sm:$0xf]
          %v833 = vld [vmem:[%s671 + $0x14] sm:$0xf]
          %v834 = vld [vmem:[%s671 + $0x18] sm:$0xf]
          %v835 = vld [vmem:[%s671 + $0x1c] sm:$0xf]
          %v836 = vld [vmem:[%s671 + $0x20] sm:$0xf]
          %v837 = vld [vmem:[%s671 + $0x24] sm:$0xf]
          %v838 = vld [vmem:[%s671 + $0x28] sm:$0xf]
          %v839 = vld [vmem:[%s671 + $0x2c] sm:$0xf]
          %v840 = vld [vmem:[%s11] sm:$0xf]
          %v841 = vld [vmem:[%s11 + $0x4] sm:$0xf]
          %v842 = vld [vmem:[%s11 + $0x8] sm:$0xf]
          %v843 = vld [vmem:[%s11 + $0xc] sm:$0xf]
          %v844 = vld [vmem:[%s12] sm:$0x1]
          %v846 = vperm.slane %v844, 0
          %v860 = vunpack.c.l.b16 %v828
          %v861 = vunpack.c.l.b16 %v829
          %v862 = vunpack.c.l.b16 %v830
          %v863 = vunpack.c.l.b16 %v831
          %v864 = vunpack.c.l.b16 %v832
          %v865 = vunpack.c.l.b16 %v833
          %v866 = vunpack.c.l.b16 %v834
          %v867 = vunpack.c.l.b16 %v835
          %v868 = vunpack.c.l.b16 %v836
          %v869 = vunpack.c.l.b16 %v837
          %v870 = vunpack.c.l.b16 %v838
          %v871 = vunpack.c.l.b16 %v839
          %v872 = vpack.c.b16 %v861, %v860
          %v873 = vpack.c.b16 %v863, %v862
          %v874 = vpack.c.b16 %v865, %v864
          %v875 = vpack.c.b16 %v867, %v866
          %v876 = vpack.c.b16 %v869, %v868
          %v877 = vpack.c.b16 %v871, %v870
          %v882 = vunpack.c.l.b16 %v840
          %v883 = vunpack.c.l.b16 %v841
          %v884 = vunpack.c.l.b16 %v842
          %v885 = vunpack.c.l.b16 %v843
          %v886 = vpack.c.b16 %v883, %v882
          %v887 = vpack.c.b16 %v885, %v884
          %v891 = vsel %vm770, %v872, 0
          %v894 = vsel %vm770, %v873, 0
          %v897 = vsel %vm770, %v874, 0
          %v900 = vsel %vm770, %v875, 0
          %v903 = vsel %vm770, %v876, 0
          %v906 = vsel %vm770, %v877, 0
          %908 = vmatpush.bf16.msra.mxu0 0
          %909 = vmatpush.bf16.msra.mxu0 0
          %910 = vmatpush.bf16.msra.mxu0 0
          %911 = vmatpush.bf16.msra.mxu0 0
          %912 = vmatpush.bf16.msra.mxu0 0
          %913 = vmatpush.bf16.msra.mxu0 0
          %914 = vmatpush.bf16.msra.mxu0 %v887
          %915 = vmatpush.bf16.msra.mxu0 %v886
          %916 = vmatmul.bf16.gmra.mxu0 %v891
          %v917 = vpop.f32.mrf.mxu0
          %v918 = vadd.f32 %v846, %v917
          %v919 = vpop.f32.mrf.mxu0
          %v920 = vadd.f32 %v846, %v919
          %921 = vmatmul.bf16.gmra.mxu0 %v894
          %v922 = vpop.f32.mrf.mxu0
          %v923 = vadd.f32 %v846, %v922
          %v924 = vpop.f32.mrf.mxu0
          %v925 = vadd.f32 %v846, %v924
          %926 = vmatmul.bf16.gmra.mxu0 %v897
          %v927 = vpop.f32.mrf.mxu0
          %v928 = vadd.f32 %v846, %v927
          %v929 = vpop.f32.mrf.mxu0
          %v930 = vadd.f32 %v846, %v929
          %931 = vmatmul.bf16.gmra.mxu0 %v900
          %v932 = vpop.f32.mrf.mxu0
          %v933 = vadd.f32 %v846, %v932
          %v934 = vpop.f32.mrf.mxu0
          %v935 = vadd.f32 %v846, %v934
          %936 = vmatmul.bf16.gmra.mxu0 %v903
          %v937 = vpop.f32.mrf.mxu0
          %v938 = vadd.f32 %v846, %v937
          %v939 = vpop.f32.mrf.mxu0
          %v940 = vadd.f32 %v846, %v939
          %941 = vmatmul.bf16.gmra.mxu0 %v906
          %v942 = vpop.f32.mrf.mxu0
          %v943 = vadd.f32 %v846, %v942
          %v944 = vpop.f32.mrf.mxu0
          %v945 = vadd.f32 %v846, %v944
          %946 = vdwg.mxu0
          %v947 = vpack.c.bf16 %v918, %v918
          %v948 = vpack.c.bf16 %v920, %v920
          %v949 = vpack.c.bf16 %v923, %v923
          %v950 = vpack.c.bf16 %v925, %v925
          %v951 = vpack.c.bf16 %v928, %v928
          %v952 = vpack.c.bf16 %v930, %v930
          %v953 = vpack.c.bf16 %v933, %v933
          %v954 = vpack.c.bf16 %v935, %v935
          %v955 = vpack.c.bf16 %v938, %v938
          %v956 = vpack.c.bf16 %v940, %v940
          %v957 = vpack.c.bf16 %v943, %v943
          %v958 = vpack.c.bf16 %v945, %v945
          %vm959 = vcmask 257024
          %960 = vst.msk [vmem:[#allocation3] sm:$0xf] %vm959, %v947
          %961 = vst.msk [vmem:[#allocation3 + $0x4] sm:$0xf] %vm959, %v948
          %962 = vst.msk [vmem:[#allocation3 + $0x8] sm:$0xf] %vm959, %v949
          %963 = vst.msk [vmem:[#allocation3 + $0xc] sm:$0xf] %vm959, %v950
          %964 = vst.msk [vmem:[#allocation3 + $0x10] sm:$0xf] %vm959, %v951
          %965 = vst.msk [vmem:[#allocation3 + $0x14] sm:$0xf] %vm959, %v952
          %966 = vst.msk [vmem:[#allocation3 + $0x18] sm:$0xf] %vm959, %v953
          %967 = vst.msk [vmem:[#allocation3 + $0x1c] sm:$0xf] %vm959, %v954
          %968 = vst.msk [vmem:[#allocation3 + $0x20] sm:$0xf] %vm959, %v955
          %969 = vst.msk [vmem:[#allocation3 + $0x24] sm:$0xf] %vm959, %v956
          %970 = vst.msk [vmem:[#allocation3 + $0x28] sm:$0xf] %vm959, %v957
          %971 = vst.msk [vmem:[#allocation3 + $0x2c] sm:$0xf] %vm959, %v958
          %v972 = vld [vmem:[%s696] sm:$0xff]
          %v973 = vld [vmem:[%s696 + $0x8] sm:$0xff]
          %v974 = vld [vmem:[%s696 + $0x10] sm:$0xff]
          %v975 = vld [vmem:[%s696 + $0x18] sm:$0xff]
          %v976 = vld [vmem:[%s696 + $0x20] sm:$0xff]
          %v977 = vld [vmem:[%s696 + $0x28] sm:$0xff]
          %v978 = vld [vmem:[%s696 + $0x30] sm:$0xff]
          %v979 = vld [vmem:[%s696 + $0x38] sm:$0xff]
          %v980 = vld [vmem:[%s696 + $0x40] sm:$0xff]
          %v981 = vld [vmem:[%s696 + $0x48] sm:$0xff]
          %v982 = vld [vmem:[%s696 + $0x50] sm:$0xff]
          %v983 = vld [vmem:[%s696 + $0x58] sm:$0xff]
          %v984 = vld [vmem:[%s15] sm:$0xf]
          %vm985 = vcmask 31744
          %v987 = vsel %vm985, %v972, 0
          %v990 = vsel %vm985, %v973, 0
          %v993 = vsel %vm985, %v974, 0
          %v996 = vsel %vm985, %v975, 0
          %v999 = vsel %vm985, %v976, 0
          %v1002 = vsel %vm985, %v977, 0
          %v1005 = vsel %vm985, %v978, 0
          %v1008 = vsel %vm985, %v979, 0
          %v1011 = vsel %vm985, %v980, 0
          %v1014 = vsel %vm985, %v981, 0
          %v1017 = vsel %vm985, %v982, 0
          %v1020 = vsel %vm985, %v983, 0
          %vm1022 = vcmask 1043456
          %v1024 = vsel %vm1022, %v984, 0
          %1026 = vmatpush.msra.mxu0 0.0
          %1027 = vmatpush.msra.mxu0 0.0
          %1028 = vmatpush.msra.mxu0 0.0
          %1029 = vmatpush.msra.mxu0 0.0
          %1030 = vmatpush.msra.mxu0 0.0
          %1031 = vmatpush.msra.mxu0 0.0
          %1032 = vmatpush.msra.mxu0 0.0
          %1033 = vmatpush.msra.mxu0 0.0
          %1034 = vmatpush.msra.mxu0 0.0
          %1035 = vmatpush.msra.mxu0 0.0
          %1036 = vmatpush.msra.mxu0 0.0
          %1037 = vmatpush.msra.mxu0 0.0
          %1038 = vmatpush.msra.mxu0 0.0
          %1039 = vmatpush.msra.mxu0 0.0
          %1040 = vmatpush.msra.mxu0 0.0
          %1041 = vmatpush.msra.mxu0 %v1024
          %1042 = vmatmul.f32.gmra.mxu0 %v987
          %v1043 = vpop.f32.mrf.mxu0
          %v1044 = vadd.f32 0.0, %v1043
          %1045 = vmatmul.f32.gmra.mxu0 %v990
          %v1046 = vpop.f32.mrf.mxu0
          %v1047 = vadd.f32 0.0, %v1046
          %1048 = vmatmul.f32.gmra.mxu0 %v993
          %v1049 = vpop.f32.mrf.mxu0
          %v1050 = vadd.f32 0.0, %v1049
          %1051 = vmatmul.f32.gmra.mxu0 %v996
          %v1052 = vpop.f32.mrf.mxu0
          %v1053 = vadd.f32 0.0, %v1052
          %1054 = vmatmul.f32.gmra.mxu0 %v999
          %v1055 = vpop.f32.mrf.mxu0
          %v1056 = vadd.f32 0.0, %v1055
          %1057 = vmatmul.f32.gmra.mxu0 %v1002
          %v1058 = vpop.f32.mrf.mxu0
          %v1059 = vadd.f32 0.0, %v1058
          %1060 = vmatmul.f32.gmra.mxu0 %v1005
          %v1061 = vpop.f32.mrf.mxu0
          %v1062 = vadd.f32 0.0, %v1061
          %1063 = vmatmul.f32.gmra.mxu0 %v1008
          %v1064 = vpop.f32.mrf.mxu0
          %v1065 = vadd.f32 0.0, %v1064
          %1066 = vmatmul.f32.gmra.mxu0 %v1011
          %v1067 = vpop.f32.mrf.mxu0
          %v1068 = vadd.f32 0.0, %v1067
          %1069 = vmatmul.f32.gmra.mxu0 %v1014
          %v1070 = vpop.f32.mrf.mxu0
          %v1071 = vadd.f32 0.0, %v1070
          %1072 = vmatmul.f32.gmra.mxu0 %v1017
          %v1073 = vpop.f32.mrf.mxu0
          %v1074 = vadd.f32 0.0, %v1073
          %1075 = vmatmul.f32.gmra.mxu0 %v1020
          %v1076 = vpop.f32.mrf.mxu0
          %v1077 = vadd.f32 0.0, %v1076
          %1078 = vdwg.mxu0
          %v1079 = vld [vmem:[%s701] sm:$0xff]
          %v1080 = vld [vmem:[%s701 + $0x8] sm:$0xff]
          %v1081 = vld [vmem:[%s701 + $0x10] sm:$0xff]
          %v1082 = vld [vmem:[%s701 + $0x18] sm:$0xff]
          %v1083 = vld [vmem:[%s701 + $0x20] sm:$0xff]
          %v1084 = vld [vmem:[%s701 + $0x28] sm:$0xff]
          %v1085 = vld [vmem:[%s701 + $0x30] sm:$0xff]
          %v1086 = vld [vmem:[%s701 + $0x38] sm:$0xff]
          %v1087 = vld [vmem:[%s701 + $0x40] sm:$0xff]
          %v1088 = vld [vmem:[%s701 + $0x48] sm:$0xff]
          %v1089 = vld [vmem:[%s701 + $0x50] sm:$0xff]
          %v1090 = vld [vmem:[%s701 + $0x58] sm:$0xff]
          %v1092 = vsel %vm985, %v1079, 0
          %v1095 = vsel %vm985, %v1080, 0
          %v1098 = vsel %vm985, %v1081, 0
          %v1101 = vsel %vm985, %v1082, 0
          %v1104 = vsel %vm985, %v1083, 0
          %v1107 = vsel %vm985, %v1084, 0
          %v1110 = vsel %vm985, %v1085, 0
          %v1113 = vsel %vm985, %v1086, 0
          %v1116 = vsel %vm985, %v1087, 0
          %v1119 = vsel %vm985, %v1088, 0
          %v1122 = vsel %vm985, %v1089, 0
          %v1125 = vsel %vm985, %v1090, 0
          %1127 = vmatpush.msra.mxu0 0.0
          %1128 = vmatpush.msra.mxu0 0.0
          %1129 = vmatpush.msra.mxu0 0.0
          %1130 = vmatpush.msra.mxu0 0.0
          %1131 = vmatpush.msra.mxu0 0.0
          %1132 = vmatpush.msra.mxu0 0.0
          %1133 = vmatpush.msra.mxu0 0.0
          %1134 = vmatpush.msra.mxu0 0.0
          %1135 = vmatpush.msra.mxu0 0.0
          %1136 = vmatpush.msra.mxu0 0.0
          %1137 = vmatpush.msra.mxu0 0.0
          %1138 = vmatpush.msra.mxu0 0.0
          %1139 = vmatpush.msra.mxu0 0.0
          %1140 = vmatpush.msra.mxu0 0.0
          %1141 = vmatpush.msra.mxu0 0.0
          %1142 = vmatpush.msra.mxu0 %v1024
          %1143 = vmatmul.f32.gmra.mxu0 %v1092
          %v1144 = vpop.f32.mrf.mxu0
          %v1145 = vadd.f32 0.0, %v1144
          %1146 = vmatmul.f32.gmra.mxu0 %v1095
          %v1147 = vpop.f32.mrf.mxu0
          %v1148 = vadd.f32 0.0, %v1147
          %1149 = vmatmul.f32.gmra.mxu0 %v1098
          %v1150 = vpop.f32.mrf.mxu0
          %v1151 = vadd.f32 0.0, %v1150
          %1152 = vmatmul.f32.gmra.mxu0 %v1101
          %v1153 = vpop.f32.mrf.mxu0
          %v1154 = vadd.f32 0.0, %v1153
          %1155 = vmatmul.f32.gmra.mxu0 %v1104
          %v1156 = vpop.f32.mrf.mxu0
          %v1157 = vadd.f32 0.0, %v1156
          %1158 = vmatmul.f32.gmra.mxu0 %v1107
          %v1159 = vpop.f32.mrf.mxu0
          %v1160 = vadd.f32 0.0, %v1159
          %1161 = vmatmul.f32.gmra.mxu0 %v1110
          %v1162 = vpop.f32.mrf.mxu0
          %v1163 = vadd.f32 0.0, %v1162
          %1164 = vmatmul.f32.gmra.mxu0 %v1113
          %v1165 = vpop.f32.mrf.mxu0
          %v1166 = vadd.f32 0.0, %v1165
          %1167 = vmatmul.f32.gmra.mxu0 %v1116
          %v1168 = vpop.f32.mrf.mxu0
          %v1169 = vadd.f32 0.0, %v1168
          %1170 = vmatmul.f32.gmra.mxu0 %v1119
          %v1171 = vpop.f32.mrf.mxu0
          %v1172 = vadd.f32 0.0, %v1171
          %1173 = vmatmul.f32.gmra.mxu0 %v1122
          %v1174 = vpop.f32.mrf.mxu0
          %v1175 = vadd.f32 0.0, %v1174
          %1176 = vmatmul.f32.gmra.mxu0 %v1125
          %v1177 = vpop.f32.mrf.mxu0
          %v1178 = vadd.f32 0.0, %v1177
          %1179 = vdwg.mxu0
          %v1180 = vsub.f32 0.0, %v799
          %v1181 = vsub.f32 0.0, %v801
          %v1182 = vsub.f32 0.0, %v804
          %v1183 = vsub.f32 0.0, %v806
          %v1184 = vsub.f32 0.0, %v809
          %v1185 = vsub.f32 0.0, %v811
          %v1186 = vsub.f32 0.0, %v814
          %v1187 = vsub.f32 0.0, %v816
          %v1188 = vsub.f32 0.0, %v819
          %v1189 = vsub.f32 0.0, %v821
          %v1190 = vsub.f32 0.0, %v824
          %v1191 = vsub.f32 0.0, %v826
          %1204 = vrot.lane.b32.xlu0 %v1180, 120
          %v1205 = vpop.permute.xlu0 %1204
          %1206 = vrot.lane.b32.xlu0 %v1181, 120
          %v1207 = vpop.permute.xlu0 %1206
          %1208 = vrot.lane.b32.xlu0 %v1182, 120
          %v1209 = vpop.permute.xlu0 %1208
          %1210 = vrot.lane.b32.xlu0 %v1183, 120
          %v1211 = vpop.permute.xlu0 %1210
          %1212 = vrot.lane.b32.xlu0 %v1184, 120
          %v1213 = vpop.permute.xlu0 %1212
          %1214 = vrot.lane.b32.xlu0 %v1185, 120
          %v1215 = vpop.permute.xlu0 %1214
          %1216 = vrot.lane.b32.xlu0 %v1186, 120
          %v1217 = vpop.permute.xlu0 %1216
          %1218 = vrot.lane.b32.xlu0 %v1187, 120
          %v1219 = vpop.permute.xlu0 %1218
          %1220 = vrot.lane.b32.xlu0 %v1188, 120
          %v1221 = vpop.permute.xlu0 %1220
          %1222 = vrot.lane.b32.xlu0 %v1189, 120
          %v1223 = vpop.permute.xlu0 %1222
          %1224 = vrot.lane.b32.xlu0 %v1190, 120
          %v1225 = vpop.permute.xlu0 %1224
          %1226 = vrot.lane.b32.xlu0 %v1191, 120
          %v1227 = vpop.permute.xlu0 %1226
          %1252 = vrot.lane.b32.xlu0 %v799, 8
          %v1253 = vpop.permute.xlu0 %1252
          %1254 = vrot.lane.b32.xlu0 %v801, 8
          %v1255 = vpop.permute.xlu0 %1254
          %1256 = vrot.lane.b32.xlu0 %v804, 8
          %v1257 = vpop.permute.xlu0 %1256
          %1258 = vrot.lane.b32.xlu0 %v806, 8
          %v1259 = vpop.permute.xlu0 %1258
          %1260 = vrot.lane.b32.xlu0 %v809, 8
          %v1261 = vpop.permute.xlu0 %1260
          %1262 = vrot.lane.b32.xlu0 %v811, 8
          %v1263 = vpop.permute.xlu0 %1262
          %1264 = vrot.lane.b32.xlu0 %v814, 8
          %v1265 = vpop.permute.xlu0 %1264
          %1266 = vrot.lane.b32.xlu0 %v816, 8
          %v1267 = vpop.permute.xlu0 %1266
          %1268 = vrot.lane.b32.xlu0 %v819, 8
          %v1269 = vpop.permute.xlu0 %1268
          %1270 = vrot.lane.b32.xlu0 %v821, 8
          %v1271 = vpop.permute.xlu0 %1270
          %1272 = vrot.lane.b32.xlu0 %v824, 8
          %v1273 = vpop.permute.xlu0 %1272
          %1274 = vrot.lane.b32.xlu0 %v826, 8
          %v1275 = vpop.permute.xlu0 %1274
          %vm1288 = vcmask 64512
          %v1289 = vsel %vm1288, %v1205, %v1253
          %v1290 = vsel %vm1288, %v1207, %v1255
          %v1291 = vsel %vm1288, %v1209, %v1257
          %v1292 = vsel %vm1288, %v1211, %v1259
          %v1293 = vsel %vm1288, %v1213, %v1261
          %v1294 = vsel %vm1288, %v1215, %v1263
          %v1295 = vsel %vm1288, %v1217, %v1265
          %v1296 = vsel %vm1288, %v1219, %v1267
          %v1297 = vsel %vm1288, %v1221, %v1269
          %v1298 = vsel %vm1288, %v1223, %v1271
          %v1299 = vsel %vm1288, %v1225, %v1273
          %v1300 = vsel %vm1288, %v1227, %v1275
          %vm1301 = vcmask 97280
          %v1302 = vsel %vm1301, %v1289, %v1253
          %v1303 = vsel %vm1301, %v1290, %v1255
          %v1304 = vsel %vm1301, %v1291, %v1257
          %v1305 = vsel %vm1301, %v1292, %v1259
          %v1306 = vsel %vm1301, %v1293, %v1261
          %v1307 = vsel %vm1301, %v1294, %v1263
          %v1308 = vsel %vm1301, %v1295, %v1265
          %v1309 = vsel %vm1301, %v1296, %v1267
          %v1310 = vsel %vm1301, %v1297, %v1269
          %v1311 = vsel %vm1301, %v1298, %v1271
          %v1312 = vsel %vm1301, %v1299, %v1273
          %v1313 = vsel %vm1301, %v1300, %v1275
          %1314 = vrot.lane.b32.xlu0 %v799, 16
          %v1315 = vpop.permute.xlu0 %1314
          %1316 = vrot.lane.b32.xlu0 %v801, 16
          %v1317 = vpop.permute.xlu0 %1316
          %1318 = vrot.lane.b32.xlu0 %v804, 16
          %v1319 = vpop.permute.xlu0 %1318
          %1320 = vrot.lane.b32.xlu0 %v806, 16
          %v1321 = vpop.permute.xlu0 %1320
          %1322 = vrot.lane.b32.xlu0 %v809, 16
          %v1323 = vpop.permute.xlu0 %1322
          %1324 = vrot.lane.b32.xlu0 %v811, 16
          %v1325 = vpop.permute.xlu0 %1324
          %1326 = vrot.lane.b32.xlu0 %v814, 16
          %v1327 = vpop.permute.xlu0 %1326
          %1328 = vrot.lane.b32.xlu0 %v816, 16
          %v1329 = vpop.permute.xlu0 %1328
          %1330 = vrot.lane.b32.xlu0 %v819, 16
          %v1331 = vpop.permute.xlu0 %1330
          %1332 = vrot.lane.b32.xlu0 %v821, 16
          %v1333 = vpop.permute.xlu0 %1332
          %1334 = vrot.lane.b32.xlu0 %v824, 16
          %v1335 = vpop.permute.xlu0 %1334
          %1336 = vrot.lane.b32.xlu0 %v826, 16
          %v1337 = vpop.permute.xlu0 %1336
          %vm1350 = vcmask 130048
          %v1351 = vsel %vm1350, %v799, %v1315
          %v1352 = vsel %vm1350, %v801, %v1317
          %v1353 = vsel %vm1350, %v804, %v1319
          %v1354 = vsel %vm1350, %v806, %v1321
          %v1355 = vsel %vm1350, %v809, %v1323
          %v1356 = vsel %vm1350, %v811, %v1325
          %v1357 = vsel %vm1350, %v814, %v1327
          %v1358 = vsel %vm1350, %v816, %v1329
          %v1359 = vsel %vm1350, %v819, %v1331
          %v1360 = vsel %vm1350, %v821, %v1333
          %v1361 = vsel %vm1350, %v824, %v1335
          %v1362 = vsel %vm1350, %v826, %v1337
          %1375 = vrot.lane.b32.xlu0 %v1302, 16
          %v1376 = vpop.permute.xlu0 %1375
          %1377 = vrot.lane.b32.xlu0 %v1303, 16
          %v1378 = vpop.permute.xlu0 %1377
          %1379 = vrot.lane.b32.xlu0 %v1304, 16
          %v1380 = vpop.permute.xlu0 %1379
          %1381 = vrot.lane.b32.xlu0 %v1305, 16
          %v1382 = vpop.permute.xlu0 %1381
          %1383 = vrot.lane.b32.xlu0 %v1306, 16
          %v1384 = vpop.permute.xlu0 %1383
          %1385 = vrot.lane.b32.xlu0 %v1307, 16
          %v1386 = vpop.permute.xlu0 %1385
          %1387 = vrot.lane.b32.xlu0 %v1308, 16
          %v1388 = vpop.permute.xlu0 %1387
          %1389 = vrot.lane.b32.xlu0 %v1309, 16
          %v1390 = vpop.permute.xlu0 %1389
          %1391 = vrot.lane.b32.xlu0 %v1310, 16
          %v1392 = vpop.permute.xlu0 %1391
          %1393 = vrot.lane.b32.xlu0 %v1311, 16
          %v1394 = vpop.permute.xlu0 %1393
          %1395 = vrot.lane.b32.xlu0 %v1312, 16
          %v1396 = vpop.permute.xlu0 %1395
          %1397 = vrot.lane.b32.xlu0 %v1313, 16
          %v1398 = vpop.permute.xlu0 %1397
          %v1411 = vsel %vm1350, %v1302, %v1376
          %v1412 = vsel %vm1350, %v1303, %v1378
          %v1413 = vsel %vm1350, %v1304, %v1380
          %v1414 = vsel %vm1350, %v1305, %v1382
          %v1415 = vsel %vm1350, %v1306, %v1384
          %v1416 = vsel %vm1350, %v1307, %v1386
          %v1417 = vsel %vm1350, %v1308, %v1388
          %v1418 = vsel %vm1350, %v1309, %v1390
          %v1419 = vsel %vm1350, %v1310, %v1392
          %v1420 = vsel %vm1350, %v1311, %v1394
          %v1421 = vsel %vm1350, %v1312, %v1396
          %v1422 = vsel %vm1350, %v1313, %v1398
          %v1423 = vmul.f32 %v1351, %v1044
          %v1424 = vmul.f32 %v1352, %v1047
          %v1425 = vmul.f32 %v1353, %v1050
          %v1426 = vmul.f32 %v1354, %v1053
          %v1427 = vmul.f32 %v1355, %v1056
          %v1428 = vmul.f32 %v1356, %v1059
          %v1429 = vmul.f32 %v1357, %v1062
          %v1430 = vmul.f32 %v1358, %v1065
          %v1431 = vmul.f32 %v1359, %v1068
          %v1432 = vmul.f32 %v1360, %v1071
          %v1433 = vmul.f32 %v1361, %v1074
          %v1434 = vmul.f32 %v1362, %v1077
          %v1435 = vmul.f32 %v1411, %v1145
          %v1436 = vmul.f32 %v1412, %v1148
          %v1437 = vmul.f32 %v1413, %v1151
          %v1438 = vmul.f32 %v1414, %v1154
          %v1439 = vmul.f32 %v1415, %v1157
          %v1440 = vmul.f32 %v1416, %v1160
          %v1441 = vmul.f32 %v1417, %v1163
          %v1442 = vmul.f32 %v1418, %v1166
          %v1443 = vmul.f32 %v1419, %v1169
          %v1444 = vmul.f32 %v1420, %v1172
          %v1445 = vmul.f32 %v1421, %v1175
          %v1446 = vmul.f32 %v1422, %v1178
          %v1447 = vadd.f32 %v1423, %v1435
          %v1448 = vadd.f32 %v1424, %v1436
          %v1449 = vadd.f32 %v1425, %v1437
          %v1450 = vadd.f32 %v1426, %v1438
          %v1451 = vadd.f32 %v1427, %v1439
          %v1452 = vadd.f32 %v1428, %v1440
          %v1453 = vadd.f32 %v1429, %v1441
          %v1454 = vadd.f32 %v1430, %v1442
          %v1455 = vadd.f32 %v1431, %v1443
          %v1456 = vadd.f32 %v1432, %v1444
          %v1457 = vadd.f32 %v1433, %v1445
          %v1458 = vadd.f32 %v1434, %v1446
          %v1459 = vpack.c.bf16 %v1447, %v1447
          %v1460 = vpack.c.bf16 %v1448, %v1448
          %v1461 = vpack.c.bf16 %v1449, %v1449
          %v1462 = vpack.c.bf16 %v1450, %v1450
          %v1463 = vpack.c.bf16 %v1451, %v1451
          %v1464 = vpack.c.bf16 %v1452, %v1452
          %v1465 = vpack.c.bf16 %v1453, %v1453
          %v1466 = vpack.c.bf16 %v1454, %v1454
          %v1467 = vpack.c.bf16 %v1455, %v1455
          %v1468 = vpack.c.bf16 %v1456, %v1456
          %v1469 = vpack.c.bf16 %v1457, %v1457
          %v1470 = vpack.c.bf16 %v1458, %v1458
          %1471 = vst.msk [vmem:[#allocation2] sm:$0xf] %vm959, %v1459
          %1472 = vst.msk [vmem:[#allocation2 + $0x4] sm:$0xf] %vm959, %v1460
          %1473 = vst.msk [vmem:[#allocation2 + $0x8] sm:$0xf] %vm959, %v1461
          %1474 = vst.msk [vmem:[#allocation2 + $0xc] sm:$0xf] %vm959, %v1462
          %1475 = vst.msk [vmem:[#allocation2 + $0x10] sm:$0xf] %vm959, %v1463
          %1476 = vst.msk [vmem:[#allocation2 + $0x14] sm:$0xf] %vm959, %v1464
          %1477 = vst.msk [vmem:[#allocation2 + $0x18] sm:$0xf] %vm959, %v1465
          %1478 = vst.msk [vmem:[#allocation2 + $0x1c] sm:$0xf] %vm959, %v1466
          %1479 = vst.msk [vmem:[#allocation2 + $0x20] sm:$0xf] %vm959, %v1467
          %1480 = vst.msk [vmem:[#allocation2 + $0x24] sm:$0xf] %vm959, %v1468
          %1481 = vst.msk [vmem:[#allocation2 + $0x28] sm:$0xf] %vm959, %v1469
          %1482 = vst.msk [vmem:[#allocation2 + $0x2c] sm:$0xf] %vm959, %v1470
          %1483 = vrot.lane.b32.xlu0 %v1180, 104
          %v1484 = vpop.permute.xlu0 %1483
          %1485 = vrot.lane.b32.xlu0 %v1181, 104
          %v1486 = vpop.permute.xlu0 %1485
          %1487 = vrot.lane.b32.xlu0 %v1182, 104
          %v1488 = vpop.permute.xlu0 %1487
          %1489 = vrot.lane.b32.xlu0 %v1183, 104
          %v1490 = vpop.permute.xlu0 %1489
          %1491 = vrot.lane.b32.xlu0 %v1184, 104
          %v1492 = vpop.permute.xlu0 %1491
          %1493 = vrot.lane.b32.xlu0 %v1185, 104
          %v1494 = vpop.permute.xlu0 %1493
          %1495 = vrot.lane.b32.xlu0 %v1186, 104
          %v1496 = vpop.permute.xlu0 %1495
          %1497 = vrot.lane.b32.xlu0 %v1187, 104
          %v1498 = vpop.permute.xlu0 %1497
          %1499 = vrot.lane.b32.xlu0 %v1188, 104
          %v1500 = vpop.permute.xlu0 %1499
          %1501 = vrot.lane.b32.xlu0 %v1189, 104
          %v1502 = vpop.permute.xlu0 %1501
          %1503 = vrot.lane.b32.xlu0 %v1190, 104
          %v1504 = vpop.permute.xlu0 %1503
          %1505 = vrot.lane.b32.xlu0 %v1191, 104
          %v1506 = vpop.permute.xlu0 %1505
          %1519 = vrot.lane.b32.xlu0 %v799, 120
          %v1520 = vpop.permute.xlu0 %1519
          %1521 = vrot.lane.b32.xlu0 %v801, 120
          %v1522 = vpop.permute.xlu0 %1521
          %1523 = vrot.lane.b32.xlu0 %v804, 120
          %v1524 = vpop.permute.xlu0 %1523
          %1525 = vrot.lane.b32.xlu0 %v806, 120
          %v1526 = vpop.permute.xlu0 %1525
          %1527 = vrot.lane.b32.xlu0 %v809, 120
          %v1528 = vpop.permute.xlu0 %1527
          %1529 = vrot.lane.b32.xlu0 %v811, 120
          %v1530 = vpop.permute.xlu0 %1529
          %1531 = vrot.lane.b32.xlu0 %v814, 120
          %v1532 = vpop.permute.xlu0 %1531
          %1533 = vrot.lane.b32.xlu0 %v816, 120
          %v1534 = vpop.permute.xlu0 %1533
          %1535 = vrot.lane.b32.xlu0 %v819, 120
          %v1536 = vpop.permute.xlu0 %1535
          %1537 = vrot.lane.b32.xlu0 %v821, 120
          %v1538 = vpop.permute.xlu0 %1537
          %1539 = vrot.lane.b32.xlu0 %v824, 120
          %v1540 = vpop.permute.xlu0 %1539
          %1541 = vrot.lane.b32.xlu0 %v826, 120
          %v1542 = vpop.permute.xlu0 %1541
          %v1555 = vsel %vm1288, %v1484, %v1520
          %v1556 = vsel %vm1288, %v1486, %v1522
          %v1557 = vsel %vm1288, %v1488, %v1524
          %v1558 = vsel %vm1288, %v1490, %v1526
          %v1559 = vsel %vm1288, %v1492, %v1528
          %v1560 = vsel %vm1288, %v1494, %v1530
          %v1561 = vsel %vm1288, %v1496, %v1532
          %v1562 = vsel %vm1288, %v1498, %v1534
          %v1563 = vsel %vm1288, %v1500, %v1536
          %v1564 = vsel %vm1288, %v1502, %v1538
          %v1565 = vsel %vm1288, %v1504, %v1540
          %v1566 = vsel %vm1288, %v1506, %v1542
          %v1567 = vsel %vm1301, %v1555, %v1520
          %v1568 = vsel %vm1301, %v1556, %v1522
          %v1569 = vsel %vm1301, %v1557, %v1524
          %v1570 = vsel %vm1301, %v1558, %v1526
          %v1571 = vsel %vm1301, %v1559, %v1528
          %v1572 = vsel %vm1301, %v1560, %v1530
          %v1573 = vsel %vm1301, %v1561, %v1532
          %v1574 = vsel %vm1301, %v1562, %v1534
          %v1575 = vsel %vm1301, %v1563, %v1536
          %v1576 = vsel %vm1301, %v1564, %v1538
          %v1577 = vsel %vm1301, %v1565, %v1540
          %v1578 = vsel %vm1301, %v1566, %v1542
          %1579 = vrot.lane.b32.xlu0 %v799, 112
          %v1580 = vpop.permute.xlu0 %1579
          %1581 = vrot.lane.b32.xlu0 %v801, 112
          %v1582 = vpop.permute.xlu0 %1581
          %1583 = vrot.lane.b32.xlu0 %v804, 112
          %v1584 = vpop.permute.xlu0 %1583
          %1585 = vrot.lane.b32.xlu0 %v806, 112
          %v1586 = vpop.permute.xlu0 %1585
          %1587 = vrot.lane.b32.xlu0 %v809, 112
          %v1588 = vpop.permute.xlu0 %1587
          %1589 = vrot.lane.b32.xlu0 %v811, 112
          %v1590 = vpop.permute.xlu0 %1589
          %1591 = vrot.lane.b32.xlu0 %v814, 112
          %v1592 = vpop.permute.xlu0 %1591
          %1593 = vrot.lane.b32.xlu0 %v816, 112
          %v1594 = vpop.permute.xlu0 %1593
          %1595 = vrot.lane.b32.xlu0 %v819, 112
          %v1596 = vpop.permute.xlu0 %1595
          %1597 = vrot.lane.b32.xlu0 %v821, 112
          %v1598 = vpop.permute.xlu0 %1597
          %1599 = vrot.lane.b32.xlu0 %v824, 112
          %v1600 = vpop.permute.xlu0 %1599
          %1601 = vrot.lane.b32.xlu0 %v826, 112
          %v1602 = vpop.permute.xlu0 %1601
          %v1615 = vsel %vm1350, %v1580, %v799
          %v1616 = vsel %vm1350, %v1582, %v801
          %v1617 = vsel %vm1350, %v1584, %v804
          %v1618 = vsel %vm1350, %v1586, %v806
          %v1619 = vsel %vm1350, %v1588, %v809
          %v1620 = vsel %vm1350, %v1590, %v811
          %v1621 = vsel %vm1350, %v1592, %v814
          %v1622 = vsel %vm1350, %v1594, %v816
          %v1623 = vsel %vm1350, %v1596, %v819
          %v1624 = vsel %vm1350, %v1598, %v821
          %v1625 = vsel %vm1350, %v1600, %v824
          %v1626 = vsel %vm1350, %v1602, %v826
          %1639 = vrot.lane.b32.xlu0 %v1567, 16
          %v1640 = vpop.permute.xlu0 %1639
          %1641 = vrot.lane.b32.xlu0 %v1568, 16
          %v1642 = vpop.permute.xlu0 %1641
          %1643 = vrot.lane.b32.xlu0 %v1569, 16
          %v1644 = vpop.permute.xlu0 %1643
          %1645 = vrot.lane.b32.xlu0 %v1570, 16
          %v1646 = vpop.permute.xlu0 %1645
          %1647 = vrot.lane.b32.xlu0 %v1571, 16
          %v1648 = vpop.permute.xlu0 %1647
          %1649 = vrot.lane.b32.xlu0 %v1572, 16
          %v1650 = vpop.permute.xlu0 %1649
          %1651 = vrot.lane.b32.xlu0 %v1573, 16
          %v1652 = vpop.permute.xlu0 %1651
          %1653 = vrot.lane.b32.xlu0 %v1574, 16
          %v1654 = vpop.permute.xlu0 %1653
          %1655 = vrot.lane.b32.xlu0 %v1575, 16
          %v1656 = vpop.permute.xlu0 %1655
          %1657 = vrot.lane.b32.xlu0 %v1576, 16
          %v1658 = vpop.permute.xlu0 %1657
          %1659 = vrot.lane.b32.xlu0 %v1577, 16
          %v1660 = vpop.permute.xlu0 %1659
          %1661 = vrot.lane.b32.xlu0 %v1578, 16
          %v1662 = vpop.permute.xlu0 %1661
          %v1675 = vsel %vm1350, %v1567, %v1640
          %v1676 = vsel %vm1350, %v1568, %v1642
          %v1677 = vsel %vm1350, %v1569, %v1644
          %v1678 = vsel %vm1350, %v1570, %v1646
          %v1679 = vsel %vm1350, %v1571, %v1648
          %v1680 = vsel %vm1350, %v1572, %v1650
          %v1681 = vsel %vm1350, %v1573, %v1652
          %v1682 = vsel %vm1350, %v1574, %v1654
          %v1683 = vsel %vm1350, %v1575, %v1656
          %v1684 = vsel %vm1350, %v1576, %v1658
          %v1685 = vsel %vm1350, %v1577, %v1660
          %v1686 = vsel %vm1350, %v1578, %v1662
          %1699 = vrot.lane.b32.xlu0 %v1044, 96
          %v1700 = vpop.permute.xlu0 %1699
          %1701 = vrot.lane.b32.xlu0 %v1047, 96
          %v1702 = vpop.permute.xlu0 %1701
          %1703 = vrot.lane.b32.xlu0 %v1050, 96
          %v1704 = vpop.permute.xlu0 %1703
          %1705 = vrot.lane.b32.xlu0 %v1053, 96
          %v1706 = vpop.permute.xlu0 %1705
          %1707 = vrot.lane.b32.xlu0 %v1056, 96
          %v1708 = vpop.permute.xlu0 %1707
          %1709 = vrot.lane.b32.xlu0 %v1059, 96
          %v1710 = vpop.permute.xlu0 %1709
          %1711 = vrot.lane.b32.xlu0 %v1062, 96
          %v1712 = vpop.permute.xlu0 %1711
          %1713 = vrot.lane.b32.xlu0 %v1065, 96
          %v1714 = vpop.permute.xlu0 %1713
          %1715 = vrot.lane.b32.xlu0 %v1068, 96
          %v1716 = vpop.permute.xlu0 %1715
          %1717 = vrot.lane.b32.xlu0 %v1071, 96
          %v1718 = vpop.permute.xlu0 %1717
          %1719 = vrot.lane.b32.xlu0 %v1074, 96
          %v1720 = vpop.permute.xlu0 %1719
          %1721 = vrot.lane.b32.xlu0 %v1077, 96
          %v1722 = vpop.permute.xlu0 %1721
          %v1735 = vmul.f32 %v1615, %v1700
          %v1736 = vmul.f32 %v1616, %v1702
          %v1737 = vmul.f32 %v1617, %v1704
          %v1738 = vmul.f32 %v1618, %v1706
          %v1739 = vmul.f32 %v1619, %v1708
          %v1740 = vmul.f32 %v1620, %v1710
          %v1741 = vmul.f32 %v1621, %v1712
          %v1742 = vmul.f32 %v1622, %v1714
          %v1743 = vmul.f32 %v1623, %v1716
          %v1744 = vmul.f32 %v1624, %v1718
          %v1745 = vmul.f32 %v1625, %v1720
          %v1746 = vmul.f32 %v1626, %v1722
          %1759 = vrot.lane.b32.xlu0 %v1145, 96
          %v1760 = vpop.permute.xlu0 %1759
          %1761 = vrot.lane.b32.xlu0 %v1148, 96
          %v1762 = vpop.permute.xlu0 %1761
          %1763 = vrot.lane.b32.xlu0 %v1151, 96
          %v1764 = vpop.permute.xlu0 %1763
          %1765 = vrot.lane.b32.xlu0 %v1154, 96
          %v1766 = vpop.permute.xlu0 %1765
          %1767 = vrot.lane.b32.xlu0 %v1157, 96
          %v1768 = vpop.permute.xlu0 %1767
          %1769 = vrot.lane.b32.xlu0 %v1160, 96
          %v1770 = vpop.permute.xlu0 %1769
          %1771 = vrot.lane.b32.xlu0 %v1163, 96
          %v1772 = vpop.permute.xlu0 %1771
          %1773 = vrot.lane.b32.xlu0 %v1166, 96
          %v1774 = vpop.permute.xlu0 %1773
          %1775 = vrot.lane.b32.xlu0 %v1169, 96
          %v1776 = vpop.permute.xlu0 %1775
          %1777 = vrot.lane.b32.xlu0 %v1172, 96
          %v1778 = vpop.permute.xlu0 %1777
          %1779 = vrot.lane.b32.xlu0 %v1175, 96
          %v1780 = vpop.permute.xlu0 %1779
          %1781 = vrot.lane.b32.xlu0 %v1178, 96
          %v1782 = vpop.permute.xlu0 %1781
          %v1795 = vmul.f32 %v1675, %v1760
          %v1796 = vmul.f32 %v1676, %v1762
          %v1797 = vmul.f32 %v1677, %v1764
          %v1798 = vmul.f32 %v1678, %v1766
          %v1799 = vmul.f32 %v1679, %v1768
          %v1800 = vmul.f32 %v1680, %v1770
          %v1801 = vmul.f32 %v1681, %v1772
          %v1802 = vmul.f32 %v1682, %v1774
          %v1803 = vmul.f32 %v1683, %v1776
          %v1804 = vmul.f32 %v1684, %v1778
          %v1805 = vmul.f32 %v1685, %v1780
          %v1806 = vmul.f32 %v1686, %v1782
          %v1807 = vadd.f32 %v1735, %v1795
          %v1808 = vadd.f32 %v1736, %v1796
          %v1809 = vadd.f32 %v1737, %v1797
          %v1810 = vadd.f32 %v1738, %v1798
          %v1811 = vadd.f32 %v1739, %v1799
          %v1812 = vadd.f32 %v1740, %v1800
          %v1813 = vadd.f32 %v1741, %v1801
          %v1814 = vadd.f32 %v1742, %v1802
          %v1815 = vadd.f32 %v1743, %v1803
          %v1816 = vadd.f32 %v1744, %v1804
          %v1817 = vadd.f32 %v1745, %v1805
          %v1818 = vadd.f32 %v1746, %v1806
          %v1819 = vpack.c.bf16 %v1807, %v1807
          %v1820 = vpack.c.bf16 %v1808, %v1808
          %v1821 = vpack.c.bf16 %v1809, %v1809
          %v1822 = vpack.c.bf16 %v1810, %v1810
          %v1823 = vpack.c.bf16 %v1811, %v1811
          %v1824 = vpack.c.bf16 %v1812, %v1812
          %v1825 = vpack.c.bf16 %v1813, %v1813
          %v1826 = vpack.c.bf16 %v1814, %v1814
          %v1827 = vpack.c.bf16 %v1815, %v1815
          %v1828 = vpack.c.bf16 %v1816, %v1816
          %v1829 = vpack.c.bf16 %v1817, %v1817
          %v1830 = vpack.c.bf16 %v1818, %v1818
          %1843 = vrot.lane.b32.xlu0 %v1819, 32
          %v1844 = vpop.permute.xlu0 %1843
          %1845 = vrot.lane.b32.xlu0 %v1820, 32
          %v1846 = vpop.permute.xlu0 %1845
          %1847 = vrot.lane.b32.xlu0 %v1821, 32
          %v1848 = vpop.permute.xlu0 %1847
          %1849 = vrot.lane.b32.xlu0 %v1822, 32
          %v1850 = vpop.permute.xlu0 %1849
          %1851 = vrot.lane.b32.xlu0 %v1823, 32
          %v1852 = vpop.permute.xlu0 %1851
          %1853 = vrot.lane.b32.xlu0 %v1824, 32
          %v1854 = vpop.permute.xlu0 %1853
          %1855 = vrot.lane.b32.xlu0 %v1825, 32
          %v1856 = vpop.permute.xlu0 %1855
          %1857 = vrot.lane.b32.xlu0 %v1826, 32
          %v1858 = vpop.permute.xlu0 %1857
          %1859 = vrot.lane.b32.xlu0 %v1827, 32
          %v1860 = vpop.permute.xlu0 %1859
          %1861 = vrot.lane.b32.xlu0 %v1828, 32
          %v1862 = vpop.permute.xlu0 %1861
          %1863 = vrot.lane.b32.xlu0 %v1829, 32
          %v1864 = vpop.permute.xlu0 %1863
          %1865 = vrot.lane.b32.xlu0 %v1830, 32
          %v1866 = vpop.permute.xlu0 %1865
          %vm1879 = vcmask 519424
          %1880 = vst.msk [vmem:[#allocation2] sm:$0xf] %vm1879, %v1844
          %1881 = vst.msk [vmem:[#allocation2 + $0x4] sm:$0xf] %vm1879, %v1846
          %1882 = vst.msk [vmem:[#allocation2 + $0x8] sm:$0xf] %vm1879, %v1848
          %1883 = vst.msk [vmem:[#allocation2 + $0xc] sm:$0xf] %vm1879, %v1850
          %1884 = vst.msk [vmem:[#allocation2 + $0x10] sm:$0xf] %vm1879, %v1852
          %1885 = vst.msk [vmem:[#allocation2 + $0x14] sm:$0xf] %vm1879, %v1854
          %1886 = vst.msk [vmem:[#allocation2 + $0x18] sm:$0xf] %vm1879, %v1856
          %1887 = vst.msk [vmem:[#allocation2 + $0x1c] sm:$0xf] %vm1879, %v1858
          %1888 = vst.msk [vmem:[#allocation2 + $0x20] sm:$0xf] %vm1879, %v1860
          %1889 = vst.msk [vmem:[#allocation2 + $0x24] sm:$0xf] %vm1879, %v1862
          %1890 = vst.msk [vmem:[#allocation2 + $0x28] sm:$0xf] %vm1879, %v1864
          %1891 = vst.msk [vmem:[#allocation2 + $0x2c] sm:$0xf] %vm1879, %v1866
        $region88: #{decoupling_forward_pallas.3} parent=83 // pred_fallthru
          _
        %v1892 = vld [vmem:[%s660] sm:$0xf]
        %v1893 = vld [vmem:[%s660 + $0x4] sm:$0xf]
        %v1894 = vld [vmem:[%s7] sm:$0xf]
        %v1895 = vld [vmem:[%s7 + $0x4] sm:$0xf]
        %v1896 = vld [vmem:[%s7 + $0x8] sm:$0xf]
        %v1897 = vld [vmem:[%s7 + $0xc] sm:$0xf]
        %v1898 = vld [vmem:[%s8] sm:$0x1]
        %v1900 = vperm.slane %v1898, 0
        %v1904 = vunpack.c.l.b16 %v1892
        %v1905 = vunpack.c.l.b16 %v1893
        %v1906 = vpack.c.b16 %v1905, %v1904
        %v1911 = vunpack.c.l.b16 %v1894
        %v1912 = vunpack.c.l.b16 %v1895
        %v1913 = vunpack.c.l.b16 %v1896
        %v1914 = vunpack.c.l.b16 %v1897
        %v1915 = vpack.c.b16 %v1912, %v1911
        %v1916 = vpack.c.b16 %v1914, %v1913
        %vm1919 = vcmask 261120
        %v1921 = vsel %vm1919, %v1906, 0
        %1923 = vmatpush.bf16.msra.mxu0 0
        %1924 = vmatpush.bf16.msra.mxu0 0
        %1925 = vmatpush.bf16.msra.mxu0 0
        %1926 = vmatpush.bf16.msra.mxu0 0
        %1927 = vmatpush.bf16.msra.mxu0 0
        %1928 = vmatpush.bf16.msra.mxu0 0
        %1929 = vmatpush.bf16.msra.mxu0 %v1916
        %1930 = vmatpush.bf16.msra.mxu0 %v1915
        %1931 = vmatmul.bf16.gmra.mxu0 %v1921
        %v1932 = vpop.f32.mrf.mxu0
        %v1933 = vadd.f32 %v1900, %v1932
        %v1934 = vpop.f32.mrf.mxu0
        %v1935 = vadd.f32 %v1900, %v1934
        %1936 = vdwg.mxu0
        %v1937 = vld [vmem:[%s680] sm:$0xff]
        %v1938 = vld [vmem:[%s680 + $0x8] sm:$0xff]
        %v1939 = vld [vmem:[%s15] sm:$0xf]
        %vm1940 = vcmask 31744
        %v1942 = vsel %vm1940, %v1937, 0
        %v1945 = vsel %vm1940, %v1938, 0
        %vm1947 = vcmask 1043456
        %v1949 = vsel %vm1947, %v1939, 0
        %1951 = vmatpush.msra.mxu0 0.0
        %1952 = vmatpush.msra.mxu0 0.0
        %1953 = vmatpush.msra.mxu0 0.0
        %1954 = vmatpush.msra.mxu0 0.0
        %1955 = vmatpush.msra.mxu0 0.0
        %1956 = vmatpush.msra.mxu0 0.0
        %1957 = vmatpush.msra.mxu0 0.0
        %1958 = vmatpush.msra.mxu0 0.0
        %1959 = vmatpush.msra.mxu0 0.0
        %1960 = vmatpush.msra.mxu0 0.0
        %1961 = vmatpush.msra.mxu0 0.0
        %1962 = vmatpush.msra.mxu0 0.0
        %1963 = vmatpush.msra.mxu0 0.0
        %1964 = vmatpush.msra.mxu0 0.0
        %1965 = vmatpush.msra.mxu0 0.0
        %1966 = vmatpush.msra.mxu0 %v1949
        %1967 = vmatmul.f32.gmra.mxu0 %v1942
        %v1968 = vpop.f32.mrf.mxu0
        %v1969 = vadd.f32 0.0, %v1968
        %1970 = vmatmul.f32.gmra.mxu0 %v1945
        %v1971 = vpop.f32.mrf.mxu0
        %v1972 = vadd.f32 0.0, %v1971
        %1973 = vdwg.mxu0
        %v1974 = vld [vmem:[%s690] sm:$0xff]
        %v1975 = vld [vmem:[%s690 + $0x8] sm:$0xff]
        %v1977 = vsel %vm1940, %v1974, 0
        %v1980 = vsel %vm1940, %v1975, 0
        %1982 = vmatpush.msra.mxu0 0.0
        %1983 = vmatpush.msra.mxu0 0.0
        %1984 = vmatpush.msra.mxu0 0.0
        %1985 = vmatpush.msra.mxu0 0.0
        %1986 = vmatpush.msra.mxu0 0.0
        %1987 = vmatpush.msra.mxu0 0.0
        %1988 = vmatpush.msra.mxu0 0.0
        %1989 = vmatpush.msra.mxu0 0.0
        %1990 = vmatpush.msra.mxu0 0.0
        %1991 = vmatpush.msra.mxu0 0.0
        %1992 = vmatpush.msra.mxu0 0.0
        %1993 = vmatpush.msra.mxu0 0.0
        %1994 = vmatpush.msra.mxu0 0.0
        %1995 = vmatpush.msra.mxu0 0.0
        %1996 = vmatpush.msra.mxu0 0.0
        %1997 = vmatpush.msra.mxu0 %v1949
        %1998 = vmatmul.f32.gmra.mxu0 %v1977
        %v1999 = vpop.f32.mrf.mxu0
        %v2000 = vadd.f32 0.0, %v1999
        %2001 = vmatmul.f32.gmra.mxu0 %v1980
        %v2002 = vpop.f32.mrf.mxu0
        %v2003 = vadd.f32 0.0, %v2002
        %2004 = vdwg.mxu0
        %v2005 = vsub.f32 0.0, %v1933
        %v2006 = vsub.f32 0.0, %v1935
        %2009 = vrot.lane.b32.xlu0 %v2005, 124
        %v2010 = vpop.permute.xlu0 %2009
        %2011 = vrot.lane.b32.xlu0 %v2006, 124
        %v2012 = vpop.permute.xlu0 %2011
        %2017 = vrot.lane.b32.xlu0 %v1933, 4
        %v2018 = vpop.permute.xlu0 %2017
        %2019 = vrot.lane.b32.xlu0 %v1935, 4
        %v2020 = vpop.permute.xlu0 %2019
        %2023 = vrot.lane.b32.xlu0 %v1933, 124
        %v2024 = vpop.permute.xlu0 %2023
        %2025 = vrot.lane.b32.xlu0 %v1935, 124
        %v2026 = vpop.permute.xlu0 %2025
        %2029 = vrot.lane.b32.xlu0 %v2005, 4
        %v2030 = vpop.permute.xlu0 %2029
        %2031 = vrot.lane.b32.xlu0 %v2006, 4
        %v2032 = vpop.permute.xlu0 %2031
        %v2035 = vsel %vm1940, %v2010, %v2018
        %v2036 = vsel %vm1940, %v2012, %v2020
        %vm2037 = vcmask 64512
        %v2038 = vsel %vm2037, %v2035, %v2024
        %v2039 = vsel %vm2037, %v2036, %v2026
        %vm2040 = vcmask 97280
        %v2041 = vsel %vm2040, %v2038, %v2030
        %v2042 = vsel %vm2040, %v2039, %v2032
        %2043 = vrot.lane.b32.xlu0 %v1933, 16
        %v2044 = vpop.permute.xlu0 %2043
        %2045 = vrot.lane.b32.xlu0 %v1935, 16
        %v2046 = vpop.permute.xlu0 %2045
        %vm2049 = vcmask 130048
        %v2050 = vsel %vm2049, %v1933, %v2044
        %v2051 = vsel %vm2049, %v1935, %v2046
        %2054 = vrot.lane.b32.xlu0 %v2041, 16
        %v2055 = vpop.permute.xlu0 %2054
        %2056 = vrot.lane.b32.xlu0 %v2042, 16
        %v2057 = vpop.permute.xlu0 %2056
        %v2060 = vsel %vm2049, %v2041, %v2055
        %v2061 = vsel %vm2049, %v2042, %v2057
        %v2062 = vmul.f32 %v2050, %v1969
        %v2063 = vmul.f32 %v2051, %v1972
        %v2064 = vmul.f32 %v2060, %v2000
        %v2065 = vmul.f32 %v2061, %v2003
        %v2066 = vadd.f32 %v2062, %v2064
        %v2067 = vadd.f32 %v2063, %v2065
        %v2068 = vpack.c.bf16 %v2067, %v2066
        %v2069 = vld [vmem:[#allocation2] sm:$0xf]
        %v2070 = vld [vmem:[#allocation2 + $0x4] sm:$0xf]
        %v2071 = vld [vmem:[#allocation2 + $0x8] sm:$0xf]
        %v2072 = vld [vmem:[#allocation2 + $0xc] sm:$0xf]
        %v2073 = vld [vmem:[#allocation2 + $0x10] sm:$0xf]
        %v2074 = vld [vmem:[#allocation2 + $0x14] sm:$0xf]
        %v2075 = vld [vmem:[#allocation2 + $0x18] sm:$0xf]
        %v2076 = vld [vmem:[#allocation2 + $0x1c] sm:$0xf]
        %v2077 = vld [vmem:[#allocation2 + $0x20] sm:$0xf]
        %v2078 = vld [vmem:[#allocation2 + $0x24] sm:$0xf]
        %v2079 = vld [vmem:[#allocation2 + $0x28] sm:$0xf]
        %v2080 = vld [vmem:[#allocation2 + $0x2c] sm:$0xf]
        %v2093 = vunpack.c.l.b16 %v2069
        %v2094 = vunpack.c.l.b16 %v2070
        %v2095 = vunpack.c.l.b16 %v2071
        %v2096 = vunpack.c.l.b16 %v2072
        %v2097 = vunpack.c.l.b16 %v2073
        %v2098 = vunpack.c.l.b16 %v2074
        %v2099 = vunpack.c.l.b16 %v2075
        %v2100 = vunpack.c.l.b16 %v2076
        %v2101 = vunpack.c.l.b16 %v2077
        %v2102 = vunpack.c.l.b16 %v2078
        %v2103 = vunpack.c.l.b16 %v2079
        %v2104 = vunpack.c.l.b16 %v2080
        %v2105 = vpack.c.b16 %v2094, %v2093
        %v2106 = vpack.c.b16 %v2096, %v2095
        %v2107 = vpack.c.b16 %v2098, %v2097
        %v2108 = vpack.c.b16 %v2100, %v2099
        %v2109 = vpack.c.b16 %v2102, %v2101
        %v2110 = vpack.c.b16 %v2104, %v2103
        %v2112 = vsel %vm1919, %v2068, 0
        %v2115 = vsel %vm1919, %v2105, 0
        %v2118 = vsel %vm1919, %v2106, 0
        %v2121 = vsel %vm1919, %v2107, 0
        %v2124 = vsel %vm1919, %v2108, 0
        %v2127 = vsel %vm1919, %v2109, 0
        %v2130 = vsel %vm1919, %v2110, 0
        %2132 = vmatpush.bf16.xpose.msra.mxu0 0
        %2133 = vmatpush.bf16.xpose.msra.mxu0 0
        %2134 = vmatpush.bf16.xpose.msra.mxu0 %v2130
        %2135 = vmatpush.bf16.xpose.msra.mxu0 %v2127
        %2136 = vmatpush.bf16.xpose.msra.mxu0 %v2124
        %2137 = vmatpush.bf16.xpose.msra.mxu0 %v2121
        %2138 = vmatpush.bf16.xpose.msra.mxu0 %v2118
        %2139 = vmatpush.bf16.xpose.msra.mxu0 %v2115
        %2140 = vmatmul.bf16.gmra.mxu0 %v2112
        %v2141 = vpop.f32.mrf.mxu0
        %v2142 = vadd.f32 0.0, %v2141
        %v2143 = vpop.f32.mrf.mxu0
        %v2144 = vadd.f32 0.0, %v2143
        %2145 = vdwg.mxu0
        %v2146 = vmul.f32 %v2142, 0.125
        %v2147 = vmul.f32 %v2144, 0.125
        %vm2148 = vcmask 785408
        %v2149 = vsel %vm2148, %v2146, -inf
        %2150 = vmax.xlane.f32.xlu0 %v2149
        %v2151 = vpop.xlane.xlu0 %2150
        %v2152 = vsel %vm2148, %v2147, -inf
        %2153 = vmax.xlane.f32.xlu0 %v2152
        %v2154 = vpop.xlane.xlu0 %2153
        %v2155 = vsub.f32 %v2146, %v2151
        %v2156 = vsub.f32 %v2147, %v2154
        %v2157 = vmul.f32 %v2155, 1.442695
        %v2158 = vpow.pop %v2157
        %v2159 = vmul.f32 %v2156, 1.442695
        %v2160 = vpow.pop %v2159
        %v2161 = vsel %vm2148, %v2158, 0.0
        %2162 = vadd.xlane.f32.xlu0 %v2161
        %v2163 = vpop.xlane.xlu0 %2162
        %v2164 = vsel %vm2148, %v2160, 0.0
        %2165 = vadd.xlane.f32.xlu0 %v2164
        %v2166 = vpop.xlane.xlu0 %2165
        %v2167 = vpack.c.bf16 %v2160, %v2158
        %v2168 = vrcp.pop %v2163
        %v2169 = vrcp.pop %v2166
        %v2170 = vld [vmem:[#allocation3] sm:$0xf]
        %v2171 = vld [vmem:[#allocation3 + $0x4] sm:$0xf]
        %v2172 = vld [vmem:[#allocation3 + $0x8] sm:$0xf]
        %v2173 = vld [vmem:[#allocation3 + $0xc] sm:$0xf]
        %v2174 = vld [vmem:[#allocation3 + $0x10] sm:$0xf]
        %v2175 = vld [vmem:[#allocation3 + $0x14] sm:$0xf]
        %v2176 = vld [vmem:[#allocation3 + $0x18] sm:$0xf]
        %v2177 = vld [vmem:[#allocation3 + $0x1c] sm:$0xf]
        %v2178 = vld [vmem:[#allocation3 + $0x20] sm:$0xf]
        %v2179 = vld [vmem:[#allocation3 + $0x24] sm:$0xf]
        %v2180 = vld [vmem:[#allocation3 + $0x28] sm:$0xf]
        %v2181 = vld [vmem:[#allocation3 + $0x2c] sm:$0xf]
        %v2194 = vunpack.c.l.b16 %v2170
        %v2195 = vunpack.c.l.b16 %v2171
        %v2196 = vunpack.c.l.b16 %v2172
        %v2197 = vunpack.c.l.b16 %v2173
        %v2198 = vunpack.c.l.b16 %v2174
        %v2199 = vunpack.c.l.b16 %v2175
        %v2200 = vunpack.c.l.b16 %v2176
        %v2201 = vunpack.c.l.b16 %v2177
        %v2202 = vunpack.c.l.b16 %v2178
        %v2203 = vunpack.c.l.b16 %v2179
        %v2204 = vunpack.c.l.b16 %v2180
        %v2205 = vunpack.c.l.b16 %v2181
        %v2206 = vpack.c.b16 %v2195, %v2194
        %v2207 = vpack.c.b16 %v2197, %v2196
        %v2208 = vpack.c.b16 %v2199, %v2198
        %v2209 = vpack.c.b16 %v2201, %v2200
        %v2210 = vpack.c.b16 %v2203, %v2202
        %v2211 = vpack.c.b16 %v2205, %v2204
        %v2219 = vsel %vm2148, %v2167, 0
        %2221 = vmatpush.bf16.msra.mxu0 0
        %2222 = vmatpush.bf16.msra.mxu0 0
        %2223 = vmatpush.bf16.msra.mxu0 %v2211
        %2224 = vmatpush.bf16.msra.mxu0 %v2210
        %2225 = vmatpush.bf16.msra.mxu0 %v2209
        %2226 = vmatpush.bf16.msra.mxu0 %v2208
        %2227 = vmatpush.bf16.msra.mxu0 %v2207
        %2228 = vmatpush.bf16.msra.mxu0 %v2206
        %2229 = vmatmul.bf16.gmra.mxu0 %v2219
        %v2230 = vpop.f32.mrf.mxu0
        %v2231 = vadd.f32 0.0, %v2230
        %v2232 = vpop.f32.mrf.mxu0
        %v2233 = vadd.f32 0.0, %v2232
        %2234 = vdwg.mxu0
        %v2235 = vmul.f32 %v2231, %v2168
        %v2236 = vmul.f32 %v2233, %v2169
        %v2237 = vpack.c.bf16 %v2235, %v2235
        %v2238 = vpack.c.bf16 %v2236, %v2236
        %vm2239 = vcmask 125952
        %2240 = vst.msk [vmem:[#allocation4] sm:$0xf] %vm2239, %v2237
        %2241 = vst.msk [vmem:[#allocation4 + $0x4] sm:$0xf] %vm2239, %v2238
        %2242 = vrot.lane.b32.xlu0 %v2005, 108
        %v2243 = vpop.permute.xlu0 %2242
        %2244 = vrot.lane.b32.xlu0 %v2006, 108
        %v2245 = vpop.permute.xlu0 %2244
        %2248 = vrot.lane.b32.xlu0 %v1933, 116
        %v2249 = vpop.permute.xlu0 %2248
        %2250 = vrot.lane.b32.xlu0 %v1935, 116
        %v2251 = vpop.permute.xlu0 %2250
        %2254 = vrot.lane.b32.xlu0 %v1933, 108
        %v2255 = vpop.permute.xlu0 %2254
        %2256 = vrot.lane.b32.xlu0 %v1935, 108
        %v2257 = vpop.permute.xlu0 %2256
        %2260 = vrot.lane.b32.xlu0 %v2005, 116
        %v2261 = vpop.permute.xlu0 %2260
        %2262 = vrot.lane.b32.xlu0 %v2006, 116
        %v2263 = vpop.permute.xlu0 %2262
        %v2266 = vsel %vm1940, %v2243, %v2249
        %v2267 = vsel %vm1940, %v2245, %v2251
        %v2268 = vsel %vm2037, %v2266, %v2255
        %v2269 = vsel %vm2037, %v2267, %v2257
        %v2270 = vsel %vm2040, %v2268, %v2261
        %v2271 = vsel %vm2040, %v2269, %v2263
        %2272 = vrot.lane.b32.xlu0 %v1933, 112
        %v2273 = vpop.permute.xlu0 %2272
        %2274 = vrot.lane.b32.xlu0 %v1935, 112
        %v2275 = vpop.permute.xlu0 %2274
        %v2278 = vsel %vm2049, %v2273, %v1933
        %v2279 = vsel %vm2049, %v2275, %v1935
        %2282 = vrot.lane.b32.xlu0 %v2270, 16
        %v2283 = vpop.permute.xlu0 %2282
        %2284 = vrot.lane.b32.xlu0 %v2271, 16
        %v2285 = vpop.permute.xlu0 %2284
        %v2288 = vsel %vm2049, %v2270, %v2283
        %v2289 = vsel %vm2049, %v2271, %v2285
        %2292 = vrot.lane.b32.xlu0 %v1969, 96
        %v2293 = vpop.permute.xlu0 %2292
        %2294 = vrot.lane.b32.xlu0 %v1972, 96
        %v2295 = vpop.permute.xlu0 %2294
        %v2298 = vmul.f32 %v2278, %v2293
        %v2299 = vmul.f32 %v2279, %v2295
        %2302 = vrot.lane.b32.xlu0 %v2000, 96
        %v2303 = vpop.permute.xlu0 %2302
        %2304 = vrot.lane.b32.xlu0 %v2003, 96
        %v2305 = vpop.permute.xlu0 %2304
        %v2308 = vmul.f32 %v2288, %v2303
        %v2309 = vmul.f32 %v2289, %v2305
        %v2310 = vadd.f32 %v2298, %v2308
        %v2311 = vadd.f32 %v2299, %v2309
        %v2312 = vpack.c.bf16 %v2311, %v2310
        %v2313 = vld [vmem:[#allocation2] sm:$0xf]
        %v2314 = vld [vmem:[#allocation2 + $0x4] sm:$0xf]
        %v2315 = vld [vmem:[#allocation2 + $0x8] sm:$0xf]
        %v2316 = vld [vmem:[#allocation2 + $0xc] sm:$0xf]
        %v2317 = vld [vmem:[#allocation2 + $0x10] sm:$0xf]
        %v2318 = vld [vmem:[#allocation2 + $0x14] sm:$0xf]
        %v2319 = vld [vmem:[#allocation2 + $0x18] sm:$0xf]
        %v2320 = vld [vmem:[#allocation2 + $0x1c] sm:$0xf]
        %v2321 = vld [vmem:[#allocation2 + $0x20] sm:$0xf]
        %v2322 = vld [vmem:[#allocation2 + $0x24] sm:$0xf]
        %v2323 = vld [vmem:[#allocation2 + $0x28] sm:$0xf]
        %v2324 = vld [vmem:[#allocation2 + $0x2c] sm:$0xf]
        %v2337 = vunpack.c.l.b16 %v2313
        %v2338 = vunpack.c.l.b16 %v2314
        %v2339 = vunpack.c.l.b16 %v2315
        %v2340 = vunpack.c.l.b16 %v2316
        %v2341 = vunpack.c.l.b16 %v2317
        %v2342 = vunpack.c.l.b16 %v2318
        %v2343 = vunpack.c.l.b16 %v2319
        %v2344 = vunpack.c.l.b16 %v2320
        %v2345 = vunpack.c.l.b16 %v2321
        %v2346 = vunpack.c.l.b16 %v2322
        %v2347 = vunpack.c.l.b16 %v2323
        %v2348 = vunpack.c.l.b16 %v2324
        %v2349 = vpack.c.b16 %v2338, %v2337
        %v2350 = vpack.c.b16 %v2340, %v2339
        %v2351 = vpack.c.b16 %v2342, %v2341
        %v2352 = vpack.c.b16 %v2344, %v2343
        %v2353 = vpack.c.b16 %v2346, %v2345
        %v2354 = vpack.c.b16 %v2348, %v2347
        %2355 = vrot.lane.b32.xlu0 %v2349, 96
        %v2356 = vpop.permute.xlu0 %2355
        %2357 = vrot.lane.b32.xlu0 %v2350, 96
        %v2358 = vpop.permute.xlu0 %2357
        %2359 = vrot.lane.b32.xlu0 %v2351, 96
        %v2360 = vpop.permute.xlu0 %2359
        %2361 = vrot.lane.b32.xlu0 %v2352, 96
        %v2362 = vpop.permute.xlu0 %2361
        %2363 = vrot.lane.b32.xlu0 %v2353, 96
        %v2364 = vpop.permute.xlu0 %2363
        %2365 = vrot.lane.b32.xlu0 %v2354, 96
        %v2366 = vpop.permute.xlu0 %2365
        %v2368 = vsel %vm1919, %v2312, 0
        %v2371 = vsel %vm1919, %v2356, 0
        %v2374 = vsel %vm1919, %v2358, 0
        %v2377 = vsel %vm1919, %v2360, 0
        %v2380 = vsel %vm1919, %v2362, 0
        %v2383 = vsel %vm1919, %v2364, 0
        %v2386 = vsel %vm1919, %v2366, 0
        %2388 = vmatpush.bf16.xpose.msra.mxu0 0
        %2389 = vmatpush.bf16.xpose.msra.mxu0 0
        %2390 = vmatpush.bf16.xpose.msra.mxu0 %v2386
        %2391 = vmatpush.bf16.xpose.msra.mxu0 %v2383
        %2392 = vmatpush.bf16.xpose.msra.mxu0 %v2380
        %2393 = vmatpush.bf16.xpose.msra.mxu0 %v2377
        %2394 = vmatpush.bf16.xpose.msra.mxu0 %v2374
        %2395 = vmatpush.bf16.xpose.msra.mxu0 %v2371
        %2396 = vmatmul.bf16.gmra.mxu0 %v2368
        %v2397 = vpop.f32.mrf.mxu0
        %v2398 = vadd.f32 0.0, %v2397
        %v2399 = vpop.f32.mrf.mxu0
        %v2400 = vadd.f32 0.0, %v2399
        %2401 = vdwg.mxu0
        %v2402 = vmul.f32 %v2398, 0.125
        %v2403 = vmul.f32 %v2400, 0.125
        %v2404 = vsel %vm2148, %v2402, -inf
        %2405 = vmax.xlane.f32.xlu0 %v2404
        %v2406 = vpop.xlane.xlu0 %2405
        %v2407 = vsel %vm2148, %v2403, -inf
        %2408 = vmax.xlane.f32.xlu0 %v2407
        %v2409 = vpop.xlane.xlu0 %2408
        %v2410 = vsub.f32 %v2402, %v2406
        %v2411 = vsub.f32 %v2403, %v2409
        %v2412 = vmul.f32 %v2410, 1.442695
        %v2413 = vpow.pop %v2412
        %v2414 = vmul.f32 %v2411, 1.442695
        %v2415 = vpow.pop %v2414
        %v2416 = vsel %vm2148, %v2413, 0.0
        %2417 = vadd.xlane.f32.xlu0 %v2416
        %v2418 = vpop.xlane.xlu0 %2417
        %v2419 = vsel %vm2148, %v2415, 0.0
        %2420 = vadd.xlane.f32.xlu0 %v2419
        %v2421 = vpop.xlane.xlu0 %2420
        %v2422 = vpack.c.bf16 %v2415, %v2413
        %v2423 = vrcp.pop %v2418
        %v2424 = vrcp.pop %v2421
        %v2425 = vld [vmem:[#allocation3] sm:$0xf]
        %v2426 = vld [vmem:[#allocation3 + $0x4] sm:$0xf]
        %v2427 = vld [vmem:[#allocation3 + $0x8] sm:$0xf]
        %v2428 = vld [vmem:[#allocation3 + $0xc] sm:$0xf]
        %v2429 = vld [vmem:[#allocation3 + $0x10] sm:$0xf]
        %v2430 = vld [vmem:[#allocation3 + $0x14] sm:$0xf]
        %v2431 = vld [vmem:[#allocation3 + $0x18] sm:$0xf]
        %v2432 = vld [vmem:[#allocation3 + $0x1c] sm:$0xf]
        %v2433 = vld [vmem:[#allocation3 + $0x20] sm:$0xf]
        %v2434 = vld [vmem:[#allocation3 + $0x24] sm:$0xf]
        %v2435 = vld [vmem:[#allocation3 + $0x28] sm:$0xf]
        %v2436 = vld [vmem:[#allocation3 + $0x2c] sm:$0xf]
        %v2449 = vunpack.c.l.b16 %v2425
        %v2450 = vunpack.c.l.b16 %v2426
        %v2451 = vunpack.c.l.b16 %v2427
        %v2452 = vunpack.c.l.b16 %v2428
        %v2453 = vunpack.c.l.b16 %v2429
        %v2454 = vunpack.c.l.b16 %v2430
        %v2455 = vunpack.c.l.b16 %v2431
        %v2456 = vunpack.c.l.b16 %v2432
        %v2457 = vunpack.c.l.b16 %v2433
        %v2458 = vunpack.c.l.b16 %v2434
        %v2459 = vunpack.c.l.b16 %v2435
        %v2460 = vunpack.c.l.b16 %v2436
        %v2461 = vpack.c.b16 %v2450, %v2449
        %v2462 = vpack.c.b16 %v2452, %v2451
        %v2463 = vpack.c.b16 %v2454, %v2453
        %v2464 = vpack.c.b16 %v2456, %v2455
        %v2465 = vpack.c.b16 %v2458, %v2457
        %v2466 = vpack.c.b16 %v2460, %v2459
        %2467 = vrot.lane.b32.xlu0 %v2461, 112
        %v2468 = vpop.permute.xlu0 %2467
        %2469 = vrot.lane.b32.xlu0 %v2462, 112
        %v2470 = vpop.permute.xlu0 %2469
        %2471 = vrot.lane.b32.xlu0 %v2463, 112
        %v2472 = vpop.permute.xlu0 %2471
        %2473 = vrot.lane.b32.xlu0 %v2464, 112
        %v2474 = vpop.permute.xlu0 %2473
        %2475 = vrot.lane.b32.xlu0 %v2465, 112
        %v2476 = vpop.permute.xlu0 %2475
        %2477 = vrot.lane.b32.xlu0 %v2466, 112
        %v2478 = vpop.permute.xlu0 %2477
        %v2486 = vsel %vm2148, %v2422, 0
        %2488 = vmatpush.bf16.msra.mxu0 0
        %2489 = vmatpush.bf16.msra.mxu0 0
        %2490 = vmatpush.bf16.msra.mxu0 %v2478
        %2491 = vmatpush.bf16.msra.mxu0 %v2476
        %2492 = vmatpush.bf16.msra.mxu0 %v2474
        %2493 = vmatpush.bf16.msra.mxu0 %v2472
        %2494 = vmatpush.bf16.msra.mxu0 %v2470
        %2495 = vmatpush.bf16.msra.mxu0 %v2468
        %2496 = vmatmul.bf16.gmra.mxu0 %v2486
        %v2497 = vpop.f32.mrf.mxu0
        %v2498 = vadd.f32 0.0, %v2497
        %v2499 = vpop.f32.mrf.mxu0
        %v2500 = vadd.f32 0.0, %v2499
        %2501 = vdwg.mxu0
        %v2502 = vmul.f32 %v2498, %v2423
        %v2503 = vmul.f32 %v2500, %v2424
        %v2504 = vpack.c.bf16 %v2502, %v2502
        %v2505 = vpack.c.bf16 %v2503, %v2503
        %2508 = vrot.lane.b32.xlu0 %v2504, 16
        %v2509 = vpop.permute.xlu0 %2508
        %2510 = vrot.lane.b32.xlu0 %v2505, 16
        %v2511 = vpop.permute.xlu0 %2510
        %vm2514 = vcmask 257152
        %2515 = vst.msk [vmem:[#allocation4] sm:$0xf] %vm2514, %v2509
        %2516 = vst.msk [vmem:[#allocation4 + $0x4] sm:$0xf] %vm2514, %v2511
        %v2517 = vld [vmem:[#allocation4] sm:$0xf]
        %v2518 = vld [vmem:[#allocation4 + $0x4] sm:$0xf]
        %v2519 = vld [vmem:[%s13] sm:$0xf]
        %v2520 = vld [vmem:[%s13 + $0x4] sm:$0xf]
        %v2521 = vld [vmem:[%s13 + $0x8] sm:$0xf]
        %v2522 = vld [vmem:[%s13 + $0xc] sm:$0xf]
        %v2523 = vld [vmem:[%s14] sm:$0x1]
        %v2525 = vperm.slane %v2523, 0
        %v2529 = vunpack.c.l.b16 %v2517
        %v2530 = vunpack.c.l.b16 %v2518
        %v2531 = vpack.c.b16 %v2530, %v2529
        %v2536 = vunpack.c.l.b16 %v2519
        %v2537 = vunpack.c.l.b16 %v2520
        %v2538 = vunpack.c.l.b16 %v2521
        %v2539 = vunpack.c.l.b16 %v2522
        %v2540 = vpack.c.b16 %v2537, %v2536
        %v2541 = vpack.c.b16 %v2539, %v2538
        %v2545 = vsel %vm1919, %v2531, 0
        %2547 = vmatpush.bf16.msra.mxu0 0
        %2548 = vmatpush.bf16.msra.mxu0 0
        %2549 = vmatpush.bf16.msra.mxu0 0
        %2550 = vmatpush.bf16.msra.mxu0 0
        %2551 = vmatpush.bf16.msra.mxu0 0
        %2552 = vmatpush.bf16.msra.mxu0 0
        %2553 = vmatpush.bf16.msra.mxu0 %v2541
        %2554 = vmatpush.bf16.msra.mxu0 %v2540
        %2555 = vmatmul.bf16.gmra.mxu0 %v2545
        %v2556 = vpop.f32.mrf.mxu0
        %v2557 = vadd.f32 %v2525, %v2556
        %v2558 = vpop.f32.mrf.mxu0
        %v2559 = vadd.f32 %v2525, %v2558
        %2560 = vdwg.mxu0
        %2561 = vst.msk [vmem:[%s651] sm:$0xff] %vm1919, %v2557
        %2562 = vst.msk [vmem:[%s651 + $0x8] sm:$0xff] %vm1919, %v2559
        %s2563 = sand.u32 %s429, 1
        %s2564 = scalar_lea.sflag [#allocation6], %s2563
        %s2565 = sand.u32 %s429, 1
        %s2566 = smul.addr %s2565, 16
        %s2567 = scalar_lea.vmem [#allocation5], %s2566
        // Predicated region
        $region89: #{decoupling_forward_pallas.3} parent=83 // pred_check
          %p2568 = pneg %p439
        $region90: #{decoupling_forward_pallas.3} parent=83 // pred_check_branch
          %2570 = sbr.rel (%p2568) target = $region92
        $region91: #{decoupling_forward_pallas.3} parent=83 // pred_region
          %s2571 = smul.u32 2, %s35
          %2573 = vsyncadd %s2564, 0
          %s2574 = smul.addr %s34, 2
          %s2575 = sadd.s32 %s2571, %s2574
          %s2576 = smul.addr %s2575, 8
          %s2577 = scalar_lea.hbm %s16, %s2576
          %s2578 = sshll.u32 %s2567, 4
          %s2579 = int_to_ptr.vmem [resolvable:$true] %s2578
          %s2580 = sshll.u32 %s2577, 4
          %s2581 = int_to_ptr.hbm [resolvable:$true] %s2580
          %2586 = dma.vmem_to_hbm [thread:$0]  %s2579, 256, %s2581, %s2564, 128, 128, 8
        $region92: #{decoupling_forward_pallas.3} parent=83 // pred_fallthru
          _
      $region84: #{decoupling_forward_pallas.3} parent=5 // pred_fallthru
        _
      %p2587 = scmp.le.s32.totalorder 2, %s25
      // Predicated region
      $region93: #{decoupling_forward_pallas.3} parent=5 // pred_check
        %p2588 = pneg %p2587
      $region94: #{decoupling_forward_pallas.3} parent=5 // pred_check_branch
        %2590 = sbr.rel (%p2588) target = $region96
      $region95: #{decoupling_forward_pallas.3} parent=5 // pred_region
        %s2591 = ssub.s32 %s25, 2
        // Predicated region
        $region97: #{decoupling_forward_pallas.3} parent=95 // pred_check
          %p2592 = pneg %p445
        $region98: #{decoupling_forward_pallas.3} parent=95 // pred_check_branch
          %2594 = sbr.rel (%p2592) target = $region100
        $region99: #{decoupling_forward_pallas.3} parent=95 // pred_region
          %s2595 = sand.u32 %s430, 1
          %s2596 = scalar_lea.sflag [#allocation6], %s2595
          %s2597 = sand.u32 %s430, 1
          %s2598 = smul.addr %s2597, 16
          %s2599 = scalar_lea.vmem [#allocation5], %s2598
          %2601 = dma.done %s2596, 256
        $region100: #{decoupling_forward_pallas.3} parent=95 // pred_fallthru
          _
      $region96: #{decoupling_forward_pallas.3} parent=5 // pred_fallthru
        _
    $region6: #{decoupling_forward_pallas.3} parent=1 // loop_footer
      %s29 = sadd.s32 1, %s25
    $region7: #{decoupling_forward_pallas.3} parent=1 // loop_footer_branch
      %24 = sbr.rel target = $region3
    $region8: #{decoupling_forward_pallas.3} parent=1 // loop_exit
      _
    %2602 = vsyncpa [#allocation6], 1
    %s2603 = scalar_lea.sflag [#allocation6], 1
    %2604 = vsyncpa %s2603, 1

</llo_original>
